<compile_context>
chip_gen: v6e
topology: v6e:2x2x1
jax: 0.10.0
libtpu: 0.0.40
codegen_flags: <defaults>
</compile_context>

<pallas_src>
import functools

import jax
import jax.numpy as jnp
from jax import lax
from jax.experimental import pallas as pl
from jax.experimental.pallas import tpu as pltpu


def _round_up(x, m):
    return (x + m - 1) // m * m


# -----------------------------------------------------------------------------
# Fused kernel: wavefront over 3 stacked LSTM layers + dense head on h3[T-1].
# Gate order follows PyTorch: i, f, g, o.
# -----------------------------------------------------------------------------
def fused_lstm3_dense_kernel(
    x_ref,      # (T*Bp, I)   bf16   time-major, row blocks of Bp per timestep
    wih1_ref,   # (I, 4H)     bf16
    whh1_ref,   # (H, 4H)     bf16
    b1_ref,     # (1, 4H)     f32    (b_ih + b_hh)
    w2_ref,     # (2H, 4H)    bf16   fused [W_ih2 ; W_hh2]
    b2_ref,     # (1, 4H)     f32
    w3_ref,     # (2H, 4H)    bf16   fused [W_ih3 ; W_hh3]
    b3_ref,     # (1, 4H)     f32
    wd_ref,     # (H, Op)     bf16   head weight, lane-padded (Op mult of 128)
    bd_ref,     # (1, Op)     f32
    out_ref,    # (Bp, Op)    f32    lane-dense output
    g1_scr,     # (T*Bp, 4H)  f32    hoisted layer-1 input projection
    *, T, Bp,
):
    H4 = whh1_ref.shape[-1]
    H = H4 // 4
    bf16 = jnp.bfloat16

    # ---- Hoisted layer-1 input projection: one big MXU matmul over all rows.
    g1_scr[...] = jnp.dot(x_ref[...], wih1_ref[...],
                          preferred_element_type=jnp.float32) + b1_ref[...]

    # ---- Loop-invariant weights/biases hoisted: stay vreg-resident.
    whh1 = whh1_ref[...]
    w2 = w2_ref[...]
    w3 = w3_ref[...]
    b2 = jnp.broadcast_to(b2_ref[...], (Bp, H4))
    b3 = jnp.broadcast_to(b3_ref[...], (Bp, H4))

    def cell(pre, c_prev):
        # One full-width sigmoid push + one narrow tanh, instead of 4 narrow
        # transcendental pushes per cell. Gate math stays f32 (v5e-safe).
        sig = jax.nn.sigmoid(pre)                 # (rows, 4H) single EUP stream
        i_g = sig[:, 0 * H:1 * H]
        f_g = sig[:, 1 * H:2 * H]
        o_g = sig[:, 3 * H:4 * H]
        g_g = jnp.tanh(pre[:, 2 * H:3 * H])
        c_new = f_g * c_prev + i_g * g_g
        h_new = o_g * jnp.tanh(c_new)
        return h_new, c_new                        # f32 carries

    def step(d, carry):
        # Wavefront / diagonal step d:
        #   layer1 -> time t = d       (valid for d <  T)
        #   layer2 -> time t = d - 1   (valid for 1 <= d <= T)
        #   layer3 -> time t = d - 2   (valid for d >= 2)
        # All three updates read only the PREVIOUS step's carries, so they are
        # independent within the step and their MXU/EUP work overlaps.
        h1, c1, h2, c2, h3, c3 = carry

        # Layer 1: hoisted input projection + hidden matmul.
        row = pl.multiple_of(jnp.minimum(d, T - 1) * Bp, Bp)
        pre1 = g1_scr[pl.ds(row, Bp)] + jnp.dot(
            h1.astype(bf16), whh1, preferred_element_type=jnp.float32)
        h1n, c1n = cell(pre1, c1)

        # Layer 2: single fused dot against [W_ih2 ; W_hh2].
        lhs2 = jnp.concatenate([h1, h2], axis=-1).astype(bf16)   # (Bp, 2H)
        pre2 = jnp.dot(lhs2, w2, preferred_element_type=jnp.float32) + b2
        h2n, c2n = cell(pre2, c2)

        # Layer 3: single fused dot against [W_ih3 ; W_hh3].
        lhs3 = jnp.concatenate([h2, h3], axis=-1).astype(bf16)   # (Bp, 2H)
        pre3 = jnp.dot(lhs3, w3, preferred_element_type=jnp.float32) + b3
        h3n, c3n = cell(pre3, c3)

        # Validity masks for the wavefront warm-up / cool-down.
        v1 = d < T
        v2 = jnp.logical_and(d >= 1, d <= T)
        v3 = d >= 2
        h1 = jnp.where(v1, h1n, h1); c1 = jnp.where(v1, c1n, c1)
        h2 = jnp.where(v2, h2n, h2); c2 = jnp.where(v2, c2n, c2)
        h3 = jnp.where(v3, h3n, h3); c3 = jnp.where(v3, c3n, c3)
        return (h1, c1, h2, c2, h3, c3)

    zeros = jnp.zeros((Bp, H), jnp.float32)        # h0 = c0 = 0 (PyTorch)
    n_steps = T + 2
    unroll = n_steps if n_steps <= 16 else 8       # partial unroll for long T
    carry = lax.fori_loop(0, n_steps, step, (zeros,) * 6, unroll=unroll)
    h3_last = carry[4]                             # layer-3 hidden at t = T-1

    # Dense head fused on h3[T-1] (dropout = identity at inference).
    out_ref[...] = jnp.dot(h3_last.astype(bf16), wd_ref[...],
                           preferred_element_type=jnp.float32) + bd_ref[...]


_VMEM_SPEC = pl.BlockSpec(memory_space=pltpu.MemorySpace.VMEM)


def fused_forward(x2d, params, *, T, Bp):
    """x2d: (T*Bp, I) bf16, time-major rows in blocks of Bp (batch pre-padded)."""
    wih1, whh1, b1 = params["lstm1"]
    w2, b2 = params["lstm2"]
    w3, b3 = params["lstm3"]
    wd, bd = params["dense"]
    H4 = whh1.shape[-1]
    Op = wd.shape[-1]

    kernel = functools.partial(fused_lstm3_dense_kernel, T=T, Bp=Bp)
    return pl.pallas_call(
        kernel,
        out_shape=jax.ShapeDtypeStruct((Bp, Op), jnp.float32),
        in_specs=[_VMEM_SPEC] * 10,
        out_specs=_VMEM_SPEC,
        scratch_shapes=[pltpu.VMEM((T * Bp, H4), jnp.float32)],
        compiler_params=pltpu.CompilerParams(
            vmem_limit_bytes=32 * 1024 * 1024,
        ),
    )(x2d, wih1, whh1, b1, w2, b2, w3, b3, wd, bd)


# -----------------------------------------------------------------------------
# Full model forward (== Model.forward in eval mode)
# -----------------------------------------------------------------------------
@functools.partial(jax.jit, static_argnames=("seg_num_y", "seg_len", "out_features"))
def model_forward(x, params, *, seg_num_y, seg_len, out_features):
    # x: (B, T, enc_in), batch_first like PyTorch.
    B, T, F = x.shape
    Bp = max(8, _round_up(B, 8))                       # sublane-multiple batch
    x_tm = jnp.transpose(x, (1, 0, 2))                 # (T, B, F) time-major
    x_tm = jnp.pad(x_tm, ((0, 0), (0, Bp - B), (0, 0)))
    x2d = x_tm.reshape(T * Bp, F).astype(jnp.bfloat16)

    y_full = fused_forward(x2d, params, T=T, Bp=Bp)    # (Bp, Op) lane-dense
    O = seg_len * out_features
    y = y_full[:B, :O]                                 # drop batch/lane padding
    return y.reshape(-1, seg_num_y * seg_len, out_features)


# -----------------------------------------------------------------------------
# Parameter init (PyTorch-style uniform(-1/sqrt(H), 1/sqrt(H))) + packing.
# -----------------------------------------------------------------------------
def init_raw_params(key, enc_in, d_model, seg_len, out_features):
    H = d_model
    bound = 1.0 / (float(H) ** 0.5)

    def u(k, shape):
        return jax.random.uniform(k, shape, jnp.float32, -bound, bound)

    keys = jax.random.split(key, 14)
    ki = iter(keys)
    raw = {}
    for name, in_sz in (("lstm1", enc_in), ("lstm2", d_model), ("lstm3", d_model)):
        raw[name] = dict(
            w_ih=u(next(ki), (4 * H, in_sz)),          # PyTorch weight_ih_l0
            w_hh=u(next(ki), (4 * H, H)),              # PyTorch weight_hh_l0
            b_ih=u(next(ki), (4 * H,)),
            b_hh=u(next(ki), (4 * H,)),
        )
    O = seg_len * out_features
    raw["dense"] = dict(w=u(next(ki), (O, d_model)),   # nn.Linear (out, in)
                        b=u(next(ki), (O,)))
    return raw


def pack_params(raw, d_model):
    """Pre-transpose, fuse [W_ih; W_hh] for layers 2/3, cast to bf16, pad head."""
    H = d_model
    params = {}
    p1 = raw["lstm1"]
    params["lstm1"] = (
        p1["w_ih"].T.astype(jnp.bfloat16),                       # (I, 4H)
        p1["w_hh"].T.astype(jnp.bfloat16),                       # (H, 4H)
        (p1["b_ih"] + p1["b_hh"])[None, :].astype(jnp.float32),  # (1, 4H)
    )
    for name in ("lstm2", "lstm3"):
        p = raw[name]
        w_fused = jnp.concatenate([p["w_ih"].T, p["w_hh"].T], axis=0)  # (2H, 4H)
        params[name] = (
            w_fused.astype(jnp.bfloat16),
            (p["b_ih"] + p["b_hh"])[None, :].astype(jnp.float32),
        )
    O = raw["dense"]["w"].shape[0]
    Op = max(128, _round_up(O, 128))                   # lane-dense head output
    wd = jnp.zeros((H, Op), jnp.float32).at[:, :O].set(raw["dense"]["w"].T)
    bd = jnp.zeros((1, Op), jnp.float32).at[:, :O].set(raw["dense"]["b"][None, :])
    params["dense"] = (wd.astype(jnp.bfloat16), bd)
    return params


# -----------------------------------------------------------------------------
# Pure-JAX f32 reference (mirrors the PyTorch module) for validation.
# -----------------------------------------------------------------------------
def reference_forward(x, raw, *, seg_num_y, seg_len, out_features):
    def lstm_layer(x_seq, p):
        W_ih, W_hh = p["w_ih"], p["w_hh"]
        b = p["b_ih"] + p["b_hh"]
        B = x_seq.shape[0]
        H = W_hh.shape[1]

        def step(carry, x_t):
            h, c = carry
            gates = x_t @ W_ih.T + h @ W_hh.T + b
            i, f, g, o = jnp.split(gates, 4, axis=-1)
            i = jax.nn.sigmoid(i)
            f = jax.nn.sigmoid(f)
            g = jnp.tanh(g)
            o = jax.nn.sigmoid(o)
            c = f * c + i * g
            h = o * jnp.tanh(c)
            return (h, c), h

        h0 = jnp.zeros((B, H), jnp.float32)
        _, hs = lax.scan(step, (h0, h0), jnp.transpose(x_seq, (1, 0, 2)))
        return jnp.transpose(hs, (1, 0, 2))

    x1 = lstm_layer(x, raw["lstm1"])
    x2 = lstm_layer(x1, raw["lstm2"])
    x3 = lstm_layer(x2, raw["lstm3"])
    y = x3[:, -1, :] @ raw["dense"]["w"].T + raw["dense"]["b"]
    return y.reshape(-1, seg_num_y * seg_len, out_features)


if __name__ == "__main__":
    # Config consistent with the module's reshape: pred_len == seg_len (seg_num_y=1)
    B = 2
    seq_len = 8
    pred_len = 4
    seg_len = 4
    enc_in = 4
    d_model = 32
    out_features = 2
    seg_num_y = pred_len // seg_len

    key = jax.random.PRNGKey(0)
    k_x, k_p = jax.random.split(key)
    x = jax.random.normal(k_x, (B, seq_len, enc_in), dtype=jnp.float32)
    raw = init_raw_params(k_p, enc_in, d_model, seg_len, out_features)
    params = pack_params(raw, d_model)

    out = model_forward(
        x, params,
        seg_num_y=seg_num_y, seg_len=seg_len, out_features=out_features,
    )
    out = jax.block_until_ready(out)
    assert out.shape == (B, seg_num_y * seg_len, out_features), out.shape
    assert bool(jnp.all(jnp.isfinite(out)))

    # Validate the fused bf16 kernel against the f32 reference (inference drift).
    ref = reference_forward(x, raw, seg_num_y=seg_num_y, seg_len=seg_len,
                            out_features=out_features)
    err = float(jnp.max(jnp.abs(out - ref)))
    assert err < 5e-2, f"max abs error vs f32 reference: {err}"
    print("KERNEL_OK")
</pallas_src>

<mosaic_0001>
module attributes {stable_mosaic.version = 11 : i64} {
  func.func @fused_lstm3_dense_kernel(%arg0: memref<64x4xbf16, #tpu.memory_space<vmem>>, %arg1: memref<4x128xbf16, #tpu.memory_space<vmem>>, %arg2: memref<32x128xbf16, #tpu.memory_space<vmem>>, %arg3: memref<1x128xf32, #tpu.memory_space<vmem>>, %arg4: memref<64x128xbf16, #tpu.memory_space<vmem>>, %arg5: memref<1x128xf32, #tpu.memory_space<vmem>>, %arg6: memref<64x128xbf16, #tpu.memory_space<vmem>>, %arg7: memref<1x128xf32, #tpu.memory_space<vmem>>, %arg8: memref<32x128xbf16, #tpu.memory_space<vmem>>, %arg9: memref<1x128xf32, #tpu.memory_space<vmem>>, %arg10: memref<8x128xf32, #tpu.memory_space<vmem>>, %arg11: memref<64x128xf32, #tpu.memory_space<vmem>>) attributes {dimension_semantics = [], scalar_prefetch = 0 : i64, scratch_operands = 1 : i64, tpu.core_type = #tpu.core_type<tc>} {
    %c0 = arith.constant 0 : index
    %c0_0 = arith.constant 0 : index
    %0 = vector.load %arg0[%c0, %c0_0] : memref<64x4xbf16, #tpu.memory_space<vmem>>, vector<64x4xbf16>
    %c0_1 = arith.constant 0 : index
    %c0_2 = arith.constant 0 : index
    %1 = vector.load %arg1[%c0_1, %c0_2] : memref<4x128xbf16, #tpu.memory_space<vmem>>, vector<4x128xbf16>
    %cst = arith.constant dense<0.000000e+00> : vector<64x128xf32>
    %2 = tpu.matmul %0, %1, %cst {dimension_numbers = #tpu.dot_dimension_numbers<[1], [0], [0], [1], [0, 0, 1, 1], [], []>} : vector<64x4xbf16>, vector<4x128xbf16>, vector<64x128xf32> -> vector<64x128xf32>
    %c0_3 = arith.constant 0 : index
    %c0_4 = arith.constant 0 : index
    %3 = vector.load %arg3[%c0_3, %c0_4] : memref<1x128xf32, #tpu.memory_space<vmem>>, vector<1x128xf32>
    %4 = vector.broadcast %3 : vector<1x128xf32> to vector<64x128xf32>
    %5 = arith.addf %2, %4 : vector<64x128xf32>
    %c0_5 = arith.constant 0 : index
    %c0_6 = arith.constant 0 : index
    %6 = vector.load %arg11[%c0_5, %c0_6] : memref<64x128xf32, #tpu.memory_space<vmem>>, vector<64x128xf32>
    tpu.vector_store %arg11[%c0_5, %c0_6], %5 {strides = array<i32>} : memref<64x128xf32, #tpu.memory_space<vmem>>, vector<64x128xf32>,
    %c0_7 = arith.constant 0 : index
    %c0_8 = arith.constant 0 : index
    %7 = vector.load %arg2[%c0_7, %c0_8] : memref<32x128xbf16, #tpu.memory_space<vmem>>, vector<32x128xbf16>
    %c0_9 = arith.constant 0 : index
    %c0_10 = arith.constant 0 : index
    %8 = vector.load %arg4[%c0_9, %c0_10] : memref<64x128xbf16, #tpu.memory_space<vmem>>, vector<64x128xbf16>
    %c0_11 = arith.constant 0 : index
    %c0_12 = arith.constant 0 : index
    %9 = vector.load %arg6[%c0_11, %c0_12] : memref<64x128xbf16, #tpu.memory_space<vmem>>, vector<64x128xbf16>
    %c0_13 = arith.constant 0 : index
    %c0_14 = arith.constant 0 : index
    %10 = vector.load %arg5[%c0_13, %c0_14] : memref<1x128xf32, #tpu.memory_space<vmem>>, vector<1x128xf32>
    %11 = vector.shape_cast %10 : vector<1x128xf32> to vector<1x128xf32>
    %12 = vector.broadcast %11 : vector<1x128xf32> to vector<8x128xf32>
    %c0_15 = arith.constant 0 : index
    %c0_16 = arith.constant 0 : index
    %13 = vector.load %arg7[%c0_15, %c0_16] : memref<1x128xf32, #tpu.memory_space<vmem>>, vector<1x128xf32>
    %14 = vector.shape_cast %13 : vector<1x128xf32> to vector<1x128xf32>
    %15 = vector.broadcast %14 : vector<1x128xf32> to vector<8x128xf32>
    %cst_17 = arith.constant 0.000000e+00 : f32
    %16 = vector.broadcast %cst_17 : f32 to vector<8x32xf32>
    %c0_i32 = arith.constant 0 : i32
    %c7_i32 = arith.constant 7 : i32
    %17 = arith.minsi %c0_i32, %c7_i32 : i32
    %c8_i32 = arith.constant 8 : i32
    %18 = arith.muli %17, %c8_i32 : i32
    %19 = tpu.assume_multiple %18, 8 : i32
    %20 = arith.index_cast %19 : i32 to index
    %c0_18 = arith.constant 0 : index
    %21 = vector.load %arg11[%20, %c0_18] : memref<64x128xf32, #tpu.memory_space<vmem>>, vector<8x128xf32>
    %22 = arith.truncf %16 : vector<8x32xf32> to vector<8x32xbf16>
    %cst_19 = arith.constant dense<0.000000e+00> : vector<8x128xf32>
    %23 = tpu.matmul %22, %7, %cst_19 {dimension_numbers = #tpu.dot_dimension_numbers<[1], [0], [0], [1], [0, 0, 1, 1], [], []>} : vector<8x32xbf16>, vector<32x128xbf16>, vector<8x128xf32> -> vector<8x128xf32>
    %24 = arith.addf %21, %23 : vector<8x128xf32>
    %25 = arith.negf %24 : vector<8x128xf32>
    %26 = math.exp %25 : vector<8x128xf32>
    %cst_20 = arith.constant 1.000000e+00 : f32
    %27 = vector.broadcast %cst_20 : f32 to vector<8x128xf32>
    %28 = arith.addf %27, %26 : vector<8x128xf32>
    %29 = arith.divf %27, %28 : vector<8x128xf32>
    %30 = vector.extract_strided_slice %29 {offsets = [0, 0], sizes = [8, 32], strides = [1, 1]} : vector<8x128xf32> to vector<8x32xf32>
    %31 = vector.extract_strided_slice %29 {offsets = [0, 32], sizes = [8, 32], strides = [1, 1]} : vector<8x128xf32> to vector<8x32xf32>
    %32 = vector.extract_strided_slice %29 {offsets = [0, 96], sizes = [8, 32], strides = [1, 1]} : vector<8x128xf32> to vector<8x32xf32>
    %33 = vector.extract_strided_slice %24 {offsets = [0, 64], sizes = [8, 32], strides = [1, 1]} : vector<8x128xf32> to vector<8x32xf32>
    %34 = math.tanh %33 : vector<8x32xf32>
    %35 = arith.mulf %31, %16 : vector<8x32xf32>
    %36 = arith.mulf %30, %34 : vector<8x32xf32>
    %37 = arith.addf %35, %36 : vector<8x32xf32>
    %38 = math.tanh %37 : vector<8x32xf32>
    %39 = arith.mulf %32, %38 : vector<8x32xf32>
    %40 = tpu.concatenate %16, %16 in 1 : vector<8x32xf32>, vector<8x32xf32> -> vector<8x64xf32>
    %41 = arith.truncf %40 : vector<8x64xf32> to vector<8x64xbf16>
    %cst_21 = arith.constant dense<0.000000e+00> : vector<8x128xf32>
    %42 = tpu.matmul %41, %8, %cst_21 {dimension_numbers = #tpu.dot_dimension_numbers<[1], [0], [0], [1], [0, 0, 1, 1], [], []>} : vector<8x64xbf16>, vector<64x128xbf16>, vector<8x128xf32> -> vector<8x128xf32>
    %43 = arith.addf %42, %12 : vector<8x128xf32>
    %44 = arith.negf %43 : vector<8x128xf32>
    %45 = math.exp %44 : vector<8x128xf32>
    %cst_22 = arith.constant 1.000000e+00 : f32
    %46 = vector.broadcast %cst_22 : f32 to vector<8x128xf32>
    %47 = arith.addf %46, %45 : vector<8x128xf32>
    %48 = arith.divf %46, %47 : vector<8x128xf32>
    %49 = vector.extract_strided_slice %48 {offsets = [0, 0], sizes = [8, 32], strides = [1, 1]} : vector<8x128xf32> to vector<8x32xf32>
    %50 = vector.extract_strided_slice %48 {offsets = [0, 32], sizes = [8, 32], strides = [1, 1]} : vector<8x128xf32> to vector<8x32xf32>
    %51 = vector.extract_strided_slice %48 {offsets = [0, 96], sizes = [8, 32], strides = [1, 1]} : vector<8x128xf32> to vector<8x32xf32>
    %52 = vector.extract_strided_slice %43 {offsets = [0, 64], sizes = [8, 32], strides = [1, 1]} : vector<8x128xf32> to vector<8x32xf32>
    %53 = math.tanh %52 : vector<8x32xf32>
    %54 = arith.mulf %50, %16 : vector<8x32xf32>
    %55 = arith.mulf %49, %53 : vector<8x32xf32>
    %56 = arith.addf %54, %55 : vector<8x32xf32>
    %57 = math.tanh %56 : vector<8x32xf32>
    %58 = arith.mulf %51, %57 : vector<8x32xf32>
    %59 = tpu.concatenate %16, %16 in 1 : vector<8x32xf32>, vector<8x32xf32> -> vector<8x64xf32>
    %60 = arith.truncf %59 : vector<8x64xf32> to vector<8x64xbf16>
    %cst_23 = arith.constant dense<0.000000e+00> : vector<8x128xf32>
    %61 = tpu.matmul %60, %9, %cst_23 {dimension_numbers = #tpu.dot_dimension_numbers<[1], [0], [0], [1], [0, 0, 1, 1], [], []>} : vector<8x64xbf16>, vector<64x128xbf16>, vector<8x128xf32> -> vector<8x128xf32>
    %62 = arith.addf %61, %15 : vector<8x128xf32>
    %63 = arith.negf %62 : vector<8x128xf32>
    %64 = math.exp %63 : vector<8x128xf32>
    %cst_24 = arith.constant 1.000000e+00 : f32
    %65 = vector.broadcast %cst_24 : f32 to vector<8x128xf32>
    %66 = arith.addf %65, %64 : vector<8x128xf32>
    %67 = arith.divf %65, %66 : vector<8x128xf32>
    %68 = vector.extract_strided_slice %67 {offsets = [0, 0], sizes = [8, 32], strides = [1, 1]} : vector<8x128xf32> to vector<8x32xf32>
    %69 = vector.extract_strided_slice %67 {offsets = [0, 32], sizes = [8, 32], strides = [1, 1]} : vector<8x128xf32> to vector<8x32xf32>
    %70 = vector.extract_strided_slice %67 {offsets = [0, 96], sizes = [8, 32], strides = [1, 1]} : vector<8x128xf32> to vector<8x32xf32>
    %71 = vector.extract_strided_slice %62 {offsets = [0, 64], sizes = [8, 32], strides = [1, 1]} : vector<8x128xf32> to vector<8x32xf32>
    %72 = math.tanh %71 : vector<8x32xf32>
    %73 = arith.mulf %69, %16 : vector<8x32xf32>
    %74 = arith.mulf %68, %72 : vector<8x32xf32>
    %75 = arith.addf %73, %74 : vector<8x32xf32>
    %76 = math.tanh %75 : vector<8x32xf32>
    %77 = arith.mulf %70, %76 : vector<8x32xf32>
    %c8_i32_25 = arith.constant 8 : i32
    %78 = arith.cmpi slt, %c0_i32, %c8_i32_25 : i32
    %c1_i32 = arith.constant 1 : i32
    %79 = arith.cmpi sge, %c0_i32, %c1_i32 : i32
    %c8_i32_26 = arith.constant 8 : i32
    %80 = arith.cmpi sle, %c0_i32, %c8_i32_26 : i32
    %81 = arith.andi %79, %80 : i1
    %c2_i32 = arith.constant 2 : i32
    %82 = arith.cmpi sge, %c0_i32, %c2_i32 : i32
    %83 = arith.select %78, %39, %16 : vector<8x32xf32>
    %84 = arith.select %78, %37, %16 : vector<8x32xf32>
    %85 = arith.select %81, %58, %16 : vector<8x32xf32>
    %86 = arith.select %81, %56, %16 : vector<8x32xf32>
    %87 = arith.select %82, %77, %16 : vector<8x32xf32>
    %88 = arith.select %82, %75, %16 : vector<8x32xf32>
    %c1_i32_27 = arith.constant 1 : i32
    %c7_i32_28 = arith.constant 7 : i32
    %89 = arith.minsi %c1_i32_27, %c7_i32_28 : i32
    %c8_i32_29 = arith.constant 8 : i32
    %90 = arith.muli %89, %c8_i32_29 : i32
    %91 = tpu.assume_multiple %90, 8 : i32
    %92 = arith.index_cast %91 : i32 to index
    %c0_30 = arith.constant 0 : index
    %93 = vector.load %arg11[%92, %c0_30] : memref<64x128xf32, #tpu.memory_space<vmem>>, vector<8x128xf32>
    %94 = arith.truncf %83 : vector<8x32xf32> to vector<8x32xbf16>
    %cst_31 = arith.constant dense<0.000000e+00> : vector<8x128xf32>
    %95 = tpu.matmul %94, %7, %cst_31 {dimension_numbers = #tpu.dot_dimension_numbers<[1], [0], [0], [1], [0, 0, 1, 1], [], []>} : vector<8x32xbf16>, vector<32x128xbf16>, vector<8x128xf32> -> vector<8x128xf32>
    %96 = arith.addf %93, %95 : vector<8x128xf32>
    %97 = arith.negf %96 : vector<8x128xf32>
    %98 = math.exp %97 : vector<8x128xf32>
    %cst_32 = arith.constant 1.000000e+00 : f32
    %99 = vector.broadcast %cst_32 : f32 to vector<8x128xf32>
    %100 = arith.addf %99, %98 : vector<8x128xf32>
    %101 = arith.divf %99, %100 : vector<8x128xf32>
    %102 = vector.extract_strided_slice %101 {offsets = [0, 0], sizes = [8, 32], strides = [1, 1]} : vector<8x128xf32> to vector<8x32xf32>
    %103 = vector.extract_strided_slice %101 {offsets = [0, 32], sizes = [8, 32], strides = [1, 1]} : vector<8x128xf32> to vector<8x32xf32>
    %104 = vector.extract_strided_slice %101 {offsets = [0, 96], sizes = [8, 32], strides = [1, 1]} : vector<8x128xf32> to vector<8x32xf32>
    %105 = vector.extract_strided_slice %96 {offsets = [0, 64], sizes = [8, 32], strides = [1, 1]} : vector<8x128xf32> to vector<8x32xf32>
    %106 = math.tanh %105 : vector<8x32xf32>
    %107 = arith.mulf %103, %84 : vector<8x32xf32>
    %108 = arith.mulf %102, %106 : vector<8x32xf32>
    %109 = arith.addf %107, %108 : vector<8x32xf32>
    %110 = math.tanh %109 : vector<8x32xf32>
    %111 = arith.mulf %104, %110 : vector<8x32xf32>
    %112 = tpu.concatenate %83, %85 in 1 : vector<8x32xf32>, vector<8x32xf32> -> vector<8x64xf32>
    %113 = arith.truncf %112 : vector<8x64xf32> to vector<8x64xbf16>
    %cst_33 = arith.constant dense<0.000000e+00> : vector<8x128xf32>
    %114 = tpu.matmul %113, %8, %cst_33 {dimension_numbers = #tpu.dot_dimension_numbers<[1], [0], [0], [1], [0, 0, 1, 1], [], []>} : vector<8x64xbf16>, vector<64x128xbf16>, vector<8x128xf32> -> vector<8x128xf32>
    %115 = arith.addf %114, %12 : vector<8x128xf32>
    %116 = arith.negf %115 : vector<8x128xf32>
    %117 = math.exp %116 : vector<8x128xf32>
    %cst_34 = arith.constant 1.000000e+00 : f32
    %118 = vector.broadcast %cst_34 : f32 to vector<8x128xf32>
    %119 = arith.addf %118, %117 : vector<8x128xf32>
    %120 = arith.divf %118, %119 : vector<8x128xf32>
    %121 = vector.extract_strided_slice %120 {offsets = [0, 0], sizes = [8, 32], strides = [1, 1]} : vector<8x128xf32> to vector<8x32xf32>
    %122 = vector.extract_strided_slice %120 {offsets = [0, 32], sizes = [8, 32], strides = [1, 1]} : vector<8x128xf32> to vector<8x32xf32>
    %123 = vector.extract_strided_slice %120 {offsets = [0, 96], sizes = [8, 32], strides = [1, 1]} : vector<8x128xf32> to vector<8x32xf32>
    %124 = vector.extract_strided_slice %115 {offsets = [0, 64], sizes = [8, 32], strides = [1, 1]} : vector<8x128xf32> to vector<8x32xf32>
    %125 = math.tanh %124 : vector<8x32xf32>
    %126 = arith.mulf %122, %86 : vector<8x32xf32>
    %127 = arith.mulf %121, %125 : vector<8x32xf32>
    %128 = arith.addf %126, %127 : vector<8x32xf32>
    %129 = math.tanh %128 : vector<8x32xf32>
    %130 = arith.mulf %123, %129 : vector<8x32xf32>
    %131 = tpu.concatenate %85, %87 in 1 : vector<8x32xf32>, vector<8x32xf32> -> vector<8x64xf32>
    %132 = arith.truncf %131 : vector<8x64xf32> to vector<8x64xbf16>
    %cst_35 = arith.constant dense<0.000000e+00> : vector<8x128xf32>
    %133 = tpu.matmul %132, %9, %cst_35 {dimension_numbers = #tpu.dot_dimension_numbers<[1], [0], [0], [1], [0, 0, 1, 1], [], []>} : vector<8x64xbf16>, vector<64x128xbf16>, vector<8x128xf32> -> vector<8x128xf32>
    %134 = arith.addf %133, %15 : vector<8x128xf32>
    %135 = arith.negf %134 : vector<8x128xf32>
    %136 = math.exp %135 : vector<8x128xf32>
    %cst_36 = arith.constant 1.000000e+00 : f32
    %137 = vector.broadcast %cst_36 : f32 to vector<8x128xf32>
    %138 = arith.addf %137, %136 : vector<8x128xf32>
    %139 = arith.divf %137, %138 : vector<8x128xf32>
    %140 = vector.extract_strided_slice %139 {offsets = [0, 0], sizes = [8, 32], strides = [1, 1]} : vector<8x128xf32> to vector<8x32xf32>
    %141 = vector.extract_strided_slice %139 {offsets = [0, 32], sizes = [8, 32], strides = [1, 1]} : vector<8x128xf32> to vector<8x32xf32>
    %142 = vector.extract_strided_slice %139 {offsets = [0, 96], sizes = [8, 32], strides = [1, 1]} : vector<8x128xf32> to vector<8x32xf32>
    %143 = vector.extract_strided_slice %134 {offsets = [0, 64], sizes = [8, 32], strides = [1, 1]} : vector<8x128xf32> to vector<8x32xf32>
    %144 = math.tanh %143 : vector<8x32xf32>
    %145 = arith.mulf %141, %88 : vector<8x32xf32>
    %146 = arith.mulf %140, %144 : vector<8x32xf32>
    %147 = arith.addf %145, %146 : vector<8x32xf32>
    %148 = math.tanh %147 : vector<8x32xf32>
    %149 = arith.mulf %142, %148 : vector<8x32xf32>
    %c8_i32_37 = arith.constant 8 : i32
    %150 = arith.cmpi slt, %c1_i32_27, %c8_i32_37 : i32
    %c1_i32_38 = arith.constant 1 : i32
    %151 = arith.cmpi sge, %c1_i32_27, %c1_i32_38 : i32
    %c8_i32_39 = arith.constant 8 : i32
    %152 = arith.cmpi sle, %c1_i32_27, %c8_i32_39 : i32
    %153 = arith.andi %151, %152 : i1
    %c2_i32_40 = arith.constant 2 : i32
    %154 = arith.cmpi sge, %c1_i32_27, %c2_i32_40 : i32
    %155 = arith.select %150, %111, %83 : vector<8x32xf32>
    %156 = arith.select %150, %109, %84 : vector<8x32xf32>
    %157 = arith.select %153, %130, %85 : vector<8x32xf32>
    %158 = arith.select %153, %128, %86 : vector<8x32xf32>
    %159 = arith.select %154, %149, %87 : vector<8x32xf32>
    %160 = arith.select %154, %147, %88 : vector<8x32xf32>
    %c2_i32_41 = arith.constant 2 : i32
    %c7_i32_42 = arith.constant 7 : i32
    %161 = arith.minsi %c2_i32_41, %c7_i32_42 : i32
    %c8_i32_43 = arith.constant 8 : i32
    %162 = arith.muli %161, %c8_i32_43 : i32
    %163 = tpu.assume_multiple %162, 8 : i32
    %164 = arith.index_cast %163 : i32 to index
    %c0_44 = arith.constant 0 : index
    %165 = vector.load %arg11[%164, %c0_44] : memref<64x128xf32, #tpu.memory_space<vmem>>, vector<8x128xf32>
    %166 = arith.truncf %155 : vector<8x32xf32> to vector<8x32xbf16>
    %cst_45 = arith.constant dense<0.000000e+00> : vector<8x128xf32>
    %167 = tpu.matmul %166, %7, %cst_45 {dimension_numbers = #tpu.dot_dimension_numbers<[1], [0], [0], [1], [0, 0, 1, 1], [], []>} : vector<8x32xbf16>, vector<32x128xbf16>, vector<8x128xf32> -> vector<8x128xf32>
    %168 = arith.addf %165, %167 : vector<8x128xf32>
    %169 = arith.negf %168 : vector<8x128xf32>
    %170 = math.exp %169 : vector<8x128xf32>
    %cst_46 = arith.constant 1.000000e+00 : f32
    %171 = vector.broadcast %cst_46 : f32 to vector<8x128xf32>
    %172 = arith.addf %171, %170 : vector<8x128xf32>
    %173 = arith.divf %171, %172 : vector<8x128xf32>
    %174 = vector.extract_strided_slice %173 {offsets = [0, 0], sizes = [8, 32], strides = [1, 1]} : vector<8x128xf32> to vector<8x32xf32>
    %175 = vector.extract_strided_slice %173 {offsets = [0, 32], sizes = [8, 32], strides = [1, 1]} : vector<8x128xf32> to vector<8x32xf32>
    %176 = vector.extract_strided_slice %173 {offsets = [0, 96], sizes = [8, 32], strides = [1, 1]} : vector<8x128xf32> to vector<8x32xf32>
    %177 = vector.extract_strided_slice %168 {offsets = [0, 64], sizes = [8, 32], strides = [1, 1]} : vector<8x128xf32> to vector<8x32xf32>
    %178 = math.tanh %177 : vector<8x32xf32>
    %179 = arith.mulf %175, %156 : vector<8x32xf32>
    %180 = arith.mulf %174, %178 : vector<8x32xf32>
    %181 = arith.addf %179, %180 : vector<8x32xf32>
    %182 = math.tanh %181 : vector<8x32xf32>
    %183 = arith.mulf %176, %182 : vector<8x32xf32>
    %184 = tpu.concatenate %155, %157 in 1 : vector<8x32xf32>, vector<8x32xf32> -> vector<8x64xf32>
    %185 = arith.truncf %184 : vector<8x64xf32> to vector<8x64xbf16>
    %cst_47 = arith.constant dense<0.000000e+00> : vector<8x128xf32>
    %186 = tpu.matmul %185, %8, %cst_47 {dimension_numbers = #tpu.dot_dimension_numbers<[1], [0], [0], [1], [0, 0, 1, 1], [], []>} : vector<8x64xbf16>, vector<64x128xbf16>, vector<8x128xf32> -> vector<8x128xf32>
    %187 = arith.addf %186, %12 : vector<8x128xf32>
    %188 = arith.negf %187 : vector<8x128xf32>
    %189 = math.exp %188 : vector<8x128xf32>
    %cst_48 = arith.constant 1.000000e+00 : f32
    %190 = vector.broadcast %cst_48 : f32 to vector<8x128xf32>
    %191 = arith.addf %190, %189 : vector<8x128xf32>
    %192 = arith.divf %190, %191 : vector<8x128xf32>
    %193 = vector.extract_strided_slice %192 {offsets = [0, 0], sizes = [8, 32], strides = [1, 1]} : vector<8x128xf32> to vector<8x32xf32>
    %194 = vector.extract_strided_slice %192 {offsets = [0, 32], sizes = [8, 32], strides = [1, 1]} : vector<8x128xf32> to vector<8x32xf32>
    %195 = vector.extract_strided_slice %192 {offsets = [0, 96], sizes = [8, 32], strides = [1, 1]} : vector<8x128xf32> to vector<8x32xf32>
    %196 = vector.extract_strided_slice %187 {offsets = [0, 64], sizes = [8, 32], strides = [1, 1]} : vector<8x128xf32> to vector<8x32xf32>
    %197 = math.tanh %196 : vector<8x32xf32>
    %198 = arith.mulf %194, %158 : vector<8x32xf32>
    %199 = arith.mulf %193, %197 : vector<8x32xf32>
    %200 = arith.addf %198, %199 : vector<8x32xf32>
    %201 = math.tanh %200 : vector<8x32xf32>
    %202 = arith.mulf %195, %201 : vector<8x32xf32>
    %203 = tpu.concatenate %157, %159 in 1 : vector<8x32xf32>, vector<8x32xf32> -> vector<8x64xf32>
    %204 = arith.truncf %203 : vector<8x64xf32> to vector<8x64xbf16>
    %cst_49 = arith.constant dense<0.000000e+00> : vector<8x128xf32>
    %205 = tpu.matmul %204, %9, %cst_49 {dimension_numbers = #tpu.dot_dimension_numbers<[1], [0], [0], [1], [0, 0, 1, 1], [], []>} : vector<8x64xbf16>, vector<64x128xbf16>, vector<8x128xf32> -> vector<8x128xf32>
    %206 = arith.addf %205, %15 : vector<8x128xf32>
    %207 = arith.negf %206 : vector<8x128xf32>
    %208 = math.exp %207 : vector<8x128xf32>
    %cst_50 = arith.constant 1.000000e+00 : f32
    %209 = vector.broadcast %cst_50 : f32 to vector<8x128xf32>
    %210 = arith.addf %209, %208 : vector<8x128xf32>
    %211 = arith.divf %209, %210 : vector<8x128xf32>
    %212 = vector.extract_strided_slice %211 {offsets = [0, 0], sizes = [8, 32], strides = [1, 1]} : vector<8x128xf32> to vector<8x32xf32>
    %213 = vector.extract_strided_slice %211 {offsets = [0, 32], sizes = [8, 32], strides = [1, 1]} : vector<8x128xf32> to vector<8x32xf32>
    %214 = vector.extract_strided_slice %211 {offsets = [0, 96], sizes = [8, 32], strides = [1, 1]} : vector<8x128xf32> to vector<8x32xf32>
    %215 = vector.extract_strided_slice %206 {offsets = [0, 64], sizes = [8, 32], strides = [1, 1]} : vector<8x128xf32> to vector<8x32xf32>
    %216 = math.tanh %215 : vector<8x32xf32>
    %217 = arith.mulf %213, %160 : vector<8x32xf32>
    %218 = arith.mulf %212, %216 : vector<8x32xf32>
    %219 = arith.addf %217, %218 : vector<8x32xf32>
    %220 = math.tanh %219 : vector<8x32xf32>
    %221 = arith.mulf %214, %220 : vector<8x32xf32>
    %c8_i32_51 = arith.constant 8 : i32
    %222 = arith.cmpi slt, %c2_i32_41, %c8_i32_51 : i32
    %c1_i32_52 = arith.constant 1 : i32
    %223 = arith.cmpi sge, %c2_i32_41, %c1_i32_52 : i32
    %c8_i32_53 = arith.constant 8 : i32
    %224 = arith.cmpi sle, %c2_i32_41, %c8_i32_53 : i32
    %225 = arith.andi %223, %224 : i1
    %c2_i32_54 = arith.constant 2 : i32
    %226 = arith.cmpi sge, %c2_i32_41, %c2_i32_54 : i32
    %227 = arith.select %222, %183, %155 : vector<8x32xf32>
    %228 = arith.select %222, %181, %156 : vector<8x32xf32>
    %229 = arith.select %225, %202, %157 : vector<8x32xf32>
    %230 = arith.select %225, %200, %158 : vector<8x32xf32>
    %231 = arith.select %226, %221, %159 : vector<8x32xf32>
    %232 = arith.select %226, %219, %160 : vector<8x32xf32>
    %c3_i32 = arith.constant 3 : i32
    %c7_i32_55 = arith.constant 7 : i32
    %233 = arith.minsi %c3_i32, %c7_i32_55 : i32
    %c8_i32_56 = arith.constant 8 : i32
    %234 = arith.muli %233, %c8_i32_56 : i32
    %235 = tpu.assume_multiple %234, 8 : i32
    %236 = arith.index_cast %235 : i32 to index
    %c0_57 = arith.constant 0 : index
    %237 = vector.load %arg11[%236, %c0_57] : memref<64x128xf32, #tpu.memory_space<vmem>>, vector<8x128xf32>
    %238 = arith.truncf %227 : vector<8x32xf32> to vector<8x32xbf16>
    %cst_58 = arith.constant dense<0.000000e+00> : vector<8x128xf32>
    %239 = tpu.matmul %238, %7, %cst_58 {dimension_numbers = #tpu.dot_dimension_numbers<[1], [0], [0], [1], [0, 0, 1, 1], [], []>} : vector<8x32xbf16>, vector<32x128xbf16>, vector<8x128xf32> -> vector<8x128xf32>
    %240 = arith.addf %237, %239 : vector<8x128xf32>
    %241 = arith.negf %240 : vector<8x128xf32>
    %242 = math.exp %241 : vector<8x128xf32>
    %cst_59 = arith.constant 1.000000e+00 : f32
    %243 = vector.broadcast %cst_59 : f32 to vector<8x128xf32>
    %244 = arith.addf %243, %242 : vector<8x128xf32>
    %245 = arith.divf %243, %244 : vector<8x128xf32>
    %246 = vector.extract_strided_slice %245 {offsets = [0, 0], sizes = [8, 32], strides = [1, 1]} : vector<8x128xf32> to vector<8x32xf32>
    %247 = vector.extract_strided_slice %245 {offsets = [0, 32], sizes = [8, 32], strides = [1, 1]} : vector<8x128xf32> to vector<8x32xf32>
    %248 = vector.extract_strided_slice %245 {offsets = [0, 96], sizes = [8, 32], strides = [1, 1]} : vector<8x128xf32> to vector<8x32xf32>
    %249 = vector.extract_strided_slice %240 {offsets = [0, 64], sizes = [8, 32], strides = [1, 1]} : vector<8x128xf32> to vector<8x32xf32>
    %250 = math.tanh %249 : vector<8x32xf32>
    %251 = arith.mulf %247, %228 : vector<8x32xf32>
    %252 = arith.mulf %246, %250 : vector<8x32xf32>
    %253 = arith.addf %251, %252 : vector<8x32xf32>
    %254 = math.tanh %253 : vector<8x32xf32>
    %255 = arith.mulf %248, %254 : vector<8x32xf32>
    %256 = tpu.concatenate %227, %229 in 1 : vector<8x32xf32>, vector<8x32xf32> -> vector<8x64xf32>
    %257 = arith.truncf %256 : vector<8x64xf32> to vector<8x64xbf16>
    %cst_60 = arith.constant dense<0.000000e+00> : vector<8x128xf32>
    %258 = tpu.matmul %257, %8, %cst_60 {dimension_numbers = #tpu.dot_dimension_numbers<[1], [0], [0], [1], [0, 0, 1, 1], [], []>} : vector<8x64xbf16>, vector<64x128xbf16>, vector<8x128xf32> -> vector<8x128xf32>
    %259 = arith.addf %258, %12 : vector<8x128xf32>
    %260 = arith.negf %259 : vector<8x128xf32>
    %261 = math.exp %260 : vector<8x128xf32>
    %cst_61 = arith.constant 1.000000e+00 : f32
    %262 = vector.broadcast %cst_61 : f32 to vector<8x128xf32>
    %263 = arith.addf %262, %261 : vector<8x128xf32>
    %264 = arith.divf %262, %263 : vector<8x128xf32>
    %265 = vector.extract_strided_slice %264 {offsets = [0, 0], sizes = [8, 32], strides = [1, 1]} : vector<8x128xf32> to vector<8x32xf32>
    %266 = vector.extract_strided_slice %264 {offsets = [0, 32], sizes = [8, 32], strides = [1, 1]} : vector<8x128xf32> to vector<8x32xf32>
    %267 = vector.extract_strided_slice %264 {offsets = [0, 96], sizes = [8, 32], strides = [1, 1]} : vector<8x128xf32> to vector<8x32xf32>
    %268 = vector.extract_strided_slice %259 {offsets = [0, 64], sizes = [8, 32], strides = [1, 1]} : vector<8x128xf32> to vector<8x32xf32>
    %269 = math.tanh %268 : vector<8x32xf32>
    %270 = arith.mulf %266, %230 : vector<8x32xf32>
    %271 = arith.mulf %265, %269 : vector<8x32xf32>
    %272 = arith.addf %270, %271 : vector<8x32xf32>
    %273 = math.tanh %272 : vector<8x32xf32>
    %274 = arith.mulf %267, %273 : vector<8x32xf32>
    %275 = tpu.concatenate %229, %231 in 1 : vector<8x32xf32>, vector<8x32xf32> -> vector<8x64xf32>
    %276 = arith.truncf %275 : vector<8x64xf32> to vector<8x64xbf16>
    %cst_62 = arith.constant dense<0.000000e+00> : vector<8x128xf32>
    %277 = tpu.matmul %276, %9, %cst_62 {dimension_numbers = #tpu.dot_dimension_numbers<[1], [0], [0], [1], [0, 0, 1, 1], [], []>} : vector<8x64xbf16>, vector<64x128xbf16>, vector<8x128xf32> -> vector<8x128xf32>
    %278 = arith.addf %277, %15 : vector<8x128xf32>
    %279 = arith.negf %278 : vector<8x128xf32>
    %280 = math.exp %279 : vector<8x128xf32>
    %cst_63 = arith.constant 1.000000e+00 : f32
    %281 = vector.broadcast %cst_63 : f32 to vector<8x128xf32>
    %282 = arith.addf %281, %280 : vector<8x128xf32>
    %283 = arith.divf %281, %282 : vector<8x128xf32>
    %284 = vector.extract_strided_slice %283 {offsets = [0, 0], sizes = [8, 32], strides = [1, 1]} : vector<8x128xf32> to vector<8x32xf32>
    %285 = vector.extract_strided_slice %283 {offsets = [0, 32], sizes = [8, 32], strides = [1, 1]} : vector<8x128xf32> to vector<8x32xf32>
    %286 = vector.extract_strided_slice %283 {offsets = [0, 96], sizes = [8, 32], strides = [1, 1]} : vector<8x128xf32> to vector<8x32xf32>
    %287 = vector.extract_strided_slice %278 {offsets = [0, 64], sizes = [8, 32], strides = [1, 1]} : vector<8x128xf32> to vector<8x32xf32>
    %288 = math.tanh %287 : vector<8x32xf32>
    %289 = arith.mulf %285, %232 : vector<8x32xf32>
    %290 = arith.mulf %284, %288 : vector<8x32xf32>
    %291 = arith.addf %289, %290 : vector<8x32xf32>
    %292 = math.tanh %291 : vector<8x32xf32>
    %293 = arith.mulf %286, %292 : vector<8x32xf32>
    %c8_i32_64 = arith.constant 8 : i32
    %294 = arith.cmpi slt, %c3_i32, %c8_i32_64 : i32
    %c1_i32_65 = arith.constant 1 : i32
    %295 = arith.cmpi sge, %c3_i32, %c1_i32_65 : i32
    %c8_i32_66 = arith.constant 8 : i32
    %296 = arith.cmpi sle, %c3_i32, %c8_i32_66 : i32
    %297 = arith.andi %295, %296 : i1
    %c2_i32_67 = arith.constant 2 : i32
    %298 = arith.cmpi sge, %c3_i32, %c2_i32_67 : i32
    %299 = arith.select %294, %255, %227 : vector<8x32xf32>
    %300 = arith.select %294, %253, %228 : vector<8x32xf32>
    %301 = arith.select %297, %274, %229 : vector<8x32xf32>
    %302 = arith.select %297, %272, %230 : vector<8x32xf32>
    %303 = arith.select %298, %293, %231 : vector<8x32xf32>
    %304 = arith.select %298, %291, %232 : vector<8x32xf32>
    %c4_i32 = arith.constant 4 : i32
    %c7_i32_68 = arith.constant 7 : i32
    %305 = arith.minsi %c4_i32, %c7_i32_68 : i32
    %c8_i32_69 = arith.constant 8 : i32
    %306 = arith.muli %305, %c8_i32_69 : i32
    %307 = tpu.assume_multiple %306, 8 : i32
    %308 = arith.index_cast %307 : i32 to index
    %c0_70 = arith.constant 0 : index
    %309 = vector.load %arg11[%308, %c0_70] : memref<64x128xf32, #tpu.memory_space<vmem>>, vector<8x128xf32>
    %310 = arith.truncf %299 : vector<8x32xf32> to vector<8x32xbf16>
    %cst_71 = arith.constant dense<0.000000e+00> : vector<8x128xf32>
    %311 = tpu.matmul %310, %7, %cst_71 {dimension_numbers = #tpu.dot_dimension_numbers<[1], [0], [0], [1], [0, 0, 1, 1], [], []>} : vector<8x32xbf16>, vector<32x128xbf16>, vector<8x128xf32> -> vector<8x128xf32>
    %312 = arith.addf %309, %311 : vector<8x128xf32>
    %313 = arith.negf %312 : vector<8x128xf32>
    %314 = math.exp %313 : vector<8x128xf32>
    %cst_72 = arith.constant 1.000000e+00 : f32
    %315 = vector.broadcast %cst_72 : f32 to vector<8x128xf32>
    %316 = arith.addf %315, %314 : vector<8x128xf32>
    %317 = arith.divf %315, %316 : vector<8x128xf32>
    %318 = vector.extract_strided_slice %317 {offsets = [0, 0], sizes = [8, 32], strides = [1, 1]} : vector<8x128xf32> to vector<8x32xf32>
    %319 = vector.extract_strided_slice %317 {offsets = [0, 32], sizes = [8, 32], strides = [1, 1]} : vector<8x128xf32> to vector<8x32xf32>
    %320 = vector.extract_strided_slice %317 {offsets = [0, 96], sizes = [8, 32], strides = [1, 1]} : vector<8x128xf32> to vector<8x32xf32>
    %321 = vector.extract_strided_slice %312 {offsets = [0, 64], sizes = [8, 32], strides = [1, 1]} : vector<8x128xf32> to vector<8x32xf32>
    %322 = math.tanh %321 : vector<8x32xf32>
    %323 = arith.mulf %319, %300 : vector<8x32xf32>
    %324 = arith.mulf %318, %322 : vector<8x32xf32>
    %325 = arith.addf %323, %324 : vector<8x32xf32>
    %326 = math.tanh %325 : vector<8x32xf32>
    %327 = arith.mulf %320, %326 : vector<8x32xf32>
    %328 = tpu.concatenate %299, %301 in 1 : vector<8x32xf32>, vector<8x32xf32> -> vector<8x64xf32>
    %329 = arith.truncf %328 : vector<8x64xf32> to vector<8x64xbf16>
    %cst_73 = arith.constant dense<0.000000e+00> : vector<8x128xf32>
    %330 = tpu.matmul %329, %8, %cst_73 {dimension_numbers = #tpu.dot_dimension_numbers<[1], [0], [0], [1], [0, 0, 1, 1], [], []>} : vector<8x64xbf16>, vector<64x128xbf16>, vector<8x128xf32> -> vector<8x128xf32>
    %331 = arith.addf %330, %12 : vector<8x128xf32>
    %332 = arith.negf %331 : vector<8x128xf32>
    %333 = math.exp %332 : vector<8x128xf32>
    %cst_74 = arith.constant 1.000000e+00 : f32
    %334 = vector.broadcast %cst_74 : f32 to vector<8x128xf32>
    %335 = arith.addf %334, %333 : vector<8x128xf32>
    %336 = arith.divf %334, %335 : vector<8x128xf32>
    %337 = vector.extract_strided_slice %336 {offsets = [0, 0], sizes = [8, 32], strides = [1, 1]} : vector<8x128xf32> to vector<8x32xf32>
    %338 = vector.extract_strided_slice %336 {offsets = [0, 32], sizes = [8, 32], strides = [1, 1]} : vector<8x128xf32> to vector<8x32xf32>
    %339 = vector.extract_strided_slice %336 {offsets = [0, 96], sizes = [8, 32], strides = [1, 1]} : vector<8x128xf32> to vector<8x32xf32>
    %340 = vector.extract_strided_slice %331 {offsets = [0, 64], sizes = [8, 32], strides = [1, 1]} : vector<8x128xf32> to vector<8x32xf32>
    %341 = math.tanh %340 : vector<8x32xf32>
    %342 = arith.mulf %338, %302 : vector<8x32xf32>
    %343 = arith.mulf %337, %341 : vector<8x32xf32>
    %344 = arith.addf %342, %343 : vector<8x32xf32>
    %345 = math.tanh %344 : vector<8x32xf32>
    %346 = arith.mulf %339, %345 : vector<8x32xf32>
    %347 = tpu.concatenate %301, %303 in 1 : vector<8x32xf32>, vector<8x32xf32> -> vector<8x64xf32>
    %348 = arith.truncf %347 : vector<8x64xf32> to vector<8x64xbf16>
    %cst_75 = arith.constant dense<0.000000e+00> : vector<8x128xf32>
    %349 = tpu.matmul %348, %9, %cst_75 {dimension_numbers = #tpu.dot_dimension_numbers<[1], [0], [0], [1], [0, 0, 1, 1], [], []>} : vector<8x64xbf16>, vector<64x128xbf16>, vector<8x128xf32> -> vector<8x128xf32>
    %350 = arith.addf %349, %15 : vector<8x128xf32>
    %351 = arith.negf %350 : vector<8x128xf32>
    %352 = math.exp %351 : vector<8x128xf32>
    %cst_76 = arith.constant 1.000000e+00 : f32
    %353 = vector.broadcast %cst_76 : f32 to vector<8x128xf32>
    %354 = arith.addf %353, %352 : vector<8x128xf32>
    %355 = arith.divf %353, %354 : vector<8x128xf32>
    %356 = vector.extract_strided_slice %355 {offsets = [0, 0], sizes = [8, 32], strides = [1, 1]} : vector<8x128xf32> to vector<8x32xf32>
    %357 = vector.extract_strided_slice %355 {offsets = [0, 32], sizes = [8, 32], strides = [1, 1]} : vector<8x128xf32> to vector<8x32xf32>
    %358 = vector.extract_strided_slice %355 {offsets = [0, 96], sizes = [8, 32], strides = [1, 1]} : vector<8x128xf32> to vector<8x32xf32>
    %359 = vector.extract_strided_slice %350 {offsets = [0, 64], sizes = [8, 32], strides = [1, 1]} : vector<8x128xf32> to vector<8x32xf32>
    %360 = math.tanh %359 : vector<8x32xf32>
    %361 = arith.mulf %357, %304 : vector<8x32xf32>
    %362 = arith.mulf %356, %360 : vector<8x32xf32>
    %363 = arith.addf %361, %362 : vector<8x32xf32>
    %364 = math.tanh %363 : vector<8x32xf32>
    %365 = arith.mulf %358, %364 : vector<8x32xf32>
    %c8_i32_77 = arith.constant 8 : i32
    %366 = arith.cmpi slt, %c4_i32, %c8_i32_77 : i32
    %c1_i32_78 = arith.constant 1 : i32
    %367 = arith.cmpi sge, %c4_i32, %c1_i32_78 : i32
    %c8_i32_79 = arith.constant 8 : i32
    %368 = arith.cmpi sle, %c4_i32, %c8_i32_79 : i32
    %369 = arith.andi %367, %368 : i1
    %c2_i32_80 = arith.constant 2 : i32
    %370 = arith.cmpi sge, %c4_i32, %c2_i32_80 : i32
    %371 = arith.select %366, %327, %299 : vector<8x32xf32>
    %372 = arith.select %366, %325, %300 : vector<8x32xf32>
    %373 = arith.select %369, %346, %301 : vector<8x32xf32>
    %374 = arith.select %369, %344, %302 : vector<8x32xf32>
    %375 = arith.select %370, %365, %303 : vector<8x32xf32>
    %376 = arith.select %370, %363, %304 : vector<8x32xf32>
    %c5_i32 = arith.constant 5 : i32
    %c7_i32_81 = arith.constant 7 : i32
    %377 = arith.minsi %c5_i32, %c7_i32_81 : i32
    %c8_i32_82 = arith.constant 8 : i32
    %378 = arith.muli %377, %c8_i32_82 : i32
    %379 = tpu.assume_multiple %378, 8 : i32
    %380 = arith.index_cast %379 : i32 to index
    %c0_83 = arith.constant 0 : index
    %381 = vector.load %arg11[%380, %c0_83] : memref<64x128xf32, #tpu.memory_space<vmem>>, vector<8x128xf32>
    %382 = arith.truncf %371 : vector<8x32xf32> to vector<8x32xbf16>
    %cst_84 = arith.constant dense<0.000000e+00> : vector<8x128xf32>
    %383 = tpu.matmul %382, %7, %cst_84 {dimension_numbers = #tpu.dot_dimension_numbers<[1], [0], [0], [1], [0, 0, 1, 1], [], []>} : vector<8x32xbf16>, vector<32x128xbf16>, vector<8x128xf32> -> vector<8x128xf32>
    %384 = arith.addf %381, %383 : vector<8x128xf32>
    %385 = arith.negf %384 : vector<8x128xf32>
    %386 = math.exp %385 : vector<8x128xf32>
    %cst_85 = arith.constant 1.000000e+00 : f32
    %387 = vector.broadcast %cst_85 : f32 to vector<8x128xf32>
    %388 = arith.addf %387, %386 : vector<8x128xf32>
    %389 = arith.divf %387, %388 : vector<8x128xf32>
    %390 = vector.extract_strided_slice %389 {offsets = [0, 0], sizes = [8, 32], strides = [1, 1]} : vector<8x128xf32> to vector<8x32xf32>
    %391 = vector.extract_strided_slice %389 {offsets = [0, 32], sizes = [8, 32], strides = [1, 1]} : vector<8x128xf32> to vector<8x32xf32>
    %392 = vector.extract_strided_slice %389 {offsets = [0, 96], sizes = [8, 32], strides = [1, 1]} : vector<8x128xf32> to vector<8x32xf32>
    %393 = vector.extract_strided_slice %384 {offsets = [0, 64], sizes = [8, 32], strides = [1, 1]} : vector<8x128xf32> to vector<8x32xf32>
    %394 = math.tanh %393 : vector<8x32xf32>
    %395 = arith.mulf %391, %372 : vector<8x32xf32>
    %396 = arith.mulf %390, %394 : vector<8x32xf32>
    %397 = arith.addf %395, %396 : vector<8x32xf32>
    %398 = math.tanh %397 : vector<8x32xf32>
    %399 = arith.mulf %392, %398 : vector<8x32xf32>
    %400 = tpu.concatenate %371, %373 in 1 : vector<8x32xf32>, vector<8x32xf32> -> vector<8x64xf32>
    %401 = arith.truncf %400 : vector<8x64xf32> to vector<8x64xbf16>
    %cst_86 = arith.constant dense<0.000000e+00> : vector<8x128xf32>
    %402 = tpu.matmul %401, %8, %cst_86 {dimension_numbers = #tpu.dot_dimension_numbers<[1], [0], [0], [1], [0, 0, 1, 1], [], []>} : vector<8x64xbf16>, vector<64x128xbf16>, vector<8x128xf32> -> vector<8x128xf32>
    %403 = arith.addf %402, %12 : vector<8x128xf32>
    %404 = arith.negf %403 : vector<8x128xf32>
    %405 = math.exp %404 : vector<8x128xf32>
    %cst_87 = arith.constant 1.000000e+00 : f32
    %406 = vector.broadcast %cst_87 : f32 to vector<8x128xf32>
    %407 = arith.addf %406, %405 : vector<8x128xf32>
    %408 = arith.divf %406, %407 : vector<8x128xf32>
    %409 = vector.extract_strided_slice %408 {offsets = [0, 0], sizes = [8, 32], strides = [1, 1]} : vector<8x128xf32> to vector<8x32xf32>
    %410 = vector.extract_strided_slice %408 {offsets = [0, 32], sizes = [8, 32], strides = [1, 1]} : vector<8x128xf32> to vector<8x32xf32>
    %411 = vector.extract_strided_slice %408 {offsets = [0, 96], sizes = [8, 32], strides = [1, 1]} : vector<8x128xf32> to vector<8x32xf32>
    %412 = vector.extract_strided_slice %403 {offsets = [0, 64], sizes = [8, 32], strides = [1, 1]} : vector<8x128xf32> to vector<8x32xf32>
    %413 = math.tanh %412 : vector<8x32xf32>
    %414 = arith.mulf %410, %374 : vector<8x32xf32>
    %415 = arith.mulf %409, %413 : vector<8x32xf32>
    %416 = arith.addf %414, %415 : vector<8x32xf32>
    %417 = math.tanh %416 : vector<8x32xf32>
    %418 = arith.mulf %411, %417 : vector<8x32xf32>
    %419 = tpu.concatenate %373, %375 in 1 : vector<8x32xf32>, vector<8x32xf32> -> vector<8x64xf32>
    %420 = arith.truncf %419 : vector<8x64xf32> to vector<8x64xbf16>
    %cst_88 = arith.constant dense<0.000000e+00> : vector<8x128xf32>
    %421 = tpu.matmul %420, %9, %cst_88 {dimension_numbers = #tpu.dot_dimension_numbers<[1], [0], [0], [1], [0, 0, 1, 1], [], []>} : vector<8x64xbf16>, vector<64x128xbf16>, vector<8x128xf32> -> vector<8x128xf32>
    %422 = arith.addf %421, %15 : vector<8x128xf32>
    %423 = arith.negf %422 : vector<8x128xf32>
    %424 = math.exp %423 : vector<8x128xf32>
    %cst_89 = arith.constant 1.000000e+00 : f32
    %425 = vector.broadcast %cst_89 : f32 to vector<8x128xf32>
    %426 = arith.addf %425, %424 : vector<8x128xf32>
    %427 = arith.divf %425, %426 : vector<8x128xf32>
    %428 = vector.extract_strided_slice %427 {offsets = [0, 0], sizes = [8, 32], strides = [1, 1]} : vector<8x128xf32> to vector<8x32xf32>
    %429 = vector.extract_strided_slice %427 {offsets = [0, 32], sizes = [8, 32], strides = [1, 1]} : vector<8x128xf32> to vector<8x32xf32>
    %430 = vector.extract_strided_slice %427 {offsets = [0, 96], sizes = [8, 32], strides = [1, 1]} : vector<8x128xf32> to vector<8x32xf32>
    %431 = vector.extract_strided_slice %422 {offsets = [0, 64], sizes = [8, 32], strides = [1, 1]} : vector<8x128xf32> to vector<8x32xf32>
    %432 = math.tanh %431 : vector<8x32xf32>
    %433 = arith.mulf %429, %376 : vector<8x32xf32>
    %434 = arith.mulf %428, %432 : vector<8x32xf32>
    %435 = arith.addf %433, %434 : vector<8x32xf32>
    %436 = math.tanh %435 : vector<8x32xf32>
    %437 = arith.mulf %430, %436 : vector<8x32xf32>
    %c8_i32_90 = arith.constant 8 : i32
    %438 = arith.cmpi slt, %c5_i32, %c8_i32_90 : i32
    %c1_i32_91 = arith.constant 1 : i32
    %439 = arith.cmpi sge, %c5_i32, %c1_i32_91 : i32
    %c8_i32_92 = arith.constant 8 : i32
    %440 = arith.cmpi sle, %c5_i32, %c8_i32_92 : i32
    %441 = arith.andi %439, %440 : i1
    %c2_i32_93 = arith.constant 2 : i32
    %442 = arith.cmpi sge, %c5_i32, %c2_i32_93 : i32
    %443 = arith.select %438, %399, %371 : vector<8x32xf32>
    %444 = arith.select %438, %397, %372 : vector<8x32xf32>
    %445 = arith.select %441, %418, %373 : vector<8x32xf32>
    %446 = arith.select %441, %416, %374 : vector<8x32xf32>
    %447 = arith.select %442, %437, %375 : vector<8x32xf32>
    %448 = arith.select %442, %435, %376 : vector<8x32xf32>
    %c6_i32 = arith.constant 6 : i32
    %c7_i32_94 = arith.constant 7 : i32
    %449 = arith.minsi %c6_i32, %c7_i32_94 : i32
    %c8_i32_95 = arith.constant 8 : i32
    %450 = arith.muli %449, %c8_i32_95 : i32
    %451 = tpu.assume_multiple %450, 8 : i32
    %452 = arith.index_cast %451 : i32 to index
    %c0_96 = arith.constant 0 : index
    %453 = vector.load %arg11[%452, %c0_96] : memref<64x128xf32, #tpu.memory_space<vmem>>, vector<8x128xf32>
    %454 = arith.truncf %443 : vector<8x32xf32> to vector<8x32xbf16>
    %cst_97 = arith.constant dense<0.000000e+00> : vector<8x128xf32>
    %455 = tpu.matmul %454, %7, %cst_97 {dimension_numbers = #tpu.dot_dimension_numbers<[1], [0], [0], [1], [0, 0, 1, 1], [], []>} : vector<8x32xbf16>, vector<32x128xbf16>, vector<8x128xf32> -> vector<8x128xf32>
    %456 = arith.addf %453, %455 : vector<8x128xf32>
    %457 = arith.negf %456 : vector<8x128xf32>
    %458 = math.exp %457 : vector<8x128xf32>
    %cst_98 = arith.constant 1.000000e+00 : f32
    %459 = vector.broadcast %cst_98 : f32 to vector<8x128xf32>
    %460 = arith.addf %459, %458 : vector<8x128xf32>
    %461 = arith.divf %459, %460 : vector<8x128xf32>
    %462 = vector.extract_strided_slice %461 {offsets = [0, 0], sizes = [8, 32], strides = [1, 1]} : vector<8x128xf32> to vector<8x32xf32>
    %463 = vector.extract_strided_slice %461 {offsets = [0, 32], sizes = [8, 32], strides = [1, 1]} : vector<8x128xf32> to vector<8x32xf32>
    %464 = vector.extract_strided_slice %461 {offsets = [0, 96], sizes = [8, 32], strides = [1, 1]} : vector<8x128xf32> to vector<8x32xf32>
    %465 = vector.extract_strided_slice %456 {offsets = [0, 64], sizes = [8, 32], strides = [1, 1]} : vector<8x128xf32> to vector<8x32xf32>
    %466 = math.tanh %465 : vector<8x32xf32>
    %467 = arith.mulf %463, %444 : vector<8x32xf32>
    %468 = arith.mulf %462, %466 : vector<8x32xf32>
    %469 = arith.addf %467, %468 : vector<8x32xf32>
    %470 = math.tanh %469 : vector<8x32xf32>
    %471 = arith.mulf %464, %470 : vector<8x32xf32>
    %472 = tpu.concatenate %443, %445 in 1 : vector<8x32xf32>, vector<8x32xf32> -> vector<8x64xf32>
    %473 = arith.truncf %472 : vector<8x64xf32> to vector<8x64xbf16>
    %cst_99 = arith.constant dense<0.000000e+00> : vector<8x128xf32>
    %474 = tpu.matmul %473, %8, %cst_99 {dimension_numbers = #tpu.dot_dimension_numbers<[1], [0], [0], [1], [0, 0, 1, 1], [], []>} : vector<8x64xbf16>, vector<64x128xbf16>, vector<8x128xf32> -> vector<8x128xf32>
    %475 = arith.addf %474, %12 : vector<8x128xf32>
    %476 = arith.negf %475 : vector<8x128xf32>
    %477 = math.exp %476 : vector<8x128xf32>
    %cst_100 = arith.constant 1.000000e+00 : f32
    %478 = vector.broadcast %cst_100 : f32 to vector<8x128xf32>
    %479 = arith.addf %478, %477 : vector<8x128xf32>
    %480 = arith.divf %478, %479 : vector<8x128xf32>
    %481 = vector.extract_strided_slice %480 {offsets = [0, 0], sizes = [8, 32], strides = [1, 1]} : vector<8x128xf32> to vector<8x32xf32>
    %482 = vector.extract_strided_slice %480 {offsets = [0, 32], sizes = [8, 32], strides = [1, 1]} : vector<8x128xf32> to vector<8x32xf32>
    %483 = vector.extract_strided_slice %480 {offsets = [0, 96], sizes = [8, 32], strides = [1, 1]} : vector<8x128xf32> to vector<8x32xf32>
    %484 = vector.extract_strided_slice %475 {offsets = [0, 64], sizes = [8, 32], strides = [1, 1]} : vector<8x128xf32> to vector<8x32xf32>
    %485 = math.tanh %484 : vector<8x32xf32>
    %486 = arith.mulf %482, %446 : vector<8x32xf32>
    %487 = arith.mulf %481, %485 : vector<8x32xf32>
    %488 = arith.addf %486, %487 : vector<8x32xf32>
    %489 = math.tanh %488 : vector<8x32xf32>
    %490 = arith.mulf %483, %489 : vector<8x32xf32>
    %491 = tpu.concatenate %445, %447 in 1 : vector<8x32xf32>, vector<8x32xf32> -> vector<8x64xf32>
    %492 = arith.truncf %491 : vector<8x64xf32> to vector<8x64xbf16>
    %cst_101 = arith.constant dense<0.000000e+00> : vector<8x128xf32>
    %493 = tpu.matmul %492, %9, %cst_101 {dimension_numbers = #tpu.dot_dimension_numbers<[1], [0], [0], [1], [0, 0, 1, 1], [], []>} : vector<8x64xbf16>, vector<64x128xbf16>, vector<8x128xf32> -> vector<8x128xf32>
    %494 = arith.addf %493, %15 : vector<8x128xf32>
    %495 = arith.negf %494 : vector<8x128xf32>
    %496 = math.exp %495 : vector<8x128xf32>
    %cst_102 = arith.constant 1.000000e+00 : f32
    %497 = vector.broadcast %cst_102 : f32 to vector<8x128xf32>
    %498 = arith.addf %497, %496 : vector<8x128xf32>
    %499 = arith.divf %497, %498 : vector<8x128xf32>
    %500 = vector.extract_strided_slice %499 {offsets = [0, 0], sizes = [8, 32], strides = [1, 1]} : vector<8x128xf32> to vector<8x32xf32>
    %501 = vector.extract_strided_slice %499 {offsets = [0, 32], sizes = [8, 32], strides = [1, 1]} : vector<8x128xf32> to vector<8x32xf32>
    %502 = vector.extract_strided_slice %499 {offsets = [0, 96], sizes = [8, 32], strides = [1, 1]} : vector<8x128xf32> to vector<8x32xf32>
    %503 = vector.extract_strided_slice %494 {offsets = [0, 64], sizes = [8, 32], strides = [1, 1]} : vector<8x128xf32> to vector<8x32xf32>
    %504 = math.tanh %503 : vector<8x32xf32>
    %505 = arith.mulf %501, %448 : vector<8x32xf32>
    %506 = arith.mulf %500, %504 : vector<8x32xf32>
    %507 = arith.addf %505, %506 : vector<8x32xf32>
    %508 = math.tanh %507 : vector<8x32xf32>
    %509 = arith.mulf %502, %508 : vector<8x32xf32>
    %c8_i32_103 = arith.constant 8 : i32
    %510 = arith.cmpi slt, %c6_i32, %c8_i32_103 : i32
    %c1_i32_104 = arith.constant 1 : i32
    %511 = arith.cmpi sge, %c6_i32, %c1_i32_104 : i32
    %c8_i32_105 = arith.constant 8 : i32
    %512 = arith.cmpi sle, %c6_i32, %c8_i32_105 : i32
    %513 = arith.andi %511, %512 : i1
    %c2_i32_106 = arith.constant 2 : i32
    %514 = arith.cmpi sge, %c6_i32, %c2_i32_106 : i32
    %515 = arith.select %510, %471, %443 : vector<8x32xf32>
    %516 = arith.select %510, %469, %444 : vector<8x32xf32>
    %517 = arith.select %513, %490, %445 : vector<8x32xf32>
    %518 = arith.select %513, %488, %446 : vector<8x32xf32>
    %519 = arith.select %514, %509, %447 : vector<8x32xf32>
    %520 = arith.select %514, %507, %448 : vector<8x32xf32>
    %c7_i32_107 = arith.constant 7 : i32
    %c7_i32_108 = arith.constant 7 : i32
    %521 = arith.minsi %c7_i32_107, %c7_i32_108 : i32
    %c8_i32_109 = arith.constant 8 : i32
    %522 = arith.muli %521, %c8_i32_109 : i32
    %523 = tpu.assume_multiple %522, 8 : i32
    %524 = arith.index_cast %523 : i32 to index
    %c0_110 = arith.constant 0 : index
    %525 = vector.load %arg11[%524, %c0_110] : memref<64x128xf32, #tpu.memory_space<vmem>>, vector<8x128xf32>
    %526 = arith.truncf %515 : vector<8x32xf32> to vector<8x32xbf16>
    %cst_111 = arith.constant dense<0.000000e+00> : vector<8x128xf32>
    %527 = tpu.matmul %526, %7, %cst_111 {dimension_numbers = #tpu.dot_dimension_numbers<[1], [0], [0], [1], [0, 0, 1, 1], [], []>} : vector<8x32xbf16>, vector<32x128xbf16>, vector<8x128xf32> -> vector<8x128xf32>
    %528 = arith.addf %525, %527 : vector<8x128xf32>
    %529 = arith.negf %528 : vector<8x128xf32>
    %530 = math.exp %529 : vector<8x128xf32>
    %cst_112 = arith.constant 1.000000e+00 : f32
    %531 = vector.broadcast %cst_112 : f32 to vector<8x128xf32>
    %532 = arith.addf %531, %530 : vector<8x128xf32>
    %533 = arith.divf %531, %532 : vector<8x128xf32>
    %534 = vector.extract_strided_slice %533 {offsets = [0, 0], sizes = [8, 32], strides = [1, 1]} : vector<8x128xf32> to vector<8x32xf32>
    %535 = vector.extract_strided_slice %533 {offsets = [0, 32], sizes = [8, 32], strides = [1, 1]} : vector<8x128xf32> to vector<8x32xf32>
    %536 = vector.extract_strided_slice %533 {offsets = [0, 96], sizes = [8, 32], strides = [1, 1]} : vector<8x128xf32> to vector<8x32xf32>
    %537 = vector.extract_strided_slice %528 {offsets = [0, 64], sizes = [8, 32], strides = [1, 1]} : vector<8x128xf32> to vector<8x32xf32>
    %538 = math.tanh %537 : vector<8x32xf32>
    %539 = arith.mulf %535, %516 : vector<8x32xf32>
    %540 = arith.mulf %534, %538 : vector<8x32xf32>
    %541 = arith.addf %539, %540 : vector<8x32xf32>
    %542 = math.tanh %541 : vector<8x32xf32>
    %543 = arith.mulf %536, %542 : vector<8x32xf32>
    %544 = tpu.concatenate %515, %517 in 1 : vector<8x32xf32>, vector<8x32xf32> -> vector<8x64xf32>
    %545 = arith.truncf %544 : vector<8x64xf32> to vector<8x64xbf16>
    %cst_113 = arith.constant dense<0.000000e+00> : vector<8x128xf32>
    %546 = tpu.matmul %545, %8, %cst_113 {dimension_numbers = #tpu.dot_dimension_numbers<[1], [0], [0], [1], [0, 0, 1, 1], [], []>} : vector<8x64xbf16>, vector<64x128xbf16>, vector<8x128xf32> -> vector<8x128xf32>
    %547 = arith.addf %546, %12 : vector<8x128xf32>
    %548 = arith.negf %547 : vector<8x128xf32>
    %549 = math.exp %548 : vector<8x128xf32>
    %cst_114 = arith.constant 1.000000e+00 : f32
    %550 = vector.broadcast %cst_114 : f32 to vector<8x128xf32>
    %551 = arith.addf %550, %549 : vector<8x128xf32>
    %552 = arith.divf %550, %551 : vector<8x128xf32>
    %553 = vector.extract_strided_slice %552 {offsets = [0, 0], sizes = [8, 32], strides = [1, 1]} : vector<8x128xf32> to vector<8x32xf32>
    %554 = vector.extract_strided_slice %552 {offsets = [0, 32], sizes = [8, 32], strides = [1, 1]} : vector<8x128xf32> to vector<8x32xf32>
    %555 = vector.extract_strided_slice %552 {offsets = [0, 96], sizes = [8, 32], strides = [1, 1]} : vector<8x128xf32> to vector<8x32xf32>
    %556 = vector.extract_strided_slice %547 {offsets = [0, 64], sizes = [8, 32], strides = [1, 1]} : vector<8x128xf32> to vector<8x32xf32>
    %557 = math.tanh %556 : vector<8x32xf32>
    %558 = arith.mulf %554, %518 : vector<8x32xf32>
    %559 = arith.mulf %553, %557 : vector<8x32xf32>
    %560 = arith.addf %558, %559 : vector<8x32xf32>
    %561 = math.tanh %560 : vector<8x32xf32>
    %562 = arith.mulf %555, %561 : vector<8x32xf32>
    %563 = tpu.concatenate %517, %519 in 1 : vector<8x32xf32>, vector<8x32xf32> -> vector<8x64xf32>
    %564 = arith.truncf %563 : vector<8x64xf32> to vector<8x64xbf16>
    %cst_115 = arith.constant dense<0.000000e+00> : vector<8x128xf32>
    %565 = tpu.matmul %564, %9, %cst_115 {dimension_numbers = #tpu.dot_dimension_numbers<[1], [0], [0], [1], [0, 0, 1, 1], [], []>} : vector<8x64xbf16>, vector<64x128xbf16>, vector<8x128xf32> -> vector<8x128xf32>
    %566 = arith.addf %565, %15 : vector<8x128xf32>
    %567 = arith.negf %566 : vector<8x128xf32>
    %568 = math.exp %567 : vector<8x128xf32>
    %cst_116 = arith.constant 1.000000e+00 : f32
    %569 = vector.broadcast %cst_116 : f32 to vector<8x128xf32>
    %570 = arith.addf %569, %568 : vector<8x128xf32>
    %571 = arith.divf %569, %570 : vector<8x128xf32>
    %572 = vector.extract_strided_slice %571 {offsets = [0, 0], sizes = [8, 32], strides = [1, 1]} : vector<8x128xf32> to vector<8x32xf32>
    %573 = vector.extract_strided_slice %571 {offsets = [0, 32], sizes = [8, 32], strides = [1, 1]} : vector<8x128xf32> to vector<8x32xf32>
    %574 = vector.extract_strided_slice %571 {offsets = [0, 96], sizes = [8, 32], strides = [1, 1]} : vector<8x128xf32> to vector<8x32xf32>
    %575 = vector.extract_strided_slice %566 {offsets = [0, 64], sizes = [8, 32], strides = [1, 1]} : vector<8x128xf32> to vector<8x32xf32>
    %576 = math.tanh %575 : vector<8x32xf32>
    %577 = arith.mulf %573, %520 : vector<8x32xf32>
    %578 = arith.mulf %572, %576 : vector<8x32xf32>
    %579 = arith.addf %577, %578 : vector<8x32xf32>
    %580 = math.tanh %579 : vector<8x32xf32>
    %581 = arith.mulf %574, %580 : vector<8x32xf32>
    %c8_i32_117 = arith.constant 8 : i32
    %582 = arith.cmpi slt, %c7_i32_107, %c8_i32_117 : i32
    %c1_i32_118 = arith.constant 1 : i32
    %583 = arith.cmpi sge, %c7_i32_107, %c1_i32_118 : i32
    %c8_i32_119 = arith.constant 8 : i32
    %584 = arith.cmpi sle, %c7_i32_107, %c8_i32_119 : i32
    %585 = arith.andi %583, %584 : i1
    %c2_i32_120 = arith.constant 2 : i32
    %586 = arith.cmpi sge, %c7_i32_107, %c2_i32_120 : i32
    %587 = arith.select %582, %543, %515 : vector<8x32xf32>
    %588 = arith.select %582, %541, %516 : vector<8x32xf32>
    %589 = arith.select %585, %562, %517 : vector<8x32xf32>
    %590 = arith.select %585, %560, %518 : vector<8x32xf32>
    %591 = arith.select %586, %581, %519 : vector<8x32xf32>
    %592 = arith.select %586, %579, %520 : vector<8x32xf32>
    %c8_i32_121 = arith.constant 8 : i32
    %c7_i32_122 = arith.constant 7 : i32
    %593 = arith.minsi %c8_i32_121, %c7_i32_122 : i32
    %c8_i32_123 = arith.constant 8 : i32
    %594 = arith.muli %593, %c8_i32_123 : i32
    %595 = tpu.assume_multiple %594, 8 : i32
    %596 = arith.index_cast %595 : i32 to index
    %c0_124 = arith.constant 0 : index
    %597 = vector.load %arg11[%596, %c0_124] : memref<64x128xf32, #tpu.memory_space<vmem>>, vector<8x128xf32>
    %598 = arith.truncf %587 : vector<8x32xf32> to vector<8x32xbf16>
    %cst_125 = arith.constant dense<0.000000e+00> : vector<8x128xf32>
    %599 = tpu.matmul %598, %7, %cst_125 {dimension_numbers = #tpu.dot_dimension_numbers<[1], [0], [0], [1], [0, 0, 1, 1], [], []>} : vector<8x32xbf16>, vector<32x128xbf16>, vector<8x128xf32> -> vector<8x128xf32>
    %600 = arith.addf %597, %599 : vector<8x128xf32>
    %601 = arith.negf %600 : vector<8x128xf32>
    %602 = math.exp %601 : vector<8x128xf32>
    %cst_126 = arith.constant 1.000000e+00 : f32
    %603 = vector.broadcast %cst_126 : f32 to vector<8x128xf32>
    %604 = arith.addf %603, %602 : vector<8x128xf32>
    %605 = arith.divf %603, %604 : vector<8x128xf32>
    %606 = vector.extract_strided_slice %605 {offsets = [0, 0], sizes = [8, 32], strides = [1, 1]} : vector<8x128xf32> to vector<8x32xf32>
    %607 = vector.extract_strided_slice %605 {offsets = [0, 32], sizes = [8, 32], strides = [1, 1]} : vector<8x128xf32> to vector<8x32xf32>
    %608 = vector.extract_strided_slice %605 {offsets = [0, 96], sizes = [8, 32], strides = [1, 1]} : vector<8x128xf32> to vector<8x32xf32>
    %609 = vector.extract_strided_slice %600 {offsets = [0, 64], sizes = [8, 32], strides = [1, 1]} : vector<8x128xf32> to vector<8x32xf32>
    %610 = math.tanh %609 : vector<8x32xf32>
    %611 = arith.mulf %607, %588 : vector<8x32xf32>
    %612 = arith.mulf %606, %610 : vector<8x32xf32>
    %613 = arith.addf %611, %612 : vector<8x32xf32>
    %614 = math.tanh %613 : vector<8x32xf32>
    %615 = arith.mulf %608, %614 : vector<8x32xf32>
    %616 = tpu.concatenate %587, %589 in 1 : vector<8x32xf32>, vector<8x32xf32> -> vector<8x64xf32>
    %617 = arith.truncf %616 : vector<8x64xf32> to vector<8x64xbf16>
    %cst_127 = arith.constant dense<0.000000e+00> : vector<8x128xf32>
    %618 = tpu.matmul %617, %8, %cst_127 {dimension_numbers = #tpu.dot_dimension_numbers<[1], [0], [0], [1], [0, 0, 1, 1], [], []>} : vector<8x64xbf16>, vector<64x128xbf16>, vector<8x128xf32> -> vector<8x128xf32>
    %619 = arith.addf %618, %12 : vector<8x128xf32>
    %620 = arith.negf %619 : vector<8x128xf32>
    %621 = math.exp %620 : vector<8x128xf32>
    %cst_128 = arith.constant 1.000000e+00 : f32
    %622 = vector.broadcast %cst_128 : f32 to vector<8x128xf32>
    %623 = arith.addf %622, %621 : vector<8x128xf32>
    %624 = arith.divf %622, %623 : vector<8x128xf32>
    %625 = vector.extract_strided_slice %624 {offsets = [0, 0], sizes = [8, 32], strides = [1, 1]} : vector<8x128xf32> to vector<8x32xf32>
    %626 = vector.extract_strided_slice %624 {offsets = [0, 32], sizes = [8, 32], strides = [1, 1]} : vector<8x128xf32> to vector<8x32xf32>
    %627 = vector.extract_strided_slice %624 {offsets = [0, 96], sizes = [8, 32], strides = [1, 1]} : vector<8x128xf32> to vector<8x32xf32>
    %628 = vector.extract_strided_slice %619 {offsets = [0, 64], sizes = [8, 32], strides = [1, 1]} : vector<8x128xf32> to vector<8x32xf32>
    %629 = math.tanh %628 : vector<8x32xf32>
    %630 = arith.mulf %626, %590 : vector<8x32xf32>
    %631 = arith.mulf %625, %629 : vector<8x32xf32>
    %632 = arith.addf %630, %631 : vector<8x32xf32>
    %633 = math.tanh %632 : vector<8x32xf32>
    %634 = arith.mulf %627, %633 : vector<8x32xf32>
    %635 = tpu.concatenate %589, %591 in 1 : vector<8x32xf32>, vector<8x32xf32> -> vector<8x64xf32>
    %636 = arith.truncf %635 : vector<8x64xf32> to vector<8x64xbf16>
    %cst_129 = arith.constant dense<0.000000e+00> : vector<8x128xf32>
    %637 = tpu.matmul %636, %9, %cst_129 {dimension_numbers = #tpu.dot_dimension_numbers<[1], [0], [0], [1], [0, 0, 1, 1], [], []>} : vector<8x64xbf16>, vector<64x128xbf16>, vector<8x128xf32> -> vector<8x128xf32>
    %638 = arith.addf %637, %15 : vector<8x128xf32>
    %639 = arith.negf %638 : vector<8x128xf32>
    %640 = math.exp %639 : vector<8x128xf32>
    %cst_130 = arith.constant 1.000000e+00 : f32
    %641 = vector.broadcast %cst_130 : f32 to vector<8x128xf32>
    %642 = arith.addf %641, %640 : vector<8x128xf32>
    %643 = arith.divf %641, %642 : vector<8x128xf32>
    %644 = vector.extract_strided_slice %643 {offsets = [0, 0], sizes = [8, 32], strides = [1, 1]} : vector<8x128xf32> to vector<8x32xf32>
    %645 = vector.extract_strided_slice %643 {offsets = [0, 32], sizes = [8, 32], strides = [1, 1]} : vector<8x128xf32> to vector<8x32xf32>
    %646 = vector.extract_strided_slice %643 {offsets = [0, 96], sizes = [8, 32], strides = [1, 1]} : vector<8x128xf32> to vector<8x32xf32>
    %647 = vector.extract_strided_slice %638 {offsets = [0, 64], sizes = [8, 32], strides = [1, 1]} : vector<8x128xf32> to vector<8x32xf32>
    %648 = math.tanh %647 : vector<8x32xf32>
    %649 = arith.mulf %645, %592 : vector<8x32xf32>
    %650 = arith.mulf %644, %648 : vector<8x32xf32>
    %651 = arith.addf %649, %650 : vector<8x32xf32>
    %652 = math.tanh %651 : vector<8x32xf32>
    %653 = arith.mulf %646, %652 : vector<8x32xf32>
    %c8_i32_131 = arith.constant 8 : i32
    %654 = arith.cmpi slt, %c8_i32_121, %c8_i32_131 : i32
    %c1_i32_132 = arith.constant 1 : i32
    %655 = arith.cmpi sge, %c8_i32_121, %c1_i32_132 : i32
    %c8_i32_133 = arith.constant 8 : i32
    %656 = arith.cmpi sle, %c8_i32_121, %c8_i32_133 : i32
    %657 = arith.andi %655, %656 : i1
    %c2_i32_134 = arith.constant 2 : i32
    %658 = arith.cmpi sge, %c8_i32_121, %c2_i32_134 : i32
    %659 = arith.select %654, %615, %587 : vector<8x32xf32>
    %660 = arith.select %654, %613, %588 : vector<8x32xf32>
    %661 = arith.select %657, %634, %589 : vector<8x32xf32>
    %662 = arith.select %657, %632, %590 : vector<8x32xf32>
    %663 = arith.select %658, %653, %591 : vector<8x32xf32>
    %664 = arith.select %658, %651, %592 : vector<8x32xf32>
    %c9_i32 = arith.constant 9 : i32
    %c7_i32_135 = arith.constant 7 : i32
    %665 = arith.minsi %c9_i32, %c7_i32_135 : i32
    %c8_i32_136 = arith.constant 8 : i32
    %666 = arith.muli %665, %c8_i32_136 : i32
    %667 = tpu.assume_multiple %666, 8 : i32
    %668 = arith.index_cast %667 : i32 to index
    %c0_137 = arith.constant 0 : index
    %669 = vector.load %arg11[%668, %c0_137] : memref<64x128xf32, #tpu.memory_space<vmem>>, vector<8x128xf32>
    %670 = arith.truncf %659 : vector<8x32xf32> to vector<8x32xbf16>
    %cst_138 = arith.constant dense<0.000000e+00> : vector<8x128xf32>
    %671 = tpu.matmul %670, %7, %cst_138 {dimension_numbers = #tpu.dot_dimension_numbers<[1], [0], [0], [1], [0, 0, 1, 1], [], []>} : vector<8x32xbf16>, vector<32x128xbf16>, vector<8x128xf32> -> vector<8x128xf32>
    %672 = arith.addf %669, %671 : vector<8x128xf32>
    %673 = arith.negf %672 : vector<8x128xf32>
    %674 = math.exp %673 : vector<8x128xf32>
    %cst_139 = arith.constant 1.000000e+00 : f32
    %675 = vector.broadcast %cst_139 : f32 to vector<8x128xf32>
    %676 = arith.addf %675, %674 : vector<8x128xf32>
    %677 = arith.divf %675, %676 : vector<8x128xf32>
    %678 = vector.extract_strided_slice %677 {offsets = [0, 0], sizes = [8, 32], strides = [1, 1]} : vector<8x128xf32> to vector<8x32xf32>
    %679 = vector.extract_strided_slice %677 {offsets = [0, 32], sizes = [8, 32], strides = [1, 1]} : vector<8x128xf32> to vector<8x32xf32>
    %680 = vector.extract_strided_slice %677 {offsets = [0, 96], sizes = [8, 32], strides = [1, 1]} : vector<8x128xf32> to vector<8x32xf32>
    %681 = vector.extract_strided_slice %672 {offsets = [0, 64], sizes = [8, 32], strides = [1, 1]} : vector<8x128xf32> to vector<8x32xf32>
    %682 = math.tanh %681 : vector<8x32xf32>
    %683 = arith.mulf %679, %660 : vector<8x32xf32>
    %684 = arith.mulf %678, %682 : vector<8x32xf32>
    %685 = arith.addf %683, %684 : vector<8x32xf32>
    %686 = math.tanh %685 : vector<8x32xf32>
    %687 = arith.mulf %680, %686 : vector<8x32xf32>
    %688 = tpu.concatenate %659, %661 in 1 : vector<8x32xf32>, vector<8x32xf32> -> vector<8x64xf32>
    %689 = arith.truncf %688 : vector<8x64xf32> to vector<8x64xbf16>
    %cst_140 = arith.constant dense<0.000000e+00> : vector<8x128xf32>
    %690 = tpu.matmul %689, %8, %cst_140 {dimension_numbers = #tpu.dot_dimension_numbers<[1], [0], [0], [1], [0, 0, 1, 1], [], []>} : vector<8x64xbf16>, vector<64x128xbf16>, vector<8x128xf32> -> vector<8x128xf32>
    %691 = arith.addf %690, %12 : vector<8x128xf32>
    %692 = arith.negf %691 : vector<8x128xf32>
    %693 = math.exp %692 : vector<8x128xf32>
    %cst_141 = arith.constant 1.000000e+00 : f32
    %694 = vector.broadcast %cst_141 : f32 to vector<8x128xf32>
    %695 = arith.addf %694, %693 : vector<8x128xf32>
    %696 = arith.divf %694, %695 : vector<8x128xf32>
    %697 = vector.extract_strided_slice %696 {offsets = [0, 0], sizes = [8, 32], strides = [1, 1]} : vector<8x128xf32> to vector<8x32xf32>
    %698 = vector.extract_strided_slice %696 {offsets = [0, 32], sizes = [8, 32], strides = [1, 1]} : vector<8x128xf32> to vector<8x32xf32>
    %699 = vector.extract_strided_slice %696 {offsets = [0, 96], sizes = [8, 32], strides = [1, 1]} : vector<8x128xf32> to vector<8x32xf32>
    %700 = vector.extract_strided_slice %691 {offsets = [0, 64], sizes = [8, 32], strides = [1, 1]} : vector<8x128xf32> to vector<8x32xf32>
    %701 = math.tanh %700 : vector<8x32xf32>
    %702 = arith.mulf %698, %662 : vector<8x32xf32>
    %703 = arith.mulf %697, %701 : vector<8x32xf32>
    %704 = arith.addf %702, %703 : vector<8x32xf32>
    %705 = math.tanh %704 : vector<8x32xf32>
    %706 = arith.mulf %699, %705 : vector<8x32xf32>
    %707 = tpu.concatenate %661, %663 in 1 : vector<8x32xf32>, vector<8x32xf32> -> vector<8x64xf32>
    %708 = arith.truncf %707 : vector<8x64xf32> to vector<8x64xbf16>
    %cst_142 = arith.constant dense<0.000000e+00> : vector<8x128xf32>
    %709 = tpu.matmul %708, %9, %cst_142 {dimension_numbers = #tpu.dot_dimension_numbers<[1], [0], [0], [1], [0, 0, 1, 1], [], []>} : vector<8x64xbf16>, vector<64x128xbf16>, vector<8x128xf32> -> vector<8x128xf32>
    %710 = arith.addf %709, %15 : vector<8x128xf32>
    %711 = arith.negf %710 : vector<8x128xf32>
    %712 = math.exp %711 : vector<8x128xf32>
    %cst_143 = arith.constant 1.000000e+00 : f32
    %713 = vector.broadcast %cst_143 : f32 to vector<8x128xf32>
    %714 = arith.addf %713, %712 : vector<8x128xf32>
    %715 = arith.divf %713, %714 : vector<8x128xf32>
    %716 = vector.extract_strided_slice %715 {offsets = [0, 0], sizes = [8, 32], strides = [1, 1]} : vector<8x128xf32> to vector<8x32xf32>
    %717 = vector.extract_strided_slice %715 {offsets = [0, 32], sizes = [8, 32], strides = [1, 1]} : vector<8x128xf32> to vector<8x32xf32>
    %718 = vector.extract_strided_slice %715 {offsets = [0, 96], sizes = [8, 32], strides = [1, 1]} : vector<8x128xf32> to vector<8x32xf32>
    %719 = vector.extract_strided_slice %710 {offsets = [0, 64], sizes = [8, 32], strides = [1, 1]} : vector<8x128xf32> to vector<8x32xf32>
    %720 = math.tanh %719 : vector<8x32xf32>
    %721 = arith.mulf %717, %664 : vector<8x32xf32>
    %722 = arith.mulf %716, %720 : vector<8x32xf32>
    %723 = arith.addf %721, %722 : vector<8x32xf32>
    %724 = math.tanh %723 : vector<8x32xf32>
    %725 = arith.mulf %718, %724 : vector<8x32xf32>
    %c8_i32_144 = arith.constant 8 : i32
    %726 = arith.cmpi slt, %c9_i32, %c8_i32_144 : i32
    %c1_i32_145 = arith.constant 1 : i32
    %727 = arith.cmpi sge, %c9_i32, %c1_i32_145 : i32
    %c8_i32_146 = arith.constant 8 : i32
    %728 = arith.cmpi sle, %c9_i32, %c8_i32_146 : i32
    %729 = arith.andi %727, %728 : i1
    %c2_i32_147 = arith.constant 2 : i32
    %730 = arith.cmpi sge, %c9_i32, %c2_i32_147 : i32
    %731 = arith.select %726, %687, %659 : vector<8x32xf32>
    %732 = arith.select %726, %685, %660 : vector<8x32xf32>
    %733 = arith.select %729, %706, %661 : vector<8x32xf32>
    %734 = arith.select %729, %704, %662 : vector<8x32xf32>
    %735 = arith.select %730, %725, %663 : vector<8x32xf32>
    %736 = arith.select %730, %723, %664 : vector<8x32xf32>
    %c10_i32 = arith.constant 10 : i32
    %737 = arith.truncf %735 : vector<8x32xf32> to vector<8x32xbf16>
    %c0_148 = arith.constant 0 : index
    %c0_149 = arith.constant 0 : index
    %738 = vector.load %arg8[%c0_148, %c0_149] : memref<32x128xbf16, #tpu.memory_space<vmem>>, vector<32x128xbf16>
    %cst_150 = arith.constant dense<0.000000e+00> : vector<8x128xf32>
    %739 = tpu.matmul %737, %738, %cst_150 {dimension_numbers = #tpu.dot_dimension_numbers<[1], [0], [0], [1], [0, 0, 1, 1], [], []>} : vector<8x32xbf16>, vector<32x128xbf16>, vector<8x128xf32> -> vector<8x128xf32>
    %c0_151 = arith.constant 0 : index
    %c0_152 = arith.constant 0 : index
    %740 = vector.load %arg9[%c0_151, %c0_152] : memref<1x128xf32, #tpu.memory_space<vmem>>, vector<1x128xf32>
    %741 = vector.broadcast %740 : vector<1x128xf32> to vector<8x128xf32>
    %742 = arith.addf %739, %741 : vector<8x128xf32>
    %c0_153 = arith.constant 0 : index
    %c0_154 = arith.constant 0 : index
    %743 = vector.load %arg10[%c0_153, %c0_154] : memref<8x128xf32, #tpu.memory_space<vmem>>, vector<8x128xf32>
    tpu.vector_store %arg10[%c0_153, %c0_154], %742 {strides = array<i32>} : memref<8x128xf32, #tpu.memory_space<vmem>>, vector<8x128xf32>,
    return
  }
}

</mosaic_0001>

<llo_original>
// kernel: model_forward.1
$region0: #{model_forward.1}
  #allocation0 [shape = 'u32[]', space=smem, size = 0x4, offset = 0x4, fixed_abs, tag = 'smem constant byte address 0x4 - core index']
  #allocation1 [shape = 'u32[144,128]{1,0:T(1,128)}', space=vmem, size = 0x12000, scoped, tag = 'internal scratch']
  #allocation2 [shape = 'f32[64,128]{1,0:T(8,128)}', space=vmem, size = 0x8000, scoped, tag = 'scratch operand']
  %s0 = inlined_call_operand.vmem [shape: bf16[64,4], index: 0, kind: input, shape index: {}]
  %s1 = inlined_call_operand.vmem [shape: bf16[4,128], index: 1, kind: input, shape index: {}]
  %s2 = inlined_call_operand.hbm [shape: bf16[32,128], index: 2, kind: input, shape index: {}]
  %s3 = inlined_call_operand.vmem [shape: f32[1,128], index: 3, kind: input, shape index: {}]
  %s4 = inlined_call_operand.vmem [shape: bf16[64,128], index: 4, kind: input, shape index: {}]
  %s5 = inlined_call_operand.vmem [shape: f32[1,128], index: 5, kind: input, shape index: {}]
  %s6 = inlined_call_operand.vmem [shape: bf16[64,128], index: 6, kind: input, shape index: {}]
  %s7 = inlined_call_operand.vmem [shape: f32[1,128], index: 7, kind: input, shape index: {}]
  %s8 = inlined_call_operand.hbm [shape: bf16[32,128], index: 8, kind: input, shape index: {}]
  %s9 = inlined_call_operand.hbm [shape: f32[1,128], index: 9, kind: input, shape index: {}]
  %s10 = inlined_call_operand.vmem [shape: f32[8,128], index: 10, kind: output, shape index: {}]
  %s11 = sld [smem:[#allocation0]]
  $region62: #{model_forward.1} parent=0
    _
  %s13 = ssub.s32 1, %s11
  %s14 = scalar_select 0, %s13, %s11
  $region1: #{model_forward.1} parent=0
    #allocation3 [shape = 'u8[8192]{0}', space=vmem, size = 0x2000, scoped, tag = 'input window, operand 2, single buffered']
    #allocation4 [shape = 's32[1]{0}', space=sflag, size = 0x4, scoped, tag = 'scoped memory for model_forward.1']
    #allocation5 [shape = 'u8[8192]{0}', space=vmem, size = 0x2000, scoped, tag = 'input window, operand 8, single buffered']
    #allocation6 [shape = 's32[1]{0}', space=sflag, size = 0x4, scoped, tag = 'scoped memory for model_forward.1']
    #allocation7 [shape = 'u8[512]{0}', space=vmem, size = 0x400, scoped, tag = 'input window, operand 9, single buffered']
    %15 = vsyncpa [#allocation4], 0
    %16 = vsyncpa [#allocation6], 0
    // Predicated region
    $region2: #{model_forward.1} parent=1 // pred_check
      _
    $region3: #{model_forward.1} parent=1 // pred_check_branch
      %18 = sbr.rel (0) target = $region5
    $region4: #{model_forward.1} parent=1 // pred_region
      _
    $region5: #{model_forward.1} parent=1 // pred_fallthru
      _
    // Predicated region
    $region6: #{model_forward.1} parent=1 // pred_check
      _
    $region7: #{model_forward.1} parent=1 // pred_check_branch
      %20 = sbr.rel (0) target = $region9
    $region8: #{model_forward.1} parent=1 // pred_region
      _
    $region9: #{model_forward.1} parent=1 // pred_fallthru
      _
    // Predicated region
    $region10: #{model_forward.1} parent=1 // pred_check
      _
    $region11: #{model_forward.1} parent=1 // pred_check_branch
      %22 = sbr.rel (0) target = $region13
    $region12: #{model_forward.1} parent=1 // pred_region
      %s24 = ssub.s32 256, 256
      %25 = vsyncadd [#allocation4], %s24
      %s26 = sshll.u32 [#allocation3], 4
      %s27 = int_to_ptr.vmem [resolvable:$true] %s26
      %32 = dma.hbm_to_vmem [thread:$0]  %s2, 256, %s27, [#allocation4], 64, 64, 4
    $region13: #{model_forward.1} parent=1 // pred_fallthru
      _
    // Predicated region
    $region14: #{model_forward.1} parent=1 // pred_check
      _
    $region15: #{model_forward.1} parent=1 // pred_check_branch
      %34 = sbr.rel (0) target = $region17
    $region16: #{model_forward.1} parent=1 // pred_region
      _
    $region17: #{model_forward.1} parent=1 // pred_fallthru
      _
    // Predicated region
    $region18: #{model_forward.1} parent=1 // pred_check
      _
    $region19: #{model_forward.1} parent=1 // pred_check_branch
      %36 = sbr.rel (0) target = $region21
    $region20: #{model_forward.1} parent=1 // pred_region
      _
    $region21: #{model_forward.1} parent=1 // pred_fallthru
      _
    // Predicated region
    $region22: #{model_forward.1} parent=1 // pred_check
      _
    $region23: #{model_forward.1} parent=1 // pred_check_branch
      %38 = sbr.rel (0) target = $region25
    $region24: #{model_forward.1} parent=1 // pred_region
      _
    $region25: #{model_forward.1} parent=1 // pred_fallthru
      _
    // Predicated region
    $region26: #{model_forward.1} parent=1 // pred_check
      _
    $region27: #{model_forward.1} parent=1 // pred_check_branch
      %40 = sbr.rel (0) target = $region29
    $region28: #{model_forward.1} parent=1 // pred_region
      _
    $region29: #{model_forward.1} parent=1 // pred_fallthru
      _
    // Predicated region
    $region30: #{model_forward.1} parent=1 // pred_check
      _
    $region31: #{model_forward.1} parent=1 // pred_check_branch
      %42 = sbr.rel (0) target = $region33
    $region32: #{model_forward.1} parent=1 // pred_region
      _
    $region33: #{model_forward.1} parent=1 // pred_fallthru
      _
    // Predicated region
    $region34: #{model_forward.1} parent=1 // pred_check
      _
    $region35: #{model_forward.1} parent=1 // pred_check_branch
      %44 = sbr.rel (0) target = $region37
    $region36: #{model_forward.1} parent=1 // pred_region
      %s46 = ssub.s32 256, 256
      %47 = vsyncadd [#allocation6], %s46
      %s48 = sshll.u32 [#allocation5], 4
      %s49 = int_to_ptr.vmem [resolvable:$true] %s48
      %54 = dma.hbm_to_vmem [thread:$0]  %s8, 256, %s49, [#allocation6], 64, 64, 4
    $region37: #{model_forward.1} parent=1 // pred_fallthru
      _
    // Predicated region
    $region38: #{model_forward.1} parent=1 // pred_check
      _
    $region39: #{model_forward.1} parent=1 // pred_check_branch
      %56 = sbr.rel (0) target = $region41
    $region40: #{model_forward.1} parent=1 // pred_region
      %s58 = ssub.s32 16, 16
      %59 = vsyncadd [#allocation6], %s58
      %s61 = sshll.u32 [#allocation7], 4
      %s62 = int_to_ptr.vmem [resolvable:$true] %s61
      %64 = dma.hbm_to_vmem [thread:$0]  %s9, 16, %s62, [#allocation6]
    $region41: #{model_forward.1} parent=1 // pred_fallthru
      _
    // Predicated region
    $region42: #{model_forward.1} parent=1 // pred_check
      _
    $region43: #{model_forward.1} parent=1 // pred_check_branch
      %66 = sbr.rel (0) target = $region45
    $region44: #{model_forward.1} parent=1 // pred_region
      %67 = dma.done [#allocation4], 256
    $region45: #{model_forward.1} parent=1 // pred_fallthru
      _
    // Predicated region
    $region46: #{model_forward.1} parent=1 // pred_check
      _
    $region47: #{model_forward.1} parent=1 // pred_check_branch
      %69 = sbr.rel (0) target = $region49
    $region48: #{model_forward.1} parent=1 // pred_region
      %70 = dma.done [#allocation6], 256
    $region49: #{model_forward.1} parent=1 // pred_fallthru
      _
    // Predicated region
    $region50: #{model_forward.1} parent=1 // pred_check
      _
    $region51: #{model_forward.1} parent=1 // pred_check_branch
      %72 = sbr.rel (0) target = $region53
    $region52: #{model_forward.1} parent=1 // pred_region
      %73 = dma.done [#allocation6], 16
    $region53: #{model_forward.1} parent=1 // pred_fallthru
      _
    %v75 = vld [vmem:[%s0] sm:$0xf]
    %v76 = vld [vmem:[%s0 + $0x4] sm:$0xf]
    %v77 = vld [vmem:[%s0 + $0x8] sm:$0xf]
    %v78 = vld [vmem:[%s0 + $0xc] sm:$0xf]
    %v79 = vld [vmem:[%s0 + $0x10] sm:$0xf]
    %v80 = vld [vmem:[%s0 + $0x14] sm:$0xf]
    %v81 = vld [vmem:[%s0 + $0x18] sm:$0xf]
    %v82 = vld [vmem:[%s0 + $0x1c] sm:$0xf]
    %v83 = vld [vmem:[%s1] sm:$0x3]
    %v84 = vld [vmem:[%s3] sm:$0x1]
    %v86 = vlaneseq
    %v87 = vshrl.u32 %v86, 7
    %v88 = vsub.s32 0, %v87
    %v89 = vrot.slane %v84, %v88
    %v99 = vunpack.c.l.b16 %v75
    %v100 = vunpack.c.l.b16 %v76
    %v101 = vunpack.c.l.b16 %v77
    %v102 = vunpack.c.l.b16 %v78
    %v103 = vunpack.c.l.b16 %v79
    %v104 = vunpack.c.l.b16 %v80
    %v105 = vunpack.c.l.b16 %v81
    %v106 = vunpack.c.l.b16 %v82
    %v107 = vpack.c.b16 %v100, %v99
    %v108 = vpack.c.b16 %v102, %v101
    %v109 = vpack.c.b16 %v104, %v103
    %v110 = vpack.c.b16 %v106, %v105
    %vm111 = vcmask 31744
    %v113 = vsel %vm111, %v107, 0
    %v116 = vsel %vm111, %v108, 0
    %v119 = vsel %vm111, %v109, 0
    %v122 = vsel %vm111, %v110, 0
    %vm124 = vcmask 1041408
    %v126 = vsel %vm124, %v83, 0
    %128 = vmatprep.subr.bf16.mxu0 0
    %129 = vmatpush1.bf16.msra.mxu0 0
    %130 = vmatprep.subr.bf16.mxu0 0
    %131 = vmatpush1.bf16.msra.mxu0 0
    %132 = vmatprep.subr.bf16.mxu0 0
    %133 = vmatpush1.bf16.msra.mxu0 0
    %134 = vmatprep.subr.bf16.mxu0 0
    %135 = vmatpush1.bf16.msra.mxu0 0
    %136 = vmatprep.subr.bf16.mxu0 0
    %137 = vmatpush1.bf16.msra.mxu0 0
    %138 = vmatprep.subr.bf16.mxu0 0
    %139 = vmatpush1.bf16.msra.mxu0 0
    %140 = vmatprep.subr.bf16.mxu0 0
    %141 = vmatpush1.bf16.msra.mxu0 0
    %142 = vmatprep.subr.bf16.mxu0 0
    %143 = vmatpush1.bf16.msra.mxu0 %v126
    %144 = vmatprep.subr.bf16.mxu0 0
    %145 = vmatpush2.bf16.msra.mxu0 0
    %146 = vmatprep.subr.bf16.mxu0 0
    %147 = vmatpush2.bf16.msra.mxu0 0
    %148 = vmatprep.subr.bf16.mxu0 0
    %149 = vmatpush2.bf16.msra.mxu0 0
    %150 = vmatprep.subr.bf16.mxu0 0
    %151 = vmatpush2.bf16.msra.mxu0 0
    %152 = vmatprep.subr.bf16.mxu0 0
    %153 = vmatpush2.bf16.msra.mxu0 0
    %154 = vmatprep.subr.bf16.mxu0 0
    %155 = vmatpush2.bf16.msra.mxu0 0
    %156 = vmatprep.subr.bf16.mxu0 0
    %157 = vmatpush2.bf16.msra.mxu0 0
    %158 = vmatprep.subr.bf16.mxu0 0
    %159 = vmatpush2.bf16.msra.mxu0 0
    %160 = vmatprep.mubr.bf16.mxu0 0
    %161 = vmatmul.mubr.bf16.gmra.mxu0 %v113
    %v162 = vpop.f32.mrf.mxu0
    %v163 = vadd.f32 %v89, %v162
    %v164 = vpop.f32.mrf.mxu0
    %v165 = vpop.f32.mrf.mxu0
    %v166 = vadd.f32 %v89, %v165
    %v167 = vpop.f32.mrf.mxu0
    %168 = vmatprep.mubr.bf16.mxu0 0
    %169 = vmatmul.mubr.bf16.gmra.mxu0 %v116
    %v170 = vpop.f32.mrf.mxu0
    %v171 = vadd.f32 %v89, %v170
    %v172 = vpop.f32.mrf.mxu0
    %v173 = vpop.f32.mrf.mxu0
    %v174 = vadd.f32 %v89, %v173
    %v175 = vpop.f32.mrf.mxu0
    %176 = vmatprep.mubr.bf16.mxu0 0
    %177 = vmatmul.mubr.bf16.gmra.mxu0 %v119
    %v178 = vpop.f32.mrf.mxu0
    %v179 = vadd.f32 %v89, %v178
    %v180 = vpop.f32.mrf.mxu0
    %v181 = vpop.f32.mrf.mxu0
    %v182 = vadd.f32 %v89, %v181
    %v183 = vpop.f32.mrf.mxu0
    %184 = vmatprep.mubr.bf16.mxu0 0
    %185 = vmatmul.mubr.bf16.gmra.mxu0 %v122
    %v186 = vpop.f32.mrf.mxu0
    %v187 = vadd.f32 %v89, %v186
    %v188 = vpop.f32.mrf.mxu0
    %v189 = vpop.f32.mrf.mxu0
    %v190 = vadd.f32 %v89, %v189
    %v191 = vpop.f32.mrf.mxu0
    %192 = vdwg.mxu0
    %193 = vst [vmem:[#allocation2] sm:$0xff] %v163
    %194 = vst [vmem:[#allocation2 + $0x8] sm:$0xff] %v166
    %195 = vst [vmem:[#allocation2 + $0x10] sm:$0xff] %v171
    %196 = vst [vmem:[#allocation2 + $0x18] sm:$0xff] %v174
    %197 = vst [vmem:[#allocation2 + $0x20] sm:$0xff] %v179
    %198 = vst [vmem:[#allocation2 + $0x28] sm:$0xff] %v182
    %199 = vst [vmem:[#allocation2 + $0x30] sm:$0xff] %v187
    %200 = vst [vmem:[#allocation2 + $0x38] sm:$0xff] %v190
    %v201 = vld [vmem:[#allocation3] sm:$0xf]
    %v202 = vld [vmem:[#allocation3 + $0x4] sm:$0xf]
    %v203 = vld [vmem:[#allocation3 + $0x8] sm:$0xf]
    %v204 = vld [vmem:[#allocation3 + $0xc] sm:$0xf]
    %v205 = vld [vmem:[%s4] sm:$0xf]
    %v206 = vld [vmem:[%s4 + $0x4] sm:$0xf]
    %v207 = vld [vmem:[%s4 + $0x8] sm:$0xf]
    %v208 = vld [vmem:[%s4 + $0xc] sm:$0xf]
    %v209 = vld [vmem:[%s4 + $0x10] sm:$0xf]
    %v210 = vld [vmem:[%s4 + $0x14] sm:$0xf]
    %v211 = vld [vmem:[%s4 + $0x18] sm:$0xf]
    %v212 = vld [vmem:[%s4 + $0x1c] sm:$0xf]
    %v213 = vld [vmem:[%s6] sm:$0xf]
    %v214 = vld [vmem:[%s6 + $0x4] sm:$0xf]
    %v215 = vld [vmem:[%s6 + $0x8] sm:$0xf]
    %v216 = vld [vmem:[%s6 + $0xc] sm:$0xf]
    %v217 = vld [vmem:[%s6 + $0x10] sm:$0xf]
    %v218 = vld [vmem:[%s6 + $0x14] sm:$0xf]
    %v219 = vld [vmem:[%s6 + $0x18] sm:$0xf]
    %v220 = vld [vmem:[%s6 + $0x1c] sm:$0xf]
    %v221 = vld [vmem:[%s5] sm:$0x1]
    %v223 = vlaneseq
    %v224 = vshrl.u32 %v223, 7
    %v225 = vsub.s32 0, %v224
    %v226 = vrot.slane %v221, %v225
    %v228 = vld [vmem:[%s7] sm:$0x1]
    %v230 = vlaneseq
    %v231 = vshrl.u32 %v230, 7
    %v232 = vsub.s32 0, %v231
    %v233 = vrot.slane %v228, %v232
    %v235 = vld [vmem:[#allocation2] sm:$0xff]
    %v240 = vunpack.c.l.b16 %v201
    %v241 = vunpack.c.l.b16 %v202
    %v242 = vunpack.c.l.b16 %v203
    %v243 = vunpack.c.l.b16 %v204
    %v244 = vpack.c.b16 %v241, %v240
    %v245 = vpack.c.b16 %v243, %v242
    %vm248 = vcmask 261120
    %v250 = vsel %vm248, 0, 0
    %252 = vmatprep.subr.bf16.mxu0 0
    %253 = vmatpush1.bf16.msra.mxu0 0
    %254 = vmatprep.subr.bf16.mxu0 0
    %255 = vmatpush1.bf16.msra.mxu0 0
    %256 = vmatprep.subr.bf16.mxu0 0
    %257 = vmatpush1.bf16.msra.mxu0 0
    %258 = vmatprep.subr.bf16.mxu0 0
    %259 = vmatpush1.bf16.msra.mxu0 0
    %260 = vmatprep.subr.bf16.mxu0 0
    %261 = vmatpush1.bf16.msra.mxu0 0
    %262 = vmatprep.subr.bf16.mxu0 0
    %263 = vmatpush1.bf16.msra.mxu0 0
    %264 = vmatprep.subr.bf16.mxu0 0
    %265 = vmatpush1.bf16.msra.mxu0 %v245
    %266 = vmatprep.subr.bf16.mxu0 0
    %267 = vmatpush1.bf16.msra.mxu0 %v244
    %268 = vmatprep.subr.bf16.mxu0 0
    %269 = vmatpush2.bf16.msra.mxu0 0
    %270 = vmatprep.subr.bf16.mxu0 0
    %271 = vmatpush2.bf16.msra.mxu0 0
    %272 = vmatprep.subr.bf16.mxu0 0
    %273 = vmatpush2.bf16.msra.mxu0 0
    %274 = vmatprep.subr.bf16.mxu0 0
    %275 = vmatpush2.bf16.msra.mxu0 0
    %276 = vmatprep.subr.bf16.mxu0 0
    %277 = vmatpush2.bf16.msra.mxu0 0
    %278 = vmatprep.subr.bf16.mxu0 0
    %279 = vmatpush2.bf16.msra.mxu0 0
    %280 = vmatprep.subr.bf16.mxu0 0
    %281 = vmatpush2.bf16.msra.mxu0 0
    %282 = vmatprep.subr.bf16.mxu0 0
    %283 = vmatpush2.bf16.msra.mxu0 0
    %284 = vmatprep.mubr.bf16.mxu0 0
    %285 = vmatmul.mubr.bf16.gmra.mxu0 %v250
    %v286 = vpop.f32.mrf.mxu0
    %v287 = vadd.f32 0.0, %v286
    %v288 = vpop.f32.mrf.mxu0
    %v289 = vpop.f32.mrf.mxu0
    %v290 = vpop.f32.mrf.mxu0
    %291 = vdwg.mxu0
    %v292 = vadd.f32 %v235, %v287
    %v293 = vxor.u32 %v292, 2147483648
    %v294 = vmul.f32 %v293, 1.442695
    %v295 = vpow.pop %v294
    %v296 = vadd.f32 %v295, 1.0
    %v297 = vrcp.pop %v296
    %v298 = vmul.f32 1.0, %v297
    %v299 = vtanh.pop %v292
    %v300 = vmul.f32 %v298, 0.0
    %302 = vrot.lane.b32.xlu0 %v299, 64
    %v303 = vpop.permute.xlu0 %302
    %v305 = vmul.f32 %v298, %v303
    %307 = vrot.lane.b32.xlu0 %v305, 32
    %v308 = vpop.permute.xlu0 %307
    %v310 = vadd.f32 %v300, %v308
    %v311 = vtanh.pop %v310
    %313 = vrot.lane.b32.xlu0 %v311, 64
    %v314 = vpop.permute.xlu0 %313
    %v316 = vmul.f32 %v298, %v314
    %s317 = scalar_lea.vmem [#allocation2], 8
    %v318 = vld [vmem:[%s317] sm:$0xff]
    %v319 = vpack.c.bf16 %v316, %v316
    %321 = vrot.lane.b32.xlu0 %v319, 32
    %v322 = vpop.permute.xlu0 %321
    %v324 = vsel %vm248, %v322, 0
    %326 = vmatprep.subr.bf16.mxu0 0
    %327 = vmatpush1.bf16.msra.mxu0 0
    %328 = vmatprep.subr.bf16.mxu0 0
    %329 = vmatpush1.bf16.msra.mxu0 0
    %330 = vmatprep.subr.bf16.mxu0 0
    %331 = vmatpush1.bf16.msra.mxu0 0
    %332 = vmatprep.subr.bf16.mxu0 0
    %333 = vmatpush1.bf16.msra.mxu0 0
    %334 = vmatprep.subr.bf16.mxu0 0
    %335 = vmatpush1.bf16.msra.mxu0 0
    %336 = vmatprep.subr.bf16.mxu0 0
    %337 = vmatpush1.bf16.msra.mxu0 0
    %338 = vmatprep.subr.bf16.mxu0 0
    %339 = vmatpush1.bf16.msra.mxu0 %v245
    %340 = vmatprep.subr.bf16.mxu0 0
    %341 = vmatpush1.bf16.msra.mxu0 %v244
    %342 = vmatprep.subr.bf16.mxu0 0
    %343 = vmatpush2.bf16.msra.mxu0 0
    %344 = vmatprep.subr.bf16.mxu0 0
    %345 = vmatpush2.bf16.msra.mxu0 0
    %346 = vmatprep.subr.bf16.mxu0 0
    %347 = vmatpush2.bf16.msra.mxu0 0
    %348 = vmatprep.subr.bf16.mxu0 0
    %349 = vmatpush2.bf16.msra.mxu0 0
    %350 = vmatprep.subr.bf16.mxu0 0
    %351 = vmatpush2.bf16.msra.mxu0 0
    %352 = vmatprep.subr.bf16.mxu0 0
    %353 = vmatpush2.bf16.msra.mxu0 0
    %354 = vmatprep.subr.bf16.mxu0 0
    %355 = vmatpush2.bf16.msra.mxu0 0
    %356 = vmatprep.subr.bf16.mxu0 0
    %357 = vmatpush2.bf16.msra.mxu0 0
    %358 = vmatprep.mubr.bf16.mxu0 0
    %359 = vmatmul.mubr.bf16.gmra.mxu0 %v324
    %v360 = vpop.f32.mrf.mxu0
    %v361 = vadd.f32 0.0, %v360
    %v362 = vpop.f32.mrf.mxu0
    %v363 = vpop.f32.mrf.mxu0
    %v364 = vpop.f32.mrf.mxu0
    %365 = vdwg.mxu0
    %v366 = vadd.f32 %v318, %v361
    %v367 = vxor.u32 %v366, 2147483648
    %v368 = vmul.f32 %v367, 1.442695
    %v369 = vpow.pop %v368
    %v370 = vadd.f32 %v369, 1.0
    %v371 = vrcp.pop %v370
    %v372 = vmul.f32 1.0, %v371
    %v373 = vtanh.pop %v366
    %v374 = vmul.f32 %v372, %v310
    %376 = vrot.lane.b32.xlu0 %v373, 64
    %v377 = vpop.permute.xlu0 %376
    %v379 = vmul.f32 %v372, %v377
    %381 = vrot.lane.b32.xlu0 %v379, 32
    %v382 = vpop.permute.xlu0 %381
    %v384 = vadd.f32 %v374, %v382
    %v385 = vtanh.pop %v384
    %387 = vrot.lane.b32.xlu0 %v385, 64
    %v388 = vpop.permute.xlu0 %387
    %v390 = vmul.f32 %v372, %v388
    %392 = vrot.lane.b32.xlu0 %v316, 32
    %v393 = vpop.permute.xlu0 %392
    %v395 = vsel %vm248, %v393, 0.0
    %v396 = vpack.c.bf16 %v395, %v395
    %v405 = vunpack.c.l.b16 %v205
    %v406 = vunpack.c.l.b16 %v206
    %v407 = vunpack.c.l.b16 %v207
    %v408 = vunpack.c.l.b16 %v208
    %v409 = vunpack.c.l.b16 %v209
    %v410 = vunpack.c.l.b16 %v210
    %v411 = vunpack.c.l.b16 %v211
    %v412 = vunpack.c.l.b16 %v212
    %v413 = vpack.c.b16 %v406, %v405
    %v414 = vpack.c.b16 %v408, %v407
    %v415 = vpack.c.b16 %v410, %v409
    %v416 = vpack.c.b16 %v412, %v411
    %vm421 = vcmask 523264
    %v423 = vsel %vm421, %v396, 0
    %425 = vmatprep.subr.bf16.mxu0 0
    %426 = vmatpush1.bf16.msra.mxu0 0
    %427 = vmatprep.subr.bf16.mxu0 0
    %428 = vmatpush1.bf16.msra.mxu0 0
    %429 = vmatprep.subr.bf16.mxu0 0
    %430 = vmatpush1.bf16.msra.mxu0 0
    %431 = vmatprep.subr.bf16.mxu0 0
    %432 = vmatpush1.bf16.msra.mxu0 0
    %433 = vmatprep.subr.bf16.mxu0 0
    %434 = vmatpush1.bf16.msra.mxu0 %v416
    %435 = vmatprep.subr.bf16.mxu0 0
    %436 = vmatpush1.bf16.msra.mxu0 %v415
    %437 = vmatprep.subr.bf16.mxu0 0
    %438 = vmatpush1.bf16.msra.mxu0 %v414
    %439 = vmatprep.subr.bf16.mxu0 0
    %440 = vmatpush1.bf16.msra.mxu0 %v413
    %441 = vmatprep.subr.bf16.mxu0 0
    %442 = vmatpush2.bf16.msra.mxu0 0
    %443 = vmatprep.subr.bf16.mxu0 0
    %444 = vmatpush2.bf16.msra.mxu0 0
    %445 = vmatprep.subr.bf16.mxu0 0
    %446 = vmatpush2.bf16.msra.mxu0 0
    %447 = vmatprep.subr.bf16.mxu0 0
    %448 = vmatpush2.bf16.msra.mxu0 0
    %449 = vmatprep.subr.bf16.mxu0 0
    %450 = vmatpush2.bf16.msra.mxu0 0
    %451 = vmatprep.subr.bf16.mxu0 0
    %452 = vmatpush2.bf16.msra.mxu0 0
    %453 = vmatprep.subr.bf16.mxu0 0
    %454 = vmatpush2.bf16.msra.mxu0 0
    %455 = vmatprep.subr.bf16.mxu0 0
    %456 = vmatpush2.bf16.msra.mxu0 0
    %457 = vmatprep.mubr.bf16.mxu0 0
    %458 = vmatmul.mubr.bf16.gmra.mxu0 %v423
    %v459 = vpop.f32.mrf.mxu0
    %v460 = vadd.f32 %v226, %v459
    %v461 = vpop.f32.mrf.mxu0
    %v462 = vpop.f32.mrf.mxu0
    %v463 = vpop.f32.mrf.mxu0
    %464 = vdwg.mxu0
    %v465 = vxor.u32 %v460, 2147483648
    %v466 = vmul.f32 %v465, 1.442695
    %v467 = vpow.pop %v466
    %v468 = vadd.f32 %v467, 1.0
    %v469 = vrcp.pop %v468
    %v470 = vmul.f32 1.0, %v469
    %v471 = vtanh.pop %v460
    %v472 = vmul.f32 %v470, 0.0
    %474 = vrot.lane.b32.xlu0 %v471, 64
    %v475 = vpop.permute.xlu0 %474
    %v477 = vmul.f32 %v470, %v475
    %479 = vrot.lane.b32.xlu0 %v477, 32
    %v480 = vpop.permute.xlu0 %479
    %v482 = vadd.f32 %v472, %v480
    %v483 = vtanh.pop %v482
    %485 = vrot.lane.b32.xlu0 %v483, 64
    %v486 = vpop.permute.xlu0 %485
    %v488 = vmul.f32 %v470, %v486
    %s489 = scalar_lea.vmem [#allocation2], 16
    %v490 = vld [vmem:[%s489] sm:$0xff]
    %v491 = vpack.c.bf16 %v390, %v390
    %493 = vrot.lane.b32.xlu0 %v491, 32
    %v494 = vpop.permute.xlu0 %493
    %v496 = vsel %vm248, %v494, 0
    %498 = vmatprep.subr.bf16.mxu0 0
    %499 = vmatpush1.bf16.msra.mxu0 0
    %500 = vmatprep.subr.bf16.mxu0 0
    %501 = vmatpush1.bf16.msra.mxu0 0
    %502 = vmatprep.subr.bf16.mxu0 0
    %503 = vmatpush1.bf16.msra.mxu0 0
    %504 = vmatprep.subr.bf16.mxu0 0
    %505 = vmatpush1.bf16.msra.mxu0 0
    %506 = vmatprep.subr.bf16.mxu0 0
    %507 = vmatpush1.bf16.msra.mxu0 0
    %508 = vmatprep.subr.bf16.mxu0 0
    %509 = vmatpush1.bf16.msra.mxu0 0
    %510 = vmatprep.subr.bf16.mxu0 0
    %511 = vmatpush1.bf16.msra.mxu0 %v245
    %512 = vmatprep.subr.bf16.mxu0 0
    %513 = vmatpush1.bf16.msra.mxu0 %v244
    %514 = vmatprep.subr.bf16.mxu0 0
    %515 = vmatpush2.bf16.msra.mxu0 0
    %516 = vmatprep.subr.bf16.mxu0 0
    %517 = vmatpush2.bf16.msra.mxu0 0
    %518 = vmatprep.subr.bf16.mxu0 0
    %519 = vmatpush2.bf16.msra.mxu0 0
    %520 = vmatprep.subr.bf16.mxu0 0
    %521 = vmatpush2.bf16.msra.mxu0 0
    %522 = vmatprep.subr.bf16.mxu0 0
    %523 = vmatpush2.bf16.msra.mxu0 0
    %524 = vmatprep.subr.bf16.mxu0 0
    %525 = vmatpush2.bf16.msra.mxu0 0
    %526 = vmatprep.subr.bf16.mxu0 0
    %527 = vmatpush2.bf16.msra.mxu0 0
    %528 = vmatprep.subr.bf16.mxu0 0
    %529 = vmatpush2.bf16.msra.mxu0 0
    %530 = vmatprep.mubr.bf16.mxu0 0
    %531 = vmatmul.mubr.bf16.gmra.mxu0 %v496
    %v532 = vpop.f32.mrf.mxu0
    %v533 = vadd.f32 0.0, %v532
    %v534 = vpop.f32.mrf.mxu0
    %v535 = vpop.f32.mrf.mxu0
    %v536 = vpop.f32.mrf.mxu0
    %537 = vdwg.mxu0
    %v538 = vadd.f32 %v490, %v533
    %v539 = vxor.u32 %v538, 2147483648
    %v540 = vmul.f32 %v539, 1.442695
    %v541 = vpow.pop %v540
    %v542 = vadd.f32 %v541, 1.0
    %v543 = vrcp.pop %v542
    %v544 = vmul.f32 1.0, %v543
    %v545 = vtanh.pop %v538
    %v546 = vmul.f32 %v544, %v384
    %548 = vrot.lane.b32.xlu0 %v545, 64
    %v549 = vpop.permute.xlu0 %548
    %v551 = vmul.f32 %v544, %v549
    %553 = vrot.lane.b32.xlu0 %v551, 32
    %v554 = vpop.permute.xlu0 %553
    %v556 = vadd.f32 %v546, %v554
    %v557 = vtanh.pop %v556
    %559 = vrot.lane.b32.xlu0 %v557, 64
    %v560 = vpop.permute.xlu0 %559
    %v562 = vmul.f32 %v544, %v560
    %564 = vrot.lane.b32.xlu0 %v390, 32
    %v565 = vpop.permute.xlu0 %564
    %568 = vrot.lane.b32.xlu0 %v488, 64
    %v569 = vpop.permute.xlu0 %568
    %v571 = vsel %vm248, %v565, %v569
    %v572 = vpack.c.bf16 %v571, %v571
    %v574 = vsel %vm421, %v572, 0
    %576 = vmatprep.subr.bf16.mxu0 0
    %577 = vmatpush1.bf16.msra.mxu0 0
    %578 = vmatprep.subr.bf16.mxu0 0
    %579 = vmatpush1.bf16.msra.mxu0 0
    %580 = vmatprep.subr.bf16.mxu0 0
    %581 = vmatpush1.bf16.msra.mxu0 0
    %582 = vmatprep.subr.bf16.mxu0 0
    %583 = vmatpush1.bf16.msra.mxu0 0
    %584 = vmatprep.subr.bf16.mxu0 0
    %585 = vmatpush1.bf16.msra.mxu0 %v416
    %586 = vmatprep.subr.bf16.mxu0 0
    %587 = vmatpush1.bf16.msra.mxu0 %v415
    %588 = vmatprep.subr.bf16.mxu0 0
    %589 = vmatpush1.bf16.msra.mxu0 %v414
    %590 = vmatprep.subr.bf16.mxu0 0
    %591 = vmatpush1.bf16.msra.mxu0 %v413
    %592 = vmatprep.subr.bf16.mxu0 0
    %593 = vmatpush2.bf16.msra.mxu0 0
    %594 = vmatprep.subr.bf16.mxu0 0
    %595 = vmatpush2.bf16.msra.mxu0 0
    %596 = vmatprep.subr.bf16.mxu0 0
    %597 = vmatpush2.bf16.msra.mxu0 0
    %598 = vmatprep.subr.bf16.mxu0 0
    %599 = vmatpush2.bf16.msra.mxu0 0
    %600 = vmatprep.subr.bf16.mxu0 0
    %601 = vmatpush2.bf16.msra.mxu0 0
    %602 = vmatprep.subr.bf16.mxu0 0
    %603 = vmatpush2.bf16.msra.mxu0 0
    %604 = vmatprep.subr.bf16.mxu0 0
    %605 = vmatpush2.bf16.msra.mxu0 0
    %606 = vmatprep.subr.bf16.mxu0 0
    %607 = vmatpush2.bf16.msra.mxu0 0
    %608 = vmatprep.mubr.bf16.mxu0 0
    %609 = vmatmul.mubr.bf16.gmra.mxu0 %v574
    %v610 = vpop.f32.mrf.mxu0
    %v611 = vadd.f32 %v226, %v610
    %v612 = vpop.f32.mrf.mxu0
    %v613 = vpop.f32.mrf.mxu0
    %v614 = vpop.f32.mrf.mxu0
    %615 = vdwg.mxu0
    %v616 = vxor.u32 %v611, 2147483648
    %v617 = vmul.f32 %v616, 1.442695
    %v618 = vpow.pop %v617
    %v619 = vadd.f32 %v618, 1.0
    %v620 = vrcp.pop %v619
    %v621 = vmul.f32 1.0, %v620
    %v622 = vtanh.pop %v611
    %v623 = vmul.f32 %v621, %v482
    %625 = vrot.lane.b32.xlu0 %v622, 64
    %v626 = vpop.permute.xlu0 %625
    %v628 = vmul.f32 %v621, %v626
    %630 = vrot.lane.b32.xlu0 %v628, 32
    %v631 = vpop.permute.xlu0 %630
    %v633 = vadd.f32 %v623, %v631
    %v634 = vtanh.pop %v633
    %636 = vrot.lane.b32.xlu0 %v634, 64
    %v637 = vpop.permute.xlu0 %636
    %v639 = vmul.f32 %v621, %v637
    %640 = vrot.lane.b32.xlu0 %v488, 32
    %v641 = vpop.permute.xlu0 %640
    %v643 = vsel %vm248, %v641, 0.0
    %v644 = vpack.c.bf16 %v643, %v643
    %v653 = vunpack.c.l.b16 %v213
    %v654 = vunpack.c.l.b16 %v214
    %v655 = vunpack.c.l.b16 %v215
    %v656 = vunpack.c.l.b16 %v216
    %v657 = vunpack.c.l.b16 %v217
    %v658 = vunpack.c.l.b16 %v218
    %v659 = vunpack.c.l.b16 %v219
    %v660 = vunpack.c.l.b16 %v220
    %v661 = vpack.c.b16 %v654, %v653
    %v662 = vpack.c.b16 %v656, %v655
    %v663 = vpack.c.b16 %v658, %v657
    %v664 = vpack.c.b16 %v660, %v659
    %v670 = vsel %vm421, %v644, 0
    %672 = vmatprep.subr.bf16.mxu0 0
    %673 = vmatpush1.bf16.msra.mxu0 0
    %674 = vmatprep.subr.bf16.mxu0 0
    %675 = vmatpush1.bf16.msra.mxu0 0
    %676 = vmatprep.subr.bf16.mxu0 0
    %677 = vmatpush1.bf16.msra.mxu0 0
    %678 = vmatprep.subr.bf16.mxu0 0
    %679 = vmatpush1.bf16.msra.mxu0 0
    %680 = vmatprep.subr.bf16.mxu0 0
    %681 = vmatpush1.bf16.msra.mxu0 %v664
    %682 = vmatprep.subr.bf16.mxu0 0
    %683 = vmatpush1.bf16.msra.mxu0 %v663
    %684 = vmatprep.subr.bf16.mxu0 0
    %685 = vmatpush1.bf16.msra.mxu0 %v662
    %686 = vmatprep.subr.bf16.mxu0 0
    %687 = vmatpush1.bf16.msra.mxu0 %v661
    %688 = vmatprep.subr.bf16.mxu0 0
    %689 = vmatpush2.bf16.msra.mxu0 0
    %690 = vmatprep.subr.bf16.mxu0 0
    %691 = vmatpush2.bf16.msra.mxu0 0
    %692 = vmatprep.subr.bf16.mxu0 0
    %693 = vmatpush2.bf16.msra.mxu0 0
    %694 = vmatprep.subr.bf16.mxu0 0
    %695 = vmatpush2.bf16.msra.mxu0 0
    %696 = vmatprep.subr.bf16.mxu0 0
    %697 = vmatpush2.bf16.msra.mxu0 0
    %698 = vmatprep.subr.bf16.mxu0 0
    %699 = vmatpush2.bf16.msra.mxu0 0
    %700 = vmatprep.subr.bf16.mxu0 0
    %701 = vmatpush2.bf16.msra.mxu0 0
    %702 = vmatprep.subr.bf16.mxu0 0
    %703 = vmatpush2.bf16.msra.mxu0 0
    %704 = vmatprep.mubr.bf16.mxu0 0
    %705 = vmatmul.mubr.bf16.gmra.mxu0 %v670
    %v706 = vpop.f32.mrf.mxu0
    %v707 = vadd.f32 %v233, %v706
    %v708 = vpop.f32.mrf.mxu0
    %v709 = vpop.f32.mrf.mxu0
    %v710 = vpop.f32.mrf.mxu0
    %711 = vdwg.mxu0
    %v712 = vxor.u32 %v707, 2147483648
    %v713 = vmul.f32 %v712, 1.442695
    %v714 = vpow.pop %v713
    %v715 = vadd.f32 %v714, 1.0
    %v716 = vrcp.pop %v715
    %v717 = vmul.f32 1.0, %v716
    %v718 = vtanh.pop %v707
    %v719 = vmul.f32 %v717, 0.0
    %721 = vrot.lane.b32.xlu0 %v718, 64
    %v722 = vpop.permute.xlu0 %721
    %v724 = vmul.f32 %v717, %v722
    %726 = vrot.lane.b32.xlu0 %v724, 32
    %v727 = vpop.permute.xlu0 %726
    %v729 = vadd.f32 %v719, %v727
    %v730 = vtanh.pop %v729
    %732 = vrot.lane.b32.xlu0 %v730, 64
    %v733 = vpop.permute.xlu0 %732
    %v735 = vmul.f32 %v717, %v733
    %s736 = scalar_lea.vmem [#allocation2], 24
    %v737 = vld [vmem:[%s736] sm:$0xff]
    %v738 = vpack.c.bf16 %v562, %v562
    %740 = vrot.lane.b32.xlu0 %v738, 32
    %v741 = vpop.permute.xlu0 %740
    %v743 = vsel %vm248, %v741, 0
    %745 = vmatprep.subr.bf16.mxu0 0
    %746 = vmatpush1.bf16.msra.mxu0 0
    %747 = vmatprep.subr.bf16.mxu0 0
    %748 = vmatpush1.bf16.msra.mxu0 0
    %749 = vmatprep.subr.bf16.mxu0 0
    %750 = vmatpush1.bf16.msra.mxu0 0
    %751 = vmatprep.subr.bf16.mxu0 0
    %752 = vmatpush1.bf16.msra.mxu0 0
    %753 = vmatprep.subr.bf16.mxu0 0
    %754 = vmatpush1.bf16.msra.mxu0 0
    %755 = vmatprep.subr.bf16.mxu0 0
    %756 = vmatpush1.bf16.msra.mxu0 0
    %757 = vmatprep.subr.bf16.mxu0 0
    %758 = vmatpush1.bf16.msra.mxu0 %v245
    %759 = vmatprep.subr.bf16.mxu0 0
    %760 = vmatpush1.bf16.msra.mxu0 %v244
    %761 = vmatprep.subr.bf16.mxu0 0
    %762 = vmatpush2.bf16.msra.mxu0 0
    %763 = vmatprep.subr.bf16.mxu0 0
    %764 = vmatpush2.bf16.msra.mxu0 0
    %765 = vmatprep.subr.bf16.mxu0 0
    %766 = vmatpush2.bf16.msra.mxu0 0
    %767 = vmatprep.subr.bf16.mxu0 0
    %768 = vmatpush2.bf16.msra.mxu0 0
    %769 = vmatprep.subr.bf16.mxu0 0
    %770 = vmatpush2.bf16.msra.mxu0 0
    %771 = vmatprep.subr.bf16.mxu0 0
    %772 = vmatpush2.bf16.msra.mxu0 0
    %773 = vmatprep.subr.bf16.mxu0 0
    %774 = vmatpush2.bf16.msra.mxu0 0
    %775 = vmatprep.subr.bf16.mxu0 0
    %776 = vmatpush2.bf16.msra.mxu0 0
    %777 = vmatprep.mubr.bf16.mxu0 0
    %778 = vmatmul.mubr.bf16.gmra.mxu0 %v743
    %v779 = vpop.f32.mrf.mxu0
    %v780 = vadd.f32 0.0, %v779
    %v781 = vpop.f32.mrf.mxu0
    %v782 = vpop.f32.mrf.mxu0
    %v783 = vpop.f32.mrf.mxu0
    %784 = vdwg.mxu0
    %v785 = vadd.f32 %v737, %v780
    %v786 = vxor.u32 %v785, 2147483648
    %v787 = vmul.f32 %v786, 1.442695
    %v788 = vpow.pop %v787
    %v789 = vadd.f32 %v788, 1.0
    %v790 = vrcp.pop %v789
    %v791 = vmul.f32 1.0, %v790
    %v792 = vtanh.pop %v785
    %v793 = vmul.f32 %v791, %v556
    %795 = vrot.lane.b32.xlu0 %v792, 64
    %v796 = vpop.permute.xlu0 %795
    %v798 = vmul.f32 %v791, %v796
    %800 = vrot.lane.b32.xlu0 %v798, 32
    %v801 = vpop.permute.xlu0 %800
    %v803 = vadd.f32 %v793, %v801
    %v804 = vtanh.pop %v803
    %806 = vrot.lane.b32.xlu0 %v804, 64
    %v807 = vpop.permute.xlu0 %806
    %v809 = vmul.f32 %v791, %v807
    %811 = vrot.lane.b32.xlu0 %v562, 32
    %v812 = vpop.permute.xlu0 %811
    %815 = vrot.lane.b32.xlu0 %v639, 64
    %v816 = vpop.permute.xlu0 %815
    %v818 = vsel %vm248, %v812, %v816
    %v819 = vpack.c.bf16 %v818, %v818
    %v821 = vsel %vm421, %v819, 0
    %823 = vmatprep.subr.bf16.mxu0 0
    %824 = vmatpush1.bf16.msra.mxu0 0
    %825 = vmatprep.subr.bf16.mxu0 0
    %826 = vmatpush1.bf16.msra.mxu0 0
    %827 = vmatprep.subr.bf16.mxu0 0
    %828 = vmatpush1.bf16.msra.mxu0 0
    %829 = vmatprep.subr.bf16.mxu0 0
    %830 = vmatpush1.bf16.msra.mxu0 0
    %831 = vmatprep.subr.bf16.mxu0 0
    %832 = vmatpush1.bf16.msra.mxu0 %v416
    %833 = vmatprep.subr.bf16.mxu0 0
    %834 = vmatpush1.bf16.msra.mxu0 %v415
    %835 = vmatprep.subr.bf16.mxu0 0
    %836 = vmatpush1.bf16.msra.mxu0 %v414
    %837 = vmatprep.subr.bf16.mxu0 0
    %838 = vmatpush1.bf16.msra.mxu0 %v413
    %839 = vmatprep.subr.bf16.mxu0 0
    %840 = vmatpush2.bf16.msra.mxu0 0
    %841 = vmatprep.subr.bf16.mxu0 0
    %842 = vmatpush2.bf16.msra.mxu0 0
    %843 = vmatprep.subr.bf16.mxu0 0
    %844 = vmatpush2.bf16.msra.mxu0 0
    %845 = vmatprep.subr.bf16.mxu0 0
    %846 = vmatpush2.bf16.msra.mxu0 0
    %847 = vmatprep.subr.bf16.mxu0 0
    %848 = vmatpush2.bf16.msra.mxu0 0
    %849 = vmatprep.subr.bf16.mxu0 0
    %850 = vmatpush2.bf16.msra.mxu0 0
    %851 = vmatprep.subr.bf16.mxu0 0
    %852 = vmatpush2.bf16.msra.mxu0 0
    %853 = vmatprep.subr.bf16.mxu0 0
    %854 = vmatpush2.bf16.msra.mxu0 0
    %855 = vmatprep.mubr.bf16.mxu0 0
    %856 = vmatmul.mubr.bf16.gmra.mxu0 %v821
    %v857 = vpop.f32.mrf.mxu0
    %v858 = vadd.f32 %v226, %v857
    %v859 = vpop.f32.mrf.mxu0
    %v860 = vpop.f32.mrf.mxu0
    %v861 = vpop.f32.mrf.mxu0
    %862 = vdwg.mxu0
    %v863 = vxor.u32 %v858, 2147483648
    %v864 = vmul.f32 %v863, 1.442695
    %v865 = vpow.pop %v864
    %v866 = vadd.f32 %v865, 1.0
    %v867 = vrcp.pop %v866
    %v868 = vmul.f32 1.0, %v867
    %v869 = vtanh.pop %v858
    %v870 = vmul.f32 %v868, %v633
    %872 = vrot.lane.b32.xlu0 %v869, 64
    %v873 = vpop.permute.xlu0 %872
    %v875 = vmul.f32 %v868, %v873
    %877 = vrot.lane.b32.xlu0 %v875, 32
    %v878 = vpop.permute.xlu0 %877
    %v880 = vadd.f32 %v870, %v878
    %v881 = vtanh.pop %v880
    %883 = vrot.lane.b32.xlu0 %v881, 64
    %v884 = vpop.permute.xlu0 %883
    %v886 = vmul.f32 %v868, %v884
    %887 = vrot.lane.b32.xlu0 %v639, 32
    %v888 = vpop.permute.xlu0 %887
    %891 = vrot.lane.b32.xlu0 %v735, 64
    %v892 = vpop.permute.xlu0 %891
    %v894 = vsel %vm248, %v888, %v892
    %v895 = vpack.c.bf16 %v894, %v894
    %v897 = vsel %vm421, %v895, 0
    %899 = vmatprep.subr.bf16.mxu0 0
    %900 = vmatpush1.bf16.msra.mxu0 0
    %901 = vmatprep.subr.bf16.mxu0 0
    %902 = vmatpush1.bf16.msra.mxu0 0
    %903 = vmatprep.subr.bf16.mxu0 0
    %904 = vmatpush1.bf16.msra.mxu0 0
    %905 = vmatprep.subr.bf16.mxu0 0
    %906 = vmatpush1.bf16.msra.mxu0 0
    %907 = vmatprep.subr.bf16.mxu0 0
    %908 = vmatpush1.bf16.msra.mxu0 %v664
    %909 = vmatprep.subr.bf16.mxu0 0
    %910 = vmatpush1.bf16.msra.mxu0 %v663
    %911 = vmatprep.subr.bf16.mxu0 0
    %912 = vmatpush1.bf16.msra.mxu0 %v662
    %913 = vmatprep.subr.bf16.mxu0 0
    %914 = vmatpush1.bf16.msra.mxu0 %v661
    %915 = vmatprep.subr.bf16.mxu0 0
    %916 = vmatpush2.bf16.msra.mxu0 0
    %917 = vmatprep.subr.bf16.mxu0 0
    %918 = vmatpush2.bf16.msra.mxu0 0
    %919 = vmatprep.subr.bf16.mxu0 0
    %920 = vmatpush2.bf16.msra.mxu0 0
    %921 = vmatprep.subr.bf16.mxu0 0
    %922 = vmatpush2.bf16.msra.mxu0 0
    %923 = vmatprep.subr.bf16.mxu0 0
    %924 = vmatpush2.bf16.msra.mxu0 0
    %925 = vmatprep.subr.bf16.mxu0 0
    %926 = vmatpush2.bf16.msra.mxu0 0
    %927 = vmatprep.subr.bf16.mxu0 0
    %928 = vmatpush2.bf16.msra.mxu0 0
    %929 = vmatprep.subr.bf16.mxu0 0
    %930 = vmatpush2.bf16.msra.mxu0 0
    %931 = vmatprep.mubr.bf16.mxu0 0
    %932 = vmatmul.mubr.bf16.gmra.mxu0 %v897
    %v933 = vpop.f32.mrf.mxu0
    %v934 = vadd.f32 %v233, %v933
    %v935 = vpop.f32.mrf.mxu0
    %v936 = vpop.f32.mrf.mxu0
    %v937 = vpop.f32.mrf.mxu0
    %938 = vdwg.mxu0
    %v939 = vxor.u32 %v934, 2147483648
    %v940 = vmul.f32 %v939, 1.442695
    %v941 = vpow.pop %v940
    %v942 = vadd.f32 %v941, 1.0
    %v943 = vrcp.pop %v942
    %v944 = vmul.f32 1.0, %v943
    %v945 = vtanh.pop %v934
    %v946 = vmul.f32 %v944, %v729
    %948 = vrot.lane.b32.xlu0 %v945, 64
    %v949 = vpop.permute.xlu0 %948
    %v951 = vmul.f32 %v944, %v949
    %953 = vrot.lane.b32.xlu0 %v951, 32
    %v954 = vpop.permute.xlu0 %953
    %v956 = vadd.f32 %v946, %v954
    %v957 = vtanh.pop %v956
    %959 = vrot.lane.b32.xlu0 %v957, 64
    %v960 = vpop.permute.xlu0 %959
    %v962 = vmul.f32 %v944, %v960
    %s963 = scalar_lea.vmem [#allocation2], 32
    %v964 = vld [vmem:[%s963] sm:$0xff]
    %v965 = vpack.c.bf16 %v809, %v809
    %967 = vrot.lane.b32.xlu0 %v965, 32
    %v968 = vpop.permute.xlu0 %967
    %v970 = vsel %vm248, %v968, 0
    %972 = vmatprep.subr.bf16.mxu0 0
    %973 = vmatpush1.bf16.msra.mxu0 0
    %974 = vmatprep.subr.bf16.mxu0 0
    %975 = vmatpush1.bf16.msra.mxu0 0
    %976 = vmatprep.subr.bf16.mxu0 0
    %977 = vmatpush1.bf16.msra.mxu0 0
    %978 = vmatprep.subr.bf16.mxu0 0
    %979 = vmatpush1.bf16.msra.mxu0 0
    %980 = vmatprep.subr.bf16.mxu0 0
    %981 = vmatpush1.bf16.msra.mxu0 0
    %982 = vmatprep.subr.bf16.mxu0 0
    %983 = vmatpush1.bf16.msra.mxu0 0
    %984 = vmatprep.subr.bf16.mxu0 0
    %985 = vmatpush1.bf16.msra.mxu0 %v245
    %986 = vmatprep.subr.bf16.mxu0 0
    %987 = vmatpush1.bf16.msra.mxu0 %v244
    %988 = vmatprep.subr.bf16.mxu0 0
    %989 = vmatpush2.bf16.msra.mxu0 0
    %990 = vmatprep.subr.bf16.mxu0 0
    %991 = vmatpush2.bf16.msra.mxu0 0
    %992 = vmatprep.subr.bf16.mxu0 0
    %993 = vmatpush2.bf16.msra.mxu0 0
    %994 = vmatprep.subr.bf16.mxu0 0
    %995 = vmatpush2.bf16.msra.mxu0 0
    %996 = vmatprep.subr.bf16.mxu0 0
    %997 = vmatpush2.bf16.msra.mxu0 0
    %998 = vmatprep.subr.bf16.mxu0 0
    %999 = vmatpush2.bf16.msra.mxu0 0
    %1000 = vmatprep.subr.bf16.mxu0 0
    %1001 = vmatpush2.bf16.msra.mxu0 0
    %1002 = vmatprep.subr.bf16.mxu0 0
    %1003 = vmatpush2.bf16.msra.mxu0 0
    %1004 = vmatprep.mubr.bf16.mxu0 0
    %1005 = vmatmul.mubr.bf16.gmra.mxu0 %v970
    %v1006 = vpop.f32.mrf.mxu0
    %v1007 = vadd.f32 0.0, %v1006
    %v1008 = vpop.f32.mrf.mxu0
    %v1009 = vpop.f32.mrf.mxu0
    %v1010 = vpop.f32.mrf.mxu0
    %1011 = vdwg.mxu0
    %v1012 = vadd.f32 %v964, %v1007
    %v1013 = vxor.u32 %v1012, 2147483648
    %v1014 = vmul.f32 %v1013, 1.442695
    %v1015 = vpow.pop %v1014
    %v1016 = vadd.f32 %v1015, 1.0
    %v1017 = vrcp.pop %v1016
    %v1018 = vmul.f32 1.0, %v1017
    %v1019 = vtanh.pop %v1012
    %v1020 = vmul.f32 %v1018, %v803
    %1022 = vrot.lane.b32.xlu0 %v1019, 64
    %v1023 = vpop.permute.xlu0 %1022
    %v1025 = vmul.f32 %v1018, %v1023
    %1027 = vrot.lane.b32.xlu0 %v1025, 32
    %v1028 = vpop.permute.xlu0 %1027
    %v1030 = vadd.f32 %v1020, %v1028
    %v1031 = vtanh.pop %v1030
    %1033 = vrot.lane.b32.xlu0 %v1031, 64
    %v1034 = vpop.permute.xlu0 %1033
    %v1036 = vmul.f32 %v1018, %v1034
    %1038 = vrot.lane.b32.xlu0 %v809, 32
    %v1039 = vpop.permute.xlu0 %1038
    %1042 = vrot.lane.b32.xlu0 %v886, 64
    %v1043 = vpop.permute.xlu0 %1042
    %v1045 = vsel %vm248, %v1039, %v1043
    %v1046 = vpack.c.bf16 %v1045, %v1045
    %v1048 = vsel %vm421, %v1046, 0
    %1050 = vmatprep.subr.bf16.mxu0 0
    %1051 = vmatpush1.bf16.msra.mxu0 0
    %1052 = vmatprep.subr.bf16.mxu0 0
    %1053 = vmatpush1.bf16.msra.mxu0 0
    %1054 = vmatprep.subr.bf16.mxu0 0
    %1055 = vmatpush1.bf16.msra.mxu0 0
    %1056 = vmatprep.subr.bf16.mxu0 0
    %1057 = vmatpush1.bf16.msra.mxu0 0
    %1058 = vmatprep.subr.bf16.mxu0 0
    %1059 = vmatpush1.bf16.msra.mxu0 %v416
    %1060 = vmatprep.subr.bf16.mxu0 0
    %1061 = vmatpush1.bf16.msra.mxu0 %v415
    %1062 = vmatprep.subr.bf16.mxu0 0
    %1063 = vmatpush1.bf16.msra.mxu0 %v414
    %1064 = vmatprep.subr.bf16.mxu0 0
    %1065 = vmatpush1.bf16.msra.mxu0 %v413
    %1066 = vmatprep.subr.bf16.mxu0 0
    %1067 = vmatpush2.bf16.msra.mxu0 0
    %1068 = vmatprep.subr.bf16.mxu0 0
    %1069 = vmatpush2.bf16.msra.mxu0 0
    %1070 = vmatprep.subr.bf16.mxu0 0
    %1071 = vmatpush2.bf16.msra.mxu0 0
    %1072 = vmatprep.subr.bf16.mxu0 0
    %1073 = vmatpush2.bf16.msra.mxu0 0
    %1074 = vmatprep.subr.bf16.mxu0 0
    %1075 = vmatpush2.bf16.msra.mxu0 0
    %1076 = vmatprep.subr.bf16.mxu0 0
    %1077 = vmatpush2.bf16.msra.mxu0 0
    %1078 = vmatprep.subr.bf16.mxu0 0
    %1079 = vmatpush2.bf16.msra.mxu0 0
    %1080 = vmatprep.subr.bf16.mxu0 0
    %1081 = vmatpush2.bf16.msra.mxu0 0
    %1082 = vmatprep.mubr.bf16.mxu0 0
    %1083 = vmatmul.mubr.bf16.gmra.mxu0 %v1048
    %v1084 = vpop.f32.mrf.mxu0
    %v1085 = vadd.f32 %v226, %v1084
    %v1086 = vpop.f32.mrf.mxu0
    %v1087 = vpop.f32.mrf.mxu0
    %v1088 = vpop.f32.mrf.mxu0
    %1089 = vdwg.mxu0
    %v1090 = vxor.u32 %v1085, 2147483648
    %v1091 = vmul.f32 %v1090, 1.442695
    %v1092 = vpow.pop %v1091
    %v1093 = vadd.f32 %v1092, 1.0
    %v1094 = vrcp.pop %v1093
    %v1095 = vmul.f32 1.0, %v1094
    %v1096 = vtanh.pop %v1085
    %v1097 = vmul.f32 %v1095, %v880
    %1099 = vrot.lane.b32.xlu0 %v1096, 64
    %v1100 = vpop.permute.xlu0 %1099
    %v1102 = vmul.f32 %v1095, %v1100
    %1104 = vrot.lane.b32.xlu0 %v1102, 32
    %v1105 = vpop.permute.xlu0 %1104
    %v1107 = vadd.f32 %v1097, %v1105
    %v1108 = vtanh.pop %v1107
    %1110 = vrot.lane.b32.xlu0 %v1108, 64
    %v1111 = vpop.permute.xlu0 %1110
    %v1113 = vmul.f32 %v1095, %v1111
    %1114 = vrot.lane.b32.xlu0 %v886, 32
    %v1115 = vpop.permute.xlu0 %1114
    %1118 = vrot.lane.b32.xlu0 %v962, 64
    %v1119 = vpop.permute.xlu0 %1118
    %v1121 = vsel %vm248, %v1115, %v1119
    %v1122 = vpack.c.bf16 %v1121, %v1121
    %v1124 = vsel %vm421, %v1122, 0
    %1126 = vmatprep.subr.bf16.mxu0 0
    %1127 = vmatpush1.bf16.msra.mxu0 0
    %1128 = vmatprep.subr.bf16.mxu0 0
    %1129 = vmatpush1.bf16.msra.mxu0 0
    %1130 = vmatprep.subr.bf16.mxu0 0
    %1131 = vmatpush1.bf16.msra.mxu0 0
    %1132 = vmatprep.subr.bf16.mxu0 0
    %1133 = vmatpush1.bf16.msra.mxu0 0
    %1134 = vmatprep.subr.bf16.mxu0 0
    %1135 = vmatpush1.bf16.msra.mxu0 %v664
    %1136 = vmatprep.subr.bf16.mxu0 0
    %1137 = vmatpush1.bf16.msra.mxu0 %v663
    %1138 = vmatprep.subr.bf16.mxu0 0
    %1139 = vmatpush1.bf16.msra.mxu0 %v662
    %1140 = vmatprep.subr.bf16.mxu0 0
    %1141 = vmatpush1.bf16.msra.mxu0 %v661
    %1142 = vmatprep.subr.bf16.mxu0 0
    %1143 = vmatpush2.bf16.msra.mxu0 0
    %1144 = vmatprep.subr.bf16.mxu0 0
    %1145 = vmatpush2.bf16.msra.mxu0 0
    %1146 = vmatprep.subr.bf16.mxu0 0
    %1147 = vmatpush2.bf16.msra.mxu0 0
    %1148 = vmatprep.subr.bf16.mxu0 0
    %1149 = vmatpush2.bf16.msra.mxu0 0
    %1150 = vmatprep.subr.bf16.mxu0 0
    %1151 = vmatpush2.bf16.msra.mxu0 0
    %1152 = vmatprep.subr.bf16.mxu0 0
    %1153 = vmatpush2.bf16.msra.mxu0 0
    %1154 = vmatprep.subr.bf16.mxu0 0
    %1155 = vmatpush2.bf16.msra.mxu0 0
    %1156 = vmatprep.subr.bf16.mxu0 0
    %1157 = vmatpush2.bf16.msra.mxu0 0
    %1158 = vmatprep.mubr.bf16.mxu0 0
    %1159 = vmatmul.mubr.bf16.gmra.mxu0 %v1124
    %v1160 = vpop.f32.mrf.mxu0
    %v1161 = vadd.f32 %v233, %v1160
    %v1162 = vpop.f32.mrf.mxu0
    %v1163 = vpop.f32.mrf.mxu0
    %v1164 = vpop.f32.mrf.mxu0
    %1165 = vdwg.mxu0
    %v1166 = vxor.u32 %v1161, 2147483648
    %v1167 = vmul.f32 %v1166, 1.442695
    %v1168 = vpow.pop %v1167
    %v1169 = vadd.f32 %v1168, 1.0
    %v1170 = vrcp.pop %v1169
    %v1171 = vmul.f32 1.0, %v1170
    %v1172 = vtanh.pop %v1161
    %v1173 = vmul.f32 %v1171, %v956
    %1175 = vrot.lane.b32.xlu0 %v1172, 64
    %v1176 = vpop.permute.xlu0 %1175
    %v1178 = vmul.f32 %v1171, %v1176
    %1180 = vrot.lane.b32.xlu0 %v1178, 32
    %v1181 = vpop.permute.xlu0 %1180
    %v1183 = vadd.f32 %v1173, %v1181
    %v1184 = vtanh.pop %v1183
    %1186 = vrot.lane.b32.xlu0 %v1184, 64
    %v1187 = vpop.permute.xlu0 %1186
    %v1189 = vmul.f32 %v1171, %v1187
    %s1190 = scalar_lea.vmem [#allocation2], 40
    %v1191 = vld [vmem:[%s1190] sm:$0xff]
    %v1192 = vpack.c.bf16 %v1036, %v1036
    %1194 = vrot.lane.b32.xlu0 %v1192, 32
    %v1195 = vpop.permute.xlu0 %1194
    %v1197 = vsel %vm248, %v1195, 0
    %1199 = vmatprep.subr.bf16.mxu0 0
    %1200 = vmatpush1.bf16.msra.mxu0 0
    %1201 = vmatprep.subr.bf16.mxu0 0
    %1202 = vmatpush1.bf16.msra.mxu0 0
    %1203 = vmatprep.subr.bf16.mxu0 0
    %1204 = vmatpush1.bf16.msra.mxu0 0
    %1205 = vmatprep.subr.bf16.mxu0 0
    %1206 = vmatpush1.bf16.msra.mxu0 0
    %1207 = vmatprep.subr.bf16.mxu0 0
    %1208 = vmatpush1.bf16.msra.mxu0 0
    %1209 = vmatprep.subr.bf16.mxu0 0
    %1210 = vmatpush1.bf16.msra.mxu0 0
    %1211 = vmatprep.subr.bf16.mxu0 0
    %1212 = vmatpush1.bf16.msra.mxu0 %v245
    %1213 = vmatprep.subr.bf16.mxu0 0
    %1214 = vmatpush1.bf16.msra.mxu0 %v244
    %1215 = vmatprep.subr.bf16.mxu0 0
    %1216 = vmatpush2.bf16.msra.mxu0 0
    %1217 = vmatprep.subr.bf16.mxu0 0
    %1218 = vmatpush2.bf16.msra.mxu0 0
    %1219 = vmatprep.subr.bf16.mxu0 0
    %1220 = vmatpush2.bf16.msra.mxu0 0
    %1221 = vmatprep.subr.bf16.mxu0 0
    %1222 = vmatpush2.bf16.msra.mxu0 0
    %1223 = vmatprep.subr.bf16.mxu0 0
    %1224 = vmatpush2.bf16.msra.mxu0 0
    %1225 = vmatprep.subr.bf16.mxu0 0
    %1226 = vmatpush2.bf16.msra.mxu0 0
    %1227 = vmatprep.subr.bf16.mxu0 0
    %1228 = vmatpush2.bf16.msra.mxu0 0
    %1229 = vmatprep.subr.bf16.mxu0 0
    %1230 = vmatpush2.bf16.msra.mxu0 0
    %1231 = vmatprep.mubr.bf16.mxu0 0
    %1232 = vmatmul.mubr.bf16.gmra.mxu0 %v1197
    %v1233 = vpop.f32.mrf.mxu0
    %v1234 = vadd.f32 0.0, %v1233
    %v1235 = vpop.f32.mrf.mxu0
    %v1236 = vpop.f32.mrf.mxu0
    %v1237 = vpop.f32.mrf.mxu0
    %1238 = vdwg.mxu0
    %v1239 = vadd.f32 %v1191, %v1234
    %v1240 = vxor.u32 %v1239, 2147483648
    %v1241 = vmul.f32 %v1240, 1.442695
    %v1242 = vpow.pop %v1241
    %v1243 = vadd.f32 %v1242, 1.0
    %v1244 = vrcp.pop %v1243
    %v1245 = vmul.f32 1.0, %v1244
    %v1246 = vtanh.pop %v1239
    %v1247 = vmul.f32 %v1245, %v1030
    %1249 = vrot.lane.b32.xlu0 %v1246, 64
    %v1250 = vpop.permute.xlu0 %1249
    %v1252 = vmul.f32 %v1245, %v1250
    %1254 = vrot.lane.b32.xlu0 %v1252, 32
    %v1255 = vpop.permute.xlu0 %1254
    %v1257 = vadd.f32 %v1247, %v1255
    %v1258 = vtanh.pop %v1257
    %1260 = vrot.lane.b32.xlu0 %v1258, 64
    %v1261 = vpop.permute.xlu0 %1260
    %v1263 = vmul.f32 %v1245, %v1261
    %1265 = vrot.lane.b32.xlu0 %v1036, 32
    %v1266 = vpop.permute.xlu0 %1265
    %1269 = vrot.lane.b32.xlu0 %v1113, 64
    %v1270 = vpop.permute.xlu0 %1269
    %v1272 = vsel %vm248, %v1266, %v1270
    %v1273 = vpack.c.bf16 %v1272, %v1272
    %v1275 = vsel %vm421, %v1273, 0
    %1277 = vmatprep.subr.bf16.mxu0 0
    %1278 = vmatpush1.bf16.msra.mxu0 0
    %1279 = vmatprep.subr.bf16.mxu0 0
    %1280 = vmatpush1.bf16.msra.mxu0 0
    %1281 = vmatprep.subr.bf16.mxu0 0
    %1282 = vmatpush1.bf16.msra.mxu0 0
    %1283 = vmatprep.subr.bf16.mxu0 0
    %1284 = vmatpush1.bf16.msra.mxu0 0
    %1285 = vmatprep.subr.bf16.mxu0 0
    %1286 = vmatpush1.bf16.msra.mxu0 %v416
    %1287 = vmatprep.subr.bf16.mxu0 0
    %1288 = vmatpush1.bf16.msra.mxu0 %v415
    %1289 = vmatprep.subr.bf16.mxu0 0
    %1290 = vmatpush1.bf16.msra.mxu0 %v414
    %1291 = vmatprep.subr.bf16.mxu0 0
    %1292 = vmatpush1.bf16.msra.mxu0 %v413
    %1293 = vmatprep.subr.bf16.mxu0 0
    %1294 = vmatpush2.bf16.msra.mxu0 0
    %1295 = vmatprep.subr.bf16.mxu0 0
    %1296 = vmatpush2.bf16.msra.mxu0 0
    %1297 = vmatprep.subr.bf16.mxu0 0
    %1298 = vmatpush2.bf16.msra.mxu0 0
    %1299 = vmatprep.subr.bf16.mxu0 0
    %1300 = vmatpush2.bf16.msra.mxu0 0
    %1301 = vmatprep.subr.bf16.mxu0 0
    %1302 = vmatpush2.bf16.msra.mxu0 0
    %1303 = vmatprep.subr.bf16.mxu0 0
    %1304 = vmatpush2.bf16.msra.mxu0 0
    %1305 = vmatprep.subr.bf16.mxu0 0
    %1306 = vmatpush2.bf16.msra.mxu0 0
    %1307 = vmatprep.subr.bf16.mxu0 0
    %1308 = vmatpush2.bf16.msra.mxu0 0
    %1309 = vmatprep.mubr.bf16.mxu0 0
    %1310 = vmatmul.mubr.bf16.gmra.mxu0 %v1275
    %v1311 = vpop.f32.mrf.mxu0
    %v1312 = vadd.f32 %v226, %v1311
    %v1313 = vpop.f32.mrf.mxu0
    %v1314 = vpop.f32.mrf.mxu0
    %v1315 = vpop.f32.mrf.mxu0
    %1316 = vdwg.mxu0
    %v1317 = vxor.u32 %v1312, 2147483648
    %v1318 = vmul.f32 %v1317, 1.442695
    %v1319 = vpow.pop %v1318
    %v1320 = vadd.f32 %v1319, 1.0
    %v1321 = vrcp.pop %v1320
    %v1322 = vmul.f32 1.0, %v1321
    %v1323 = vtanh.pop %v1312
    %v1324 = vmul.f32 %v1322, %v1107
    %1326 = vrot.lane.b32.xlu0 %v1323, 64
    %v1327 = vpop.permute.xlu0 %1326
    %v1329 = vmul.f32 %v1322, %v1327
    %1331 = vrot.lane.b32.xlu0 %v1329, 32
    %v1332 = vpop.permute.xlu0 %1331
    %v1334 = vadd.f32 %v1324, %v1332
    %v1335 = vtanh.pop %v1334
    %1337 = vrot.lane.b32.xlu0 %v1335, 64
    %v1338 = vpop.permute.xlu0 %1337
    %v1340 = vmul.f32 %v1322, %v1338
    %1341 = vrot.lane.b32.xlu0 %v1113, 32
    %v1342 = vpop.permute.xlu0 %1341
    %1345 = vrot.lane.b32.xlu0 %v1189, 64
    %v1346 = vpop.permute.xlu0 %1345
    %v1348 = vsel %vm248, %v1342, %v1346
    %v1349 = vpack.c.bf16 %v1348, %v1348
    %v1351 = vsel %vm421, %v1349, 0
    %1353 = vmatprep.subr.bf16.mxu0 0
    %1354 = vmatpush1.bf16.msra.mxu0 0
    %1355 = vmatprep.subr.bf16.mxu0 0
    %1356 = vmatpush1.bf16.msra.mxu0 0
    %1357 = vmatprep.subr.bf16.mxu0 0
    %1358 = vmatpush1.bf16.msra.mxu0 0
    %1359 = vmatprep.subr.bf16.mxu0 0
    %1360 = vmatpush1.bf16.msra.mxu0 0
    %1361 = vmatprep.subr.bf16.mxu0 0
    %1362 = vmatpush1.bf16.msra.mxu0 %v664
    %1363 = vmatprep.subr.bf16.mxu0 0
    %1364 = vmatpush1.bf16.msra.mxu0 %v663
    %1365 = vmatprep.subr.bf16.mxu0 0
    %1366 = vmatpush1.bf16.msra.mxu0 %v662
    %1367 = vmatprep.subr.bf16.mxu0 0
    %1368 = vmatpush1.bf16.msra.mxu0 %v661
    %1369 = vmatprep.subr.bf16.mxu0 0
    %1370 = vmatpush2.bf16.msra.mxu0 0
    %1371 = vmatprep.subr.bf16.mxu0 0
    %1372 = vmatpush2.bf16.msra.mxu0 0
    %1373 = vmatprep.subr.bf16.mxu0 0
    %1374 = vmatpush2.bf16.msra.mxu0 0
    %1375 = vmatprep.subr.bf16.mxu0 0
    %1376 = vmatpush2.bf16.msra.mxu0 0
    %1377 = vmatprep.subr.bf16.mxu0 0
    %1378 = vmatpush2.bf16.msra.mxu0 0
    %1379 = vmatprep.subr.bf16.mxu0 0
    %1380 = vmatpush2.bf16.msra.mxu0 0
    %1381 = vmatprep.subr.bf16.mxu0 0
    %1382 = vmatpush2.bf16.msra.mxu0 0
    %1383 = vmatprep.subr.bf16.mxu0 0
    %1384 = vmatpush2.bf16.msra.mxu0 0
    %1385 = vmatprep.mubr.bf16.mxu0 0
    %1386 = vmatmul.mubr.bf16.gmra.mxu0 %v1351
    %v1387 = vpop.f32.mrf.mxu0
    %v1388 = vadd.f32 %v233, %v1387
    %v1389 = vpop.f32.mrf.mxu0
    %v1390 = vpop.f32.mrf.mxu0
    %v1391 = vpop.f32.mrf.mxu0
    %1392 = vdwg.mxu0
    %v1393 = vxor.u32 %v1388, 2147483648
    %v1394 = vmul.f32 %v1393, 1.442695
    %v1395 = vpow.pop %v1394
    %v1396 = vadd.f32 %v1395, 1.0
    %v1397 = vrcp.pop %v1396
    %v1398 = vmul.f32 1.0, %v1397
    %v1399 = vtanh.pop %v1388
    %v1400 = vmul.f32 %v1398, %v1183
    %1402 = vrot.lane.b32.xlu0 %v1399, 64
    %v1403 = vpop.permute.xlu0 %1402
    %v1405 = vmul.f32 %v1398, %v1403
    %1407 = vrot.lane.b32.xlu0 %v1405, 32
    %v1408 = vpop.permute.xlu0 %1407
    %v1410 = vadd.f32 %v1400, %v1408
    %v1411 = vtanh.pop %v1410
    %1413 = vrot.lane.b32.xlu0 %v1411, 64
    %v1414 = vpop.permute.xlu0 %1413
    %v1416 = vmul.f32 %v1398, %v1414
    %s1417 = scalar_lea.vmem [#allocation2], 48
    %v1418 = vld [vmem:[%s1417] sm:$0xff]
    %v1419 = vpack.c.bf16 %v1263, %v1263
    %1421 = vrot.lane.b32.xlu0 %v1419, 32
    %v1422 = vpop.permute.xlu0 %1421
    %v1424 = vsel %vm248, %v1422, 0
    %1426 = vmatprep.subr.bf16.mxu0 0
    %1427 = vmatpush1.bf16.msra.mxu0 0
    %1428 = vmatprep.subr.bf16.mxu0 0
    %1429 = vmatpush1.bf16.msra.mxu0 0
    %1430 = vmatprep.subr.bf16.mxu0 0
    %1431 = vmatpush1.bf16.msra.mxu0 0
    %1432 = vmatprep.subr.bf16.mxu0 0
    %1433 = vmatpush1.bf16.msra.mxu0 0
    %1434 = vmatprep.subr.bf16.mxu0 0
    %1435 = vmatpush1.bf16.msra.mxu0 0
    %1436 = vmatprep.subr.bf16.mxu0 0
    %1437 = vmatpush1.bf16.msra.mxu0 0
    %1438 = vmatprep.subr.bf16.mxu0 0
    %1439 = vmatpush1.bf16.msra.mxu0 %v245
    %1440 = vmatprep.subr.bf16.mxu0 0
    %1441 = vmatpush1.bf16.msra.mxu0 %v244
    %1442 = vmatprep.subr.bf16.mxu0 0
    %1443 = vmatpush2.bf16.msra.mxu0 0
    %1444 = vmatprep.subr.bf16.mxu0 0
    %1445 = vmatpush2.bf16.msra.mxu0 0
    %1446 = vmatprep.subr.bf16.mxu0 0
    %1447 = vmatpush2.bf16.msra.mxu0 0
    %1448 = vmatprep.subr.bf16.mxu0 0
    %1449 = vmatpush2.bf16.msra.mxu0 0
    %1450 = vmatprep.subr.bf16.mxu0 0
    %1451 = vmatpush2.bf16.msra.mxu0 0
    %1452 = vmatprep.subr.bf16.mxu0 0
    %1453 = vmatpush2.bf16.msra.mxu0 0
    %1454 = vmatprep.subr.bf16.mxu0 0
    %1455 = vmatpush2.bf16.msra.mxu0 0
    %1456 = vmatprep.subr.bf16.mxu0 0
    %1457 = vmatpush2.bf16.msra.mxu0 0
    %1458 = vmatprep.mubr.bf16.mxu0 0
    %1459 = vmatmul.mubr.bf16.gmra.mxu0 %v1424
    %v1460 = vpop.f32.mrf.mxu0
    %v1461 = vadd.f32 0.0, %v1460
    %v1462 = vpop.f32.mrf.mxu0
    %v1463 = vpop.f32.mrf.mxu0
    %v1464 = vpop.f32.mrf.mxu0
    %1465 = vdwg.mxu0
    %v1466 = vadd.f32 %v1418, %v1461
    %v1467 = vxor.u32 %v1466, 2147483648
    %v1468 = vmul.f32 %v1467, 1.442695
    %v1469 = vpow.pop %v1468
    %v1470 = vadd.f32 %v1469, 1.0
    %v1471 = vrcp.pop %v1470
    %v1472 = vmul.f32 1.0, %v1471
    %v1473 = vtanh.pop %v1466
    %v1474 = vmul.f32 %v1472, %v1257
    %1476 = vrot.lane.b32.xlu0 %v1473, 64
    %v1477 = vpop.permute.xlu0 %1476
    %v1479 = vmul.f32 %v1472, %v1477
    %1481 = vrot.lane.b32.xlu0 %v1479, 32
    %v1482 = vpop.permute.xlu0 %1481
    %v1484 = vadd.f32 %v1474, %v1482
    %v1485 = vtanh.pop %v1484
    %1487 = vrot.lane.b32.xlu0 %v1485, 64
    %v1488 = vpop.permute.xlu0 %1487
    %v1490 = vmul.f32 %v1472, %v1488
    %1492 = vrot.lane.b32.xlu0 %v1263, 32
    %v1493 = vpop.permute.xlu0 %1492
    %1496 = vrot.lane.b32.xlu0 %v1340, 64
    %v1497 = vpop.permute.xlu0 %1496
    %v1499 = vsel %vm248, %v1493, %v1497
    %v1500 = vpack.c.bf16 %v1499, %v1499
    %v1502 = vsel %vm421, %v1500, 0
    %1504 = vmatprep.subr.bf16.mxu0 0
    %1505 = vmatpush1.bf16.msra.mxu0 0
    %1506 = vmatprep.subr.bf16.mxu0 0
    %1507 = vmatpush1.bf16.msra.mxu0 0
    %1508 = vmatprep.subr.bf16.mxu0 0
    %1509 = vmatpush1.bf16.msra.mxu0 0
    %1510 = vmatprep.subr.bf16.mxu0 0
    %1511 = vmatpush1.bf16.msra.mxu0 0
    %1512 = vmatprep.subr.bf16.mxu0 0
    %1513 = vmatpush1.bf16.msra.mxu0 %v416
    %1514 = vmatprep.subr.bf16.mxu0 0
    %1515 = vmatpush1.bf16.msra.mxu0 %v415
    %1516 = vmatprep.subr.bf16.mxu0 0
    %1517 = vmatpush1.bf16.msra.mxu0 %v414
    %1518 = vmatprep.subr.bf16.mxu0 0
    %1519 = vmatpush1.bf16.msra.mxu0 %v413
    %1520 = vmatprep.subr.bf16.mxu0 0
    %1521 = vmatpush2.bf16.msra.mxu0 0
    %1522 = vmatprep.subr.bf16.mxu0 0
    %1523 = vmatpush2.bf16.msra.mxu0 0
    %1524 = vmatprep.subr.bf16.mxu0 0
    %1525 = vmatpush2.bf16.msra.mxu0 0
    %1526 = vmatprep.subr.bf16.mxu0 0
    %1527 = vmatpush2.bf16.msra.mxu0 0
    %1528 = vmatprep.subr.bf16.mxu0 0
    %1529 = vmatpush2.bf16.msra.mxu0 0
    %1530 = vmatprep.subr.bf16.mxu0 0
    %1531 = vmatpush2.bf16.msra.mxu0 0
    %1532 = vmatprep.subr.bf16.mxu0 0
    %1533 = vmatpush2.bf16.msra.mxu0 0
    %1534 = vmatprep.subr.bf16.mxu0 0
    %1535 = vmatpush2.bf16.msra.mxu0 0
    %1536 = vmatprep.mubr.bf16.mxu0 0
    %1537 = vmatmul.mubr.bf16.gmra.mxu0 %v1502
    %v1538 = vpop.f32.mrf.mxu0
    %v1539 = vadd.f32 %v226, %v1538
    %v1540 = vpop.f32.mrf.mxu0
    %v1541 = vpop.f32.mrf.mxu0
    %v1542 = vpop.f32.mrf.mxu0
    %1543 = vdwg.mxu0
    %v1544 = vxor.u32 %v1539, 2147483648
    %v1545 = vmul.f32 %v1544, 1.442695
    %v1546 = vpow.pop %v1545
    %v1547 = vadd.f32 %v1546, 1.0
    %v1548 = vrcp.pop %v1547
    %v1549 = vmul.f32 1.0, %v1548
    %v1550 = vtanh.pop %v1539
    %v1551 = vmul.f32 %v1549, %v1334
    %1553 = vrot.lane.b32.xlu0 %v1550, 64
    %v1554 = vpop.permute.xlu0 %1553
    %v1556 = vmul.f32 %v1549, %v1554
    %1558 = vrot.lane.b32.xlu0 %v1556, 32
    %v1559 = vpop.permute.xlu0 %1558
    %v1561 = vadd.f32 %v1551, %v1559
    %v1562 = vtanh.pop %v1561
    %1564 = vrot.lane.b32.xlu0 %v1562, 64
    %v1565 = vpop.permute.xlu0 %1564
    %v1567 = vmul.f32 %v1549, %v1565
    %1568 = vrot.lane.b32.xlu0 %v1340, 32
    %v1569 = vpop.permute.xlu0 %1568
    %1572 = vrot.lane.b32.xlu0 %v1416, 64
    %v1573 = vpop.permute.xlu0 %1572
    %v1575 = vsel %vm248, %v1569, %v1573
    %v1576 = vpack.c.bf16 %v1575, %v1575
    %v1578 = vsel %vm421, %v1576, 0
    %1580 = vmatprep.subr.bf16.mxu0 0
    %1581 = vmatpush1.bf16.msra.mxu0 0
    %1582 = vmatprep.subr.bf16.mxu0 0
    %1583 = vmatpush1.bf16.msra.mxu0 0
    %1584 = vmatprep.subr.bf16.mxu0 0
    %1585 = vmatpush1.bf16.msra.mxu0 0
    %1586 = vmatprep.subr.bf16.mxu0 0
    %1587 = vmatpush1.bf16.msra.mxu0 0
    %1588 = vmatprep.subr.bf16.mxu0 0
    %1589 = vmatpush1.bf16.msra.mxu0 %v664
    %1590 = vmatprep.subr.bf16.mxu0 0
    %1591 = vmatpush1.bf16.msra.mxu0 %v663
    %1592 = vmatprep.subr.bf16.mxu0 0
    %1593 = vmatpush1.bf16.msra.mxu0 %v662
    %1594 = vmatprep.subr.bf16.mxu0 0
    %1595 = vmatpush1.bf16.msra.mxu0 %v661
    %1596 = vmatprep.subr.bf16.mxu0 0
    %1597 = vmatpush2.bf16.msra.mxu0 0
    %1598 = vmatprep.subr.bf16.mxu0 0
    %1599 = vmatpush2.bf16.msra.mxu0 0
    %1600 = vmatprep.subr.bf16.mxu0 0
    %1601 = vmatpush2.bf16.msra.mxu0 0
    %1602 = vmatprep.subr.bf16.mxu0 0
    %1603 = vmatpush2.bf16.msra.mxu0 0
    %1604 = vmatprep.subr.bf16.mxu0 0
    %1605 = vmatpush2.bf16.msra.mxu0 0
    %1606 = vmatprep.subr.bf16.mxu0 0
    %1607 = vmatpush2.bf16.msra.mxu0 0
    %1608 = vmatprep.subr.bf16.mxu0 0
    %1609 = vmatpush2.bf16.msra.mxu0 0
    %1610 = vmatprep.subr.bf16.mxu0 0
    %1611 = vmatpush2.bf16.msra.mxu0 0
    %1612 = vmatprep.mubr.bf16.mxu0 0
    %1613 = vmatmul.mubr.bf16.gmra.mxu0 %v1578
    %v1614 = vpop.f32.mrf.mxu0
    %v1615 = vadd.f32 %v233, %v1614
    %v1616 = vpop.f32.mrf.mxu0
    %v1617 = vpop.f32.mrf.mxu0
    %v1618 = vpop.f32.mrf.mxu0
    %1619 = vdwg.mxu0
    %v1620 = vxor.u32 %v1615, 2147483648
    %v1621 = vmul.f32 %v1620, 1.442695
    %v1622 = vpow.pop %v1621
    %v1623 = vadd.f32 %v1622, 1.0
    %v1624 = vrcp.pop %v1623
    %v1625 = vmul.f32 1.0, %v1624
    %v1626 = vtanh.pop %v1615
    %v1627 = vmul.f32 %v1625, %v1410
    %1629 = vrot.lane.b32.xlu0 %v1626, 64
    %v1630 = vpop.permute.xlu0 %1629
    %v1632 = vmul.f32 %v1625, %v1630
    %1634 = vrot.lane.b32.xlu0 %v1632, 32
    %v1635 = vpop.permute.xlu0 %1634
    %v1637 = vadd.f32 %v1627, %v1635
    %v1638 = vtanh.pop %v1637
    %1640 = vrot.lane.b32.xlu0 %v1638, 64
    %v1641 = vpop.permute.xlu0 %1640
    %v1643 = vmul.f32 %v1625, %v1641
    %s1644 = scalar_lea.vmem [#allocation2], 56
    %v1645 = vld [vmem:[%s1644] sm:$0xff]
    %v1646 = vpack.c.bf16 %v1490, %v1490
    %1648 = vrot.lane.b32.xlu0 %v1646, 32
    %v1649 = vpop.permute.xlu0 %1648
    %v1651 = vsel %vm248, %v1649, 0
    %1653 = vmatprep.subr.bf16.mxu0 0
    %1654 = vmatpush1.bf16.msra.mxu0 0
    %1655 = vmatprep.subr.bf16.mxu0 0
    %1656 = vmatpush1.bf16.msra.mxu0 0
    %1657 = vmatprep.subr.bf16.mxu0 0
    %1658 = vmatpush1.bf16.msra.mxu0 0
    %1659 = vmatprep.subr.bf16.mxu0 0
    %1660 = vmatpush1.bf16.msra.mxu0 0
    %1661 = vmatprep.subr.bf16.mxu0 0
    %1662 = vmatpush1.bf16.msra.mxu0 0
    %1663 = vmatprep.subr.bf16.mxu0 0
    %1664 = vmatpush1.bf16.msra.mxu0 0
    %1665 = vmatprep.subr.bf16.mxu0 0
    %1666 = vmatpush1.bf16.msra.mxu0 %v245
    %1667 = vmatprep.subr.bf16.mxu0 0
    %1668 = vmatpush1.bf16.msra.mxu0 %v244
    %1669 = vmatprep.subr.bf16.mxu0 0
    %1670 = vmatpush2.bf16.msra.mxu0 0
    %1671 = vmatprep.subr.bf16.mxu0 0
    %1672 = vmatpush2.bf16.msra.mxu0 0
    %1673 = vmatprep.subr.bf16.mxu0 0
    %1674 = vmatpush2.bf16.msra.mxu0 0
    %1675 = vmatprep.subr.bf16.mxu0 0
    %1676 = vmatpush2.bf16.msra.mxu0 0
    %1677 = vmatprep.subr.bf16.mxu0 0
    %1678 = vmatpush2.bf16.msra.mxu0 0
    %1679 = vmatprep.subr.bf16.mxu0 0
    %1680 = vmatpush2.bf16.msra.mxu0 0
    %1681 = vmatprep.subr.bf16.mxu0 0
    %1682 = vmatpush2.bf16.msra.mxu0 0
    %1683 = vmatprep.subr.bf16.mxu0 0
    %1684 = vmatpush2.bf16.msra.mxu0 0
    %1685 = vmatprep.mubr.bf16.mxu0 0
    %1686 = vmatmul.mubr.bf16.gmra.mxu0 %v1651
    %v1687 = vpop.f32.mrf.mxu0
    %v1688 = vadd.f32 0.0, %v1687
    %v1689 = vpop.f32.mrf.mxu0
    %v1690 = vpop.f32.mrf.mxu0
    %v1691 = vpop.f32.mrf.mxu0
    %1692 = vdwg.mxu0
    %v1693 = vadd.f32 %v1645, %v1688
    %v1694 = vxor.u32 %v1693, 2147483648
    %v1695 = vmul.f32 %v1694, 1.442695
    %v1696 = vpow.pop %v1695
    %v1697 = vadd.f32 %v1696, 1.0
    %v1698 = vrcp.pop %v1697
    %v1699 = vmul.f32 1.0, %v1698
    %v1700 = vtanh.pop %v1693
    %v1701 = vmul.f32 %v1699, %v1484
    %1703 = vrot.lane.b32.xlu0 %v1700, 64
    %v1704 = vpop.permute.xlu0 %1703
    %v1706 = vmul.f32 %v1699, %v1704
    %1708 = vrot.lane.b32.xlu0 %v1706, 32
    %v1709 = vpop.permute.xlu0 %1708
    %v1711 = vadd.f32 %v1701, %v1709
    %v1712 = vtanh.pop %v1711
    %1714 = vrot.lane.b32.xlu0 %v1712, 64
    %v1715 = vpop.permute.xlu0 %1714
    %v1717 = vmul.f32 %v1699, %v1715
    %1719 = vrot.lane.b32.xlu0 %v1490, 32
    %v1720 = vpop.permute.xlu0 %1719
    %1723 = vrot.lane.b32.xlu0 %v1567, 64
    %v1724 = vpop.permute.xlu0 %1723
    %v1726 = vsel %vm248, %v1720, %v1724
    %v1727 = vpack.c.bf16 %v1726, %v1726
    %v1729 = vsel %vm421, %v1727, 0
    %1731 = vmatprep.subr.bf16.mxu0 0
    %1732 = vmatpush1.bf16.msra.mxu0 0
    %1733 = vmatprep.subr.bf16.mxu0 0
    %1734 = vmatpush1.bf16.msra.mxu0 0
    %1735 = vmatprep.subr.bf16.mxu0 0
    %1736 = vmatpush1.bf16.msra.mxu0 0
    %1737 = vmatprep.subr.bf16.mxu0 0
    %1738 = vmatpush1.bf16.msra.mxu0 0
    %1739 = vmatprep.subr.bf16.mxu0 0
    %1740 = vmatpush1.bf16.msra.mxu0 %v416
    %1741 = vmatprep.subr.bf16.mxu0 0
    %1742 = vmatpush1.bf16.msra.mxu0 %v415
    %1743 = vmatprep.subr.bf16.mxu0 0
    %1744 = vmatpush1.bf16.msra.mxu0 %v414
    %1745 = vmatprep.subr.bf16.mxu0 0
    %1746 = vmatpush1.bf16.msra.mxu0 %v413
    %1747 = vmatprep.subr.bf16.mxu0 0
    %1748 = vmatpush2.bf16.msra.mxu0 0
    %1749 = vmatprep.subr.bf16.mxu0 0
    %1750 = vmatpush2.bf16.msra.mxu0 0
    %1751 = vmatprep.subr.bf16.mxu0 0
    %1752 = vmatpush2.bf16.msra.mxu0 0
    %1753 = vmatprep.subr.bf16.mxu0 0
    %1754 = vmatpush2.bf16.msra.mxu0 0
    %1755 = vmatprep.subr.bf16.mxu0 0
    %1756 = vmatpush2.bf16.msra.mxu0 0
    %1757 = vmatprep.subr.bf16.mxu0 0
    %1758 = vmatpush2.bf16.msra.mxu0 0
    %1759 = vmatprep.subr.bf16.mxu0 0
    %1760 = vmatpush2.bf16.msra.mxu0 0
    %1761 = vmatprep.subr.bf16.mxu0 0
    %1762 = vmatpush2.bf16.msra.mxu0 0
    %1763 = vmatprep.mubr.bf16.mxu0 0
    %1764 = vmatmul.mubr.bf16.gmra.mxu0 %v1729
    %v1765 = vpop.f32.mrf.mxu0
    %v1766 = vadd.f32 %v226, %v1765
    %v1767 = vpop.f32.mrf.mxu0
    %v1768 = vpop.f32.mrf.mxu0
    %v1769 = vpop.f32.mrf.mxu0
    %1770 = vdwg.mxu0
    %v1771 = vxor.u32 %v1766, 2147483648
    %v1772 = vmul.f32 %v1771, 1.442695
    %v1773 = vpow.pop %v1772
    %v1774 = vadd.f32 %v1773, 1.0
    %v1775 = vrcp.pop %v1774
    %v1776 = vmul.f32 1.0, %v1775
    %v1777 = vtanh.pop %v1766
    %v1778 = vmul.f32 %v1776, %v1561
    %1780 = vrot.lane.b32.xlu0 %v1777, 64
    %v1781 = vpop.permute.xlu0 %1780
    %v1783 = vmul.f32 %v1776, %v1781
    %1785 = vrot.lane.b32.xlu0 %v1783, 32
    %v1786 = vpop.permute.xlu0 %1785
    %v1788 = vadd.f32 %v1778, %v1786
    %v1789 = vtanh.pop %v1788
    %1791 = vrot.lane.b32.xlu0 %v1789, 64
    %v1792 = vpop.permute.xlu0 %1791
    %v1794 = vmul.f32 %v1776, %v1792
    %1795 = vrot.lane.b32.xlu0 %v1567, 32
    %v1796 = vpop.permute.xlu0 %1795
    %1799 = vrot.lane.b32.xlu0 %v1643, 64
    %v1800 = vpop.permute.xlu0 %1799
    %v1802 = vsel %vm248, %v1796, %v1800
    %v1803 = vpack.c.bf16 %v1802, %v1802
    %v1805 = vsel %vm421, %v1803, 0
    %1807 = vmatprep.subr.bf16.mxu0 0
    %1808 = vmatpush1.bf16.msra.mxu0 0
    %1809 = vmatprep.subr.bf16.mxu0 0
    %1810 = vmatpush1.bf16.msra.mxu0 0
    %1811 = vmatprep.subr.bf16.mxu0 0
    %1812 = vmatpush1.bf16.msra.mxu0 0
    %1813 = vmatprep.subr.bf16.mxu0 0
    %1814 = vmatpush1.bf16.msra.mxu0 0
    %1815 = vmatprep.subr.bf16.mxu0 0
    %1816 = vmatpush1.bf16.msra.mxu0 %v664
    %1817 = vmatprep.subr.bf16.mxu0 0
    %1818 = vmatpush1.bf16.msra.mxu0 %v663
    %1819 = vmatprep.subr.bf16.mxu0 0
    %1820 = vmatpush1.bf16.msra.mxu0 %v662
    %1821 = vmatprep.subr.bf16.mxu0 0
    %1822 = vmatpush1.bf16.msra.mxu0 %v661
    %1823 = vmatprep.subr.bf16.mxu0 0
    %1824 = vmatpush2.bf16.msra.mxu0 0
    %1825 = vmatprep.subr.bf16.mxu0 0
    %1826 = vmatpush2.bf16.msra.mxu0 0
    %1827 = vmatprep.subr.bf16.mxu0 0
    %1828 = vmatpush2.bf16.msra.mxu0 0
    %1829 = vmatprep.subr.bf16.mxu0 0
    %1830 = vmatpush2.bf16.msra.mxu0 0
    %1831 = vmatprep.subr.bf16.mxu0 0
    %1832 = vmatpush2.bf16.msra.mxu0 0
    %1833 = vmatprep.subr.bf16.mxu0 0
    %1834 = vmatpush2.bf16.msra.mxu0 0
    %1835 = vmatprep.subr.bf16.mxu0 0
    %1836 = vmatpush2.bf16.msra.mxu0 0
    %1837 = vmatprep.subr.bf16.mxu0 0
    %1838 = vmatpush2.bf16.msra.mxu0 0
    %1839 = vmatprep.mubr.bf16.mxu0 0
    %1840 = vmatmul.mubr.bf16.gmra.mxu0 %v1805
    %v1841 = vpop.f32.mrf.mxu0
    %v1842 = vadd.f32 %v233, %v1841
    %v1843 = vpop.f32.mrf.mxu0
    %v1844 = vpop.f32.mrf.mxu0
    %v1845 = vpop.f32.mrf.mxu0
    %1846 = vdwg.mxu0
    %v1847 = vxor.u32 %v1842, 2147483648
    %v1848 = vmul.f32 %v1847, 1.442695
    %v1849 = vpow.pop %v1848
    %v1850 = vadd.f32 %v1849, 1.0
    %v1851 = vrcp.pop %v1850
    %v1852 = vmul.f32 1.0, %v1851
    %v1853 = vtanh.pop %v1842
    %v1854 = vmul.f32 %v1852, %v1637
    %1856 = vrot.lane.b32.xlu0 %v1853, 64
    %v1857 = vpop.permute.xlu0 %1856
    %v1859 = vmul.f32 %v1852, %v1857
    %1861 = vrot.lane.b32.xlu0 %v1859, 32
    %v1862 = vpop.permute.xlu0 %1861
    %v1864 = vadd.f32 %v1854, %v1862
    %v1865 = vtanh.pop %v1864
    %1867 = vrot.lane.b32.xlu0 %v1865, 64
    %v1868 = vpop.permute.xlu0 %1867
    %v1870 = vmul.f32 %v1852, %v1868
    %1872 = vrot.lane.b32.xlu0 %v1717, 32
    %v1873 = vpop.permute.xlu0 %1872
    %1876 = vrot.lane.b32.xlu0 %v1794, 64
    %v1877 = vpop.permute.xlu0 %1876
    %v1879 = vsel %vm248, %v1873, %v1877
    %v1880 = vpack.c.bf16 %v1879, %v1879
    %v1882 = vsel %vm421, %v1880, 0
    %1884 = vmatprep.subr.bf16.mxu0 0
    %1885 = vmatpush1.bf16.msra.mxu0 0
    %1886 = vmatprep.subr.bf16.mxu0 0
    %1887 = vmatpush1.bf16.msra.mxu0 0
    %1888 = vmatprep.subr.bf16.mxu0 0
    %1889 = vmatpush1.bf16.msra.mxu0 0
    %1890 = vmatprep.subr.bf16.mxu0 0
    %1891 = vmatpush1.bf16.msra.mxu0 0
    %1892 = vmatprep.subr.bf16.mxu0 0
    %1893 = vmatpush1.bf16.msra.mxu0 %v416
    %1894 = vmatprep.subr.bf16.mxu0 0
    %1895 = vmatpush1.bf16.msra.mxu0 %v415
    %1896 = vmatprep.subr.bf16.mxu0 0
    %1897 = vmatpush1.bf16.msra.mxu0 %v414
    %1898 = vmatprep.subr.bf16.mxu0 0
    %1899 = vmatpush1.bf16.msra.mxu0 %v413
    %1900 = vmatprep.subr.bf16.mxu0 0
    %1901 = vmatpush2.bf16.msra.mxu0 0
    %1902 = vmatprep.subr.bf16.mxu0 0
    %1903 = vmatpush2.bf16.msra.mxu0 0
    %1904 = vmatprep.subr.bf16.mxu0 0
    %1905 = vmatpush2.bf16.msra.mxu0 0
    %1906 = vmatprep.subr.bf16.mxu0 0
    %1907 = vmatpush2.bf16.msra.mxu0 0
    %1908 = vmatprep.subr.bf16.mxu0 0
    %1909 = vmatpush2.bf16.msra.mxu0 0
    %1910 = vmatprep.subr.bf16.mxu0 0
    %1911 = vmatpush2.bf16.msra.mxu0 0
    %1912 = vmatprep.subr.bf16.mxu0 0
    %1913 = vmatpush2.bf16.msra.mxu0 0
    %1914 = vmatprep.subr.bf16.mxu0 0
    %1915 = vmatpush2.bf16.msra.mxu0 0
    %1916 = vmatprep.mubr.bf16.mxu0 0
    %1917 = vmatmul.mubr.bf16.gmra.mxu0 %v1882
    %v1918 = vpop.f32.mrf.mxu0
    %v1919 = vadd.f32 %v226, %v1918
    %v1920 = vpop.f32.mrf.mxu0
    %v1921 = vpop.f32.mrf.mxu0
    %v1922 = vpop.f32.mrf.mxu0
    %1923 = vdwg.mxu0
    %v1924 = vxor.u32 %v1919, 2147483648
    %v1925 = vmul.f32 %v1924, 1.442695
    %v1926 = vpow.pop %v1925
    %v1927 = vadd.f32 %v1926, 1.0
    %v1928 = vrcp.pop %v1927
    %v1929 = vmul.f32 1.0, %v1928
    %v1930 = vtanh.pop %v1919
    %v1931 = vmul.f32 %v1929, %v1788
    %1933 = vrot.lane.b32.xlu0 %v1930, 64
    %v1934 = vpop.permute.xlu0 %1933
    %v1936 = vmul.f32 %v1929, %v1934
    %1938 = vrot.lane.b32.xlu0 %v1936, 32
    %v1939 = vpop.permute.xlu0 %1938
    %v1941 = vadd.f32 %v1931, %v1939
    %v1942 = vtanh.pop %v1941
    %1944 = vrot.lane.b32.xlu0 %v1942, 64
    %v1945 = vpop.permute.xlu0 %1944
    %v1947 = vmul.f32 %v1929, %v1945
    %1948 = vrot.lane.b32.xlu0 %v1794, 32
    %v1949 = vpop.permute.xlu0 %1948
    %1952 = vrot.lane.b32.xlu0 %v1870, 64
    %v1953 = vpop.permute.xlu0 %1952
    %v1955 = vsel %vm248, %v1949, %v1953
    %v1956 = vpack.c.bf16 %v1955, %v1955
    %v1958 = vsel %vm421, %v1956, 0
    %1960 = vmatprep.subr.bf16.mxu0 0
    %1961 = vmatpush1.bf16.msra.mxu0 0
    %1962 = vmatprep.subr.bf16.mxu0 0
    %1963 = vmatpush1.bf16.msra.mxu0 0
    %1964 = vmatprep.subr.bf16.mxu0 0
    %1965 = vmatpush1.bf16.msra.mxu0 0
    %1966 = vmatprep.subr.bf16.mxu0 0
    %1967 = vmatpush1.bf16.msra.mxu0 0
    %1968 = vmatprep.subr.bf16.mxu0 0
    %1969 = vmatpush1.bf16.msra.mxu0 %v664
    %1970 = vmatprep.subr.bf16.mxu0 0
    %1971 = vmatpush1.bf16.msra.mxu0 %v663
    %1972 = vmatprep.subr.bf16.mxu0 0
    %1973 = vmatpush1.bf16.msra.mxu0 %v662
    %1974 = vmatprep.subr.bf16.mxu0 0
    %1975 = vmatpush1.bf16.msra.mxu0 %v661
    %1976 = vmatprep.subr.bf16.mxu0 0
    %1977 = vmatpush2.bf16.msra.mxu0 0
    %1978 = vmatprep.subr.bf16.mxu0 0
    %1979 = vmatpush2.bf16.msra.mxu0 0
    %1980 = vmatprep.subr.bf16.mxu0 0
    %1981 = vmatpush2.bf16.msra.mxu0 0
    %1982 = vmatprep.subr.bf16.mxu0 0
    %1983 = vmatpush2.bf16.msra.mxu0 0
    %1984 = vmatprep.subr.bf16.mxu0 0
    %1985 = vmatpush2.bf16.msra.mxu0 0
    %1986 = vmatprep.subr.bf16.mxu0 0
    %1987 = vmatpush2.bf16.msra.mxu0 0
    %1988 = vmatprep.subr.bf16.mxu0 0
    %1989 = vmatpush2.bf16.msra.mxu0 0
    %1990 = vmatprep.subr.bf16.mxu0 0
    %1991 = vmatpush2.bf16.msra.mxu0 0
    %1992 = vmatprep.mubr.bf16.mxu0 0
    %1993 = vmatmul.mubr.bf16.gmra.mxu0 %v1958
    %v1994 = vpop.f32.mrf.mxu0
    %v1995 = vadd.f32 %v233, %v1994
    %v1996 = vpop.f32.mrf.mxu0
    %v1997 = vpop.f32.mrf.mxu0
    %v1998 = vpop.f32.mrf.mxu0
    %1999 = vdwg.mxu0
    %v2000 = vxor.u32 %v1995, 2147483648
    %v2001 = vmul.f32 %v2000, 1.442695
    %v2002 = vpow.pop %v2001
    %v2003 = vadd.f32 %v2002, 1.0
    %v2004 = vrcp.pop %v2003
    %v2005 = vmul.f32 1.0, %v2004
    %v2006 = vtanh.pop %v1995
    %v2007 = vmul.f32 %v2005, %v1864
    %2009 = vrot.lane.b32.xlu0 %v2006, 64
    %v2010 = vpop.permute.xlu0 %2009
    %v2012 = vmul.f32 %v2005, %v2010
    %2014 = vrot.lane.b32.xlu0 %v2012, 32
    %v2015 = vpop.permute.xlu0 %2014
    %v2017 = vadd.f32 %v2007, %v2015
    %v2018 = vtanh.pop %v2017
    %2020 = vrot.lane.b32.xlu0 %v2018, 64
    %v2021 = vpop.permute.xlu0 %2020
    %v2023 = vmul.f32 %v2005, %v2021
    %2025 = vrot.lane.b32.xlu0 %v1947, 32
    %v2026 = vpop.permute.xlu0 %2025
    %2029 = vrot.lane.b32.xlu0 %v2023, 64
    %v2030 = vpop.permute.xlu0 %2029
    %v2032 = vsel %vm248, %v2026, %v2030
    %v2033 = vpack.c.bf16 %v2032, %v2032
    %v2035 = vsel %vm421, %v2033, 0
    %2037 = vmatprep.subr.bf16.mxu0 0
    %2038 = vmatpush1.bf16.msra.mxu0 0
    %2039 = vmatprep.subr.bf16.mxu0 0
    %2040 = vmatpush1.bf16.msra.mxu0 0
    %2041 = vmatprep.subr.bf16.mxu0 0
    %2042 = vmatpush1.bf16.msra.mxu0 0
    %2043 = vmatprep.subr.bf16.mxu0 0
    %2044 = vmatpush1.bf16.msra.mxu0 0
    %2045 = vmatprep.subr.bf16.mxu0 0
    %2046 = vmatpush1.bf16.msra.mxu0 %v664
    %2047 = vmatprep.subr.bf16.mxu0 0
    %2048 = vmatpush1.bf16.msra.mxu0 %v663
    %2049 = vmatprep.subr.bf16.mxu0 0
    %2050 = vmatpush1.bf16.msra.mxu0 %v662
    %2051 = vmatprep.subr.bf16.mxu0 0
    %2052 = vmatpush1.bf16.msra.mxu0 %v661
    %2053 = vmatprep.subr.bf16.mxu0 0
    %2054 = vmatpush2.bf16.msra.mxu0 0
    %2055 = vmatprep.subr.bf16.mxu0 0
    %2056 = vmatpush2.bf16.msra.mxu0 0
    %2057 = vmatprep.subr.bf16.mxu0 0
    %2058 = vmatpush2.bf16.msra.mxu0 0
    %2059 = vmatprep.subr.bf16.mxu0 0
    %2060 = vmatpush2.bf16.msra.mxu0 0
    %2061 = vmatprep.subr.bf16.mxu0 0
    %2062 = vmatpush2.bf16.msra.mxu0 0
    %2063 = vmatprep.subr.bf16.mxu0 0
    %2064 = vmatpush2.bf16.msra.mxu0 0
    %2065 = vmatprep.subr.bf16.mxu0 0
    %2066 = vmatpush2.bf16.msra.mxu0 0
    %2067 = vmatprep.subr.bf16.mxu0 0
    %2068 = vmatpush2.bf16.msra.mxu0 0
    %2069 = vmatprep.mubr.bf16.mxu0 0
    %2070 = vmatmul.mubr.bf16.gmra.mxu0 %v2035
    %v2071 = vpop.f32.mrf.mxu0
    %v2072 = vadd.f32 %v233, %v2071
    %v2073 = vpop.f32.mrf.mxu0
    %v2074 = vpop.f32.mrf.mxu0
    %v2075 = vpop.f32.mrf.mxu0
    %2076 = vdwg.mxu0
    %v2077 = vxor.u32 %v2072, 2147483648
    %v2078 = vmul.f32 %v2077, 1.442695
    %v2079 = vpow.pop %v2078
    %v2080 = vadd.f32 %v2079, 1.0
    %v2081 = vrcp.pop %v2080
    %v2082 = vmul.f32 1.0, %v2081
    %v2083 = vtanh.pop %v2072
    %v2084 = vmul.f32 %v2082, %v2017
    %2086 = vrot.lane.b32.xlu0 %v2083, 64
    %v2087 = vpop.permute.xlu0 %2086
    %v2089 = vmul.f32 %v2082, %v2087
    %2091 = vrot.lane.b32.xlu0 %v2089, 32
    %v2092 = vpop.permute.xlu0 %2091
    %v2094 = vadd.f32 %v2084, %v2092
    %v2095 = vtanh.pop %v2094
    %2097 = vrot.lane.b32.xlu0 %v2095, 64
    %v2098 = vpop.permute.xlu0 %2097
    %v2100 = vmul.f32 %v2082, %v2098
    %v2101 = vpack.c.bf16 %v2100, %v2100
    %v2102 = vld [vmem:[#allocation5] sm:$0xf]
    %v2103 = vld [vmem:[#allocation5 + $0x4] sm:$0xf]
    %v2104 = vld [vmem:[#allocation5 + $0x8] sm:$0xf]
    %v2105 = vld [vmem:[#allocation5 + $0xc] sm:$0xf]
    %v2106 = vld [vmem:[#allocation7] sm:$0x1]
    %v2108 = vlaneseq
    %v2109 = vshrl.u32 %v2108, 7
    %v2110 = vsub.s32 0, %v2109
    %v2111 = vrot.slane %v2106, %v2110
    %2114 = vrot.lane.b32.xlu0 %v2101, 32
    %v2115 = vpop.permute.xlu0 %2114
    %v2120 = vunpack.c.l.b16 %v2102
    %v2121 = vunpack.c.l.b16 %v2103
    %v2122 = vunpack.c.l.b16 %v2104
    %v2123 = vunpack.c.l.b16 %v2105
    %v2124 = vpack.c.b16 %v2121, %v2120
    %v2125 = vpack.c.b16 %v2123, %v2122
    %v2129 = vsel %vm248, %v2115, 0
    %2131 = vmatprep.subr.bf16.mxu0 0
    %2132 = vmatpush1.bf16.msra.mxu0 0
    %2133 = vmatprep.subr.bf16.mxu0 0
    %2134 = vmatpush1.bf16.msra.mxu0 0
    %2135 = vmatprep.subr.bf16.mxu0 0
    %2136 = vmatpush1.bf16.msra.mxu0 0
    %2137 = vmatprep.subr.bf16.mxu0 0
    %2138 = vmatpush1.bf16.msra.mxu0 0
    %2139 = vmatprep.subr.bf16.mxu0 0
    %2140 = vmatpush1.bf16.msra.mxu0 0
    %2141 = vmatprep.subr.bf16.mxu0 0
    %2142 = vmatpush1.bf16.msra.mxu0 0
    %2143 = vmatprep.subr.bf16.mxu0 0
    %2144 = vmatpush1.bf16.msra.mxu0 %v2125
    %2145 = vmatprep.subr.bf16.mxu0 0
    %2146 = vmatpush1.bf16.msra.mxu0 %v2124
    %2147 = vmatprep.subr.bf16.mxu0 0
    %2148 = vmatpush2.bf16.msra.mxu0 0
    %2149 = vmatprep.subr.bf16.mxu0 0
    %2150 = vmatpush2.bf16.msra.mxu0 0
    %2151 = vmatprep.subr.bf16.mxu0 0
    %2152 = vmatpush2.bf16.msra.mxu0 0
    %2153 = vmatprep.subr.bf16.mxu0 0
    %2154 = vmatpush2.bf16.msra.mxu0 0
    %2155 = vmatprep.subr.bf16.mxu0 0
    %2156 = vmatpush2.bf16.msra.mxu0 0
    %2157 = vmatprep.subr.bf16.mxu0 0
    %2158 = vmatpush2.bf16.msra.mxu0 0
    %2159 = vmatprep.subr.bf16.mxu0 0
    %2160 = vmatpush2.bf16.msra.mxu0 0
    %2161 = vmatprep.subr.bf16.mxu0 0
    %2162 = vmatpush2.bf16.msra.mxu0 0
    %2163 = vmatprep.mubr.bf16.mxu0 0
    %2164 = vmatmul.mubr.bf16.gmra.mxu0 %v2129
    %v2165 = vpop.f32.mrf.mxu0
    %v2166 = vadd.f32 %v2111, %v2165
    %v2167 = vpop.f32.mrf.mxu0
    %v2168 = vpop.f32.mrf.mxu0
    %v2169 = vpop.f32.mrf.mxu0
    %2170 = vdwg.mxu0
    %2171 = vst [vmem:[%s10] sm:$0xff] %v2166
    // Predicated region
    $region54: #{model_forward.1} parent=1 // pred_check
      _
    $region55: #{model_forward.1} parent=1 // pred_check_branch
      %2173 = sbr.rel (0) target = $region57
    $region56: #{model_forward.1} parent=1 // pred_region
      _
    $region57: #{model_forward.1} parent=1 // pred_fallthru
      _
    // Predicated region
    $region58: #{model_forward.1} parent=1 // pred_check
      _
    $region59: #{model_forward.1} parent=1 // pred_check_branch
      %2175 = sbr.rel (0) target = $region61
    $region60: #{model_forward.1} parent=1 // pred_region
      _
    $region61: #{model_forward.1} parent=1 // pred_fallthru
      _
    %2176 = vsyncpa [#allocation4], 1
    %2177 = vsyncpa [#allocation6], 1

</llo_original>
